<compile_context>
chip_gen: v7x
topology: tpu7x:2x2x1
jax: 0.10.0
libtpu: 0.0.40
codegen_flags: <defaults>
</compile_context>

<pallas_src>
import jax
import jax.numpy as jnp
from jax.experimental import pallas as pl
from jax.experimental.pallas import tpu as pltpu

EPS = 1e-5
NEG_LARGE = float(jnp.finfo(jnp.float32).min)


# ----------------------------- fused kernel --------------------------------

def inception_kernel(x_ref, we_ref, se_ref, be_ref,
                     w2_ref, s2_ref, b2_ref,
                     w4_ref, s4_ref, b4_ref,
                     w6_ref, s6_ref, b6_ref,
                     w7_ref, s7_ref, b7_ref,
                     o_ref,
                     pool_pad, pad24, pad32):
    _, H, W, Cin = x_ref.shape
    M = H * W

    # Load this image (NHWC), flatten spatial -> rows, bf16 for the MXU.
    x3d = x_ref[0]                                    # (H, W, 128) f32
    x_bf = x3d.reshape(M, Cin).astype(jnp.bfloat16)   # (M, 128)

    # Zero the conv padding scratches once; only interiors are overwritten
    # below, so the 1-pixel zero border stays valid across reuse.
    pad24[...] = jnp.zeros(pad24.shape, pad24.dtype)
    pad32[...] = jnp.zeros(pad32.shape, pad32.dtype)

    # ---- fused entry 1x1 convs: conv1(32) | conv3(24) | conv5(24) -----------
    a = jnp.dot(x_bf, we_ref[...], preferred_element_type=jnp.float32)  # (M, 80)
    a = jnp.maximum(a * se_ref[...] + be_ref[...], 0.0)
    y1 = a[:, 0:32]      # branch 1 output
    t3 = a[:, 32:56]     # conv3 output (24 ch)
    t4 = a[:, 56:80]     # conv5 output (24 ch)

    # ---- branch 2: 3x3 maxpool (stride 1, pad 1) then 1x1 conv --------------
    pool_pad[...] = jnp.full(pool_pad.shape, NEG_LARGE, pool_pad.dtype)
    pool_pad[1:H + 1, 1:W + 1, :] = x3d
    # separable pool: max over the 3 column shifts, then the 3 row shifts
    r = jnp.maximum(jnp.maximum(pool_pad[:, 0:W, :], pool_pad[:, 1:W + 1, :]),
                    pool_pad[:, 2:W + 2, :])                     # (H+2, W, 128)
    pooled = jnp.maximum(jnp.maximum(r[0:H], r[1:H + 1]), r[2:H + 2])  # (H, W, 128)
    p_bf = pooled.reshape(M, Cin).astype(jnp.bfloat16)
    y2 = jnp.dot(p_bf, w2_ref[...], preferred_element_type=jnp.float32)
    y2 = jnp.maximum(y2 * s2_ref[...] + b2_ref[...], 0.0)        # (M, 32)

    # ---- helper: 3x3 conv (pad 1) + folded BN + ReLU on an (M, cin) act -----
    def conv3x3(pad_ref, t, cin, w_ref, sc_ref, sh_ref):
        cout = w_ref.shape[-1]
        pad_ref[1:H + 1, 1:W + 1, :] = t.reshape(H, W, cin)
        acc = jnp.zeros((M, cout), jnp.float32)
        for dy in range(3):
            for dx in range(3):
                patch = pad_ref[dy:dy + H, dx:dx + W, :].reshape(M, cin)
                acc = acc + jnp.dot(patch.astype(jnp.bfloat16),
                                    w_ref[dy * 3 + dx],
                                    preferred_element_type=jnp.float32)
        return jnp.maximum(acc * sc_ref[...] + sh_ref[...], 0.0)

    # ---- branch 3: 1x1(24) -> 3x3(32) ---------------------------------------
    y3 = conv3x3(pad24, t3, 24, w4_ref, s4_ref, b4_ref)          # (M, 32)

    # ---- branch 4: 1x1(24) -> 3x3(32) -> 3x3(32) ----------------------------
    t4b = conv3x3(pad24, t4, 24, w6_ref, s6_ref, b6_ref)         # (M, 32)
    y4 = conv3x3(pad32, t4b, 32, w7_ref, s7_ref, b7_ref)         # (M, 32)

    # ---- channel-concatenated, lane-dense 128-wide output block -------------
    o_ref[0, :, :, 0:32] = y1.reshape(H, W, 32).astype(o_ref.dtype)
    o_ref[0, :, :, 32:64] = y2.reshape(H, W, 32).astype(o_ref.dtype)
    o_ref[0, :, :, 64:96] = y3.reshape(H, W, 32).astype(o_ref.dtype)
    o_ref[0, :, :, 96:128] = y4.reshape(H, W, 32).astype(o_ref.dtype)


# ----------------------------- wrapper --------------------------------------

def inception_forward(x_nchw, params):
    """NCHW in / NCHW out, matching the PyTorch module."""
    x = jnp.transpose(x_nchw, (0, 2, 3, 1)).astype(jnp.float32)   # NCHW -> NHWC
    N, H, W, Cin = x.shape
    assert Cin == 128, "Inception block expects 128 input channels"

    weight_args = tuple(params)   # 15 arrays

    x_spec = pl.BlockSpec((1, H, W, Cin), lambda n: (n, 0, 0, 0))
    w_specs = [pl.BlockSpec(a.shape, lambda n, _nd=a.ndim: (0,) * _nd)
               for a in weight_args]
    out_spec = pl.BlockSpec((1, H, W, 128), lambda n: (n, 0, 0, 0))

    out_nhwc = pl.pallas_call(
        inception_kernel,
        out_shape=jax.ShapeDtypeStruct((N, H, W, 128), jnp.float32),
        grid_spec=pltpu.PrefetchScalarGridSpec(
            num_scalar_prefetch=0,
            grid=(N,),
            in_specs=[x_spec] + w_specs,
            out_specs=out_spec,
            scratch_shapes=[
                pltpu.VMEM((H + 2, W + 2, Cin), jnp.float32),  # -inf padded x (maxpool)
                pltpu.VMEM((H + 2, W + 2, 24), jnp.float32),   # zero-padded 24-ch act
                pltpu.VMEM((H + 2, W + 2, 32), jnp.float32),   # zero-padded 32-ch act
            ]),
        compiler_params=pltpu.CompilerParams(
            dimension_semantics=("parallel",)),
    )(x, *weight_args)

    return jnp.transpose(out_nhwc, (0, 3, 1, 2))                  # NHWC -> NCHW


# ----------------------------- parameters -----------------------------------

def init_conv_bn(key, cin, cout, k):
    """Deterministic params for one conv_bn_relu; BN folded into scale/shift."""
    kw, kb, kg, kbe, km, kv = jax.random.split(key, 6)
    fan_in = cin * k * k
    bound = 1.0 / (fan_in ** 0.5)
    w = jax.random.uniform(kw, (cout, cin, k, k), jnp.float32, -bound, bound)
    b = jax.random.uniform(kb, (cout,), jnp.float32, -bound, bound)
    gamma = jax.random.uniform(kg, (cout,), jnp.float32, 0.5, 1.5)
    beta = jax.random.uniform(kbe, (cout,), jnp.float32, -0.5, 0.5)
    mean = jax.random.normal(km, (cout,), jnp.float32) * 0.1
    var = jax.random.uniform(kv, (cout,), jnp.float32, 0.5, 1.5)
    scale = gamma / jnp.sqrt(var + EPS)
    shift = beta + (b - mean) * scale                # conv bias folded (bias=True in spec)
    if k == 1:
        w_k = jnp.transpose(w.reshape(cout, cin), (1, 0))              # (Cin, Cout)
    else:
        w_k = jnp.transpose(w, (2, 3, 1, 0)).reshape(k * k, cin, cout)  # (9, Cin, Cout)
    return (w_k.astype(jnp.bfloat16),                # bf16 weights for the MXU
            scale.reshape(1, cout).astype(jnp.float32),
            shift.reshape(1, cout).astype(jnp.float32))


def init_inception_params(key):
    keys = jax.random.split(key, 7)
    p1 = init_conv_bn(keys[0], 128, 32, 1)   # conv1
    p2 = init_conv_bn(keys[1], 128, 32, 1)   # conv2 (after maxpool)
    p3 = init_conv_bn(keys[2], 128, 24, 1)   # conv3
    p4 = init_conv_bn(keys[3], 24, 32, 3)    # conv4
    p5 = init_conv_bn(keys[4], 128, 24, 1)   # conv5
    p6 = init_conv_bn(keys[5], 24, 32, 3)    # conv6
    p7 = init_conv_bn(keys[6], 32, 32, 3)    # conv7
    # Fuse the three 1x1 convs that all read x (conv1 | conv3 | conv5).
    w_e = jnp.concatenate([p1[0], p3[0], p5[0]], axis=1)   # (128, 80) bf16
    s_e = jnp.concatenate([p1[1], p3[1], p5[1]], axis=1)   # (1, 80)
    b_e = jnp.concatenate([p1[2], p3[2], p5[2]], axis=1)   # (1, 80)
    return (w_e, s_e, b_e) + p2 + p4 + p6 + p7


# ----------------------------- main ------------------------------------------

if __name__ == "__main__":
    key = jax.random.PRNGKey(0)
    kx, kp = jax.random.split(key)
    # Module requires 128 input channels; keep batch/spatial small.
    x = jax.random.normal(kx, (2, 128, 8, 8), jnp.float32)
    params = init_inception_params(kp)

    out = jax.jit(inception_forward)(x, params)
    out = jax.block_until_ready(out)
    assert out.shape == (2, 128, 8, 8), out.shape
    assert bool(jnp.all(jnp.isfinite(out)))
    print("KERNEL_OK")
</pallas_src>

<mosaic_0001>
module attributes {stable_mosaic.version = 11 : i64} {
  func.func @inception_kernel(%arg0: i32, %arg1: memref<1x8x8x128xf32, #tpu.memory_space<vmem>>, %arg2: memref<128x80xbf16, #tpu.memory_space<vmem>>, %arg3: memref<1x80xf32, #tpu.memory_space<vmem>>, %arg4: memref<1x80xf32, #tpu.memory_space<vmem>>, %arg5: memref<128x32xbf16, #tpu.memory_space<vmem>>, %arg6: memref<1x32xf32, #tpu.memory_space<vmem>>, %arg7: memref<1x32xf32, #tpu.memory_space<vmem>>, %arg8: memref<9x24x32xbf16, #tpu.memory_space<vmem>>, %arg9: memref<1x32xf32, #tpu.memory_space<vmem>>, %arg10: memref<1x32xf32, #tpu.memory_space<vmem>>, %arg11: memref<9x24x32xbf16, #tpu.memory_space<vmem>>, %arg12: memref<1x32xf32, #tpu.memory_space<vmem>>, %arg13: memref<1x32xf32, #tpu.memory_space<vmem>>, %arg14: memref<9x32x32xbf16, #tpu.memory_space<vmem>>, %arg15: memref<1x32xf32, #tpu.memory_space<vmem>>, %arg16: memref<1x32xf32, #tpu.memory_space<vmem>>, %arg17: memref<1x8x8x128xf32, #tpu.memory_space<vmem>>, %arg18: memref<10x10x128xf32, #tpu.memory_space<vmem>>, %arg19: memref<10x10x24xf32, #tpu.memory_space<vmem>>, %arg20: memref<10x10x32xf32, #tpu.memory_space<vmem>>) attributes {dimension_semantics = [#tpu.dimension_semantics<parallel>], iteration_bounds = array<i64: 2>, scalar_prefetch = 0 : i64, scratch_operands = 3 : i64, tpu.core_type = #tpu.core_type<tc>, window_params = [{transform_indices = @transform_0, window_bounds = array<i64: 1, 8, 8, 128>}, {pipeline_mode = #tpu.pipeline_mode<synchronous>, transform_indices = @transform_1, window_bounds = array<i64: 128, 80>}, {pipeline_mode = #tpu.pipeline_mode<synchronous>, transform_indices = @transform_2, window_bounds = array<i64: 1, 80>}, {pipeline_mode = #tpu.pipeline_mode<synchronous>, transform_indices = @transform_3, window_bounds = array<i64: 1, 80>}, {pipeline_mode = #tpu.pipeline_mode<synchronous>, transform_indices = @transform_4, window_bounds = array<i64: 128, 32>}, {pipeline_mode = #tpu.pipeline_mode<synchronous>, transform_indices = @transform_5, window_bounds = array<i64: 1, 32>}, {pipeline_mode = #tpu.pipeline_mode<synchronous>, transform_indices = @transform_6, window_bounds = array<i64: 1, 32>}, {pipeline_mode = #tpu.pipeline_mode<synchronous>, transform_indices = @transform_7, window_bounds = array<i64: 9, 24, 32>}, {pipeline_mode = #tpu.pipeline_mode<synchronous>, transform_indices = @transform_8, window_bounds = array<i64: 1, 32>}, {pipeline_mode = #tpu.pipeline_mode<synchronous>, transform_indices = @transform_9, window_bounds = array<i64: 1, 32>}, {pipeline_mode = #tpu.pipeline_mode<synchronous>, transform_indices = @transform_10, window_bounds = array<i64: 9, 24, 32>}, {pipeline_mode = #tpu.pipeline_mode<synchronous>, transform_indices = @transform_11, window_bounds = array<i64: 1, 32>}, {pipeline_mode = #tpu.pipeline_mode<synchronous>, transform_indices = @transform_12, window_bounds = array<i64: 1, 32>}, {pipeline_mode = #tpu.pipeline_mode<synchronous>, transform_indices = @transform_13, window_bounds = array<i64: 9, 32, 32>}, {pipeline_mode = #tpu.pipeline_mode<synchronous>, transform_indices = @transform_14, window_bounds = array<i64: 1, 32>}, {pipeline_mode = #tpu.pipeline_mode<synchronous>, transform_indices = @transform_15, window_bounds = array<i64: 1, 32>}, {transform_indices = @transform_16, window_bounds = array<i64: 1, 8, 8, 128>}]} {
    %c0 = arith.constant 0 : index
    %c0_0 = arith.constant 0 : index
    %c0_1 = arith.constant 0 : index
    %c0_2 = arith.constant 0 : index
    %0 = vector.load %arg1[%c0, %c0_0, %c0_1, %c0_2] : memref<1x8x8x128xf32, #tpu.memory_space<vmem>>, vector<1x8x8x128xf32>
    %1 = vector.shape_cast %0 : vector<1x8x8x128xf32> to vector<8x8x128xf32>
    %2 = vector.shape_cast %1 : vector<8x8x128xf32> to vector<64x128xf32>
    %3 = arith.truncf %2 : vector<64x128xf32> to vector<64x128xbf16>
    %cst = arith.constant 0.000000e+00 : f32
    %4 = vector.broadcast %cst : f32 to vector<10x10x24xf32>
    %c0_3 = arith.constant 0 : index
    %c0_4 = arith.constant 0 : index
    %c0_5 = arith.constant 0 : index
    %5 = vector.load %arg19[%c0_3, %c0_4, %c0_5] : memref<10x10x24xf32, #tpu.memory_space<vmem>>, vector<10x10x24xf32>
    tpu.vector_store %arg19[%c0_3, %c0_4, %c0_5], %4 {strides = array<i32>} : memref<10x10x24xf32, #tpu.memory_space<vmem>>, vector<10x10x24xf32>,
    %cst_6 = arith.constant 0.000000e+00 : f32
    %6 = vector.broadcast %cst_6 : f32 to vector<10x10x32xf32>
    %c0_7 = arith.constant 0 : index
    %c0_8 = arith.constant 0 : index
    %c0_9 = arith.constant 0 : index
    %7 = vector.load %arg20[%c0_7, %c0_8, %c0_9] : memref<10x10x32xf32, #tpu.memory_space<vmem>>, vector<10x10x32xf32>
    tpu.vector_store %arg20[%c0_7, %c0_8, %c0_9], %6 {strides = array<i32>} : memref<10x10x32xf32, #tpu.memory_space<vmem>>, vector<10x10x32xf32>,
    %c0_10 = arith.constant 0 : index
    %c0_11 = arith.constant 0 : index
    %8 = vector.load %arg2[%c0_10, %c0_11] : memref<128x80xbf16, #tpu.memory_space<vmem>>, vector<128x80xbf16>
    %cst_12 = arith.constant dense<0.000000e+00> : vector<64x80xf32>
    %9 = tpu.matmul %3, %8, %cst_12 {dimension_numbers = #tpu.dot_dimension_numbers<[1], [0], [0], [1], [0, 0, 1, 1], [], []>} : vector<64x128xbf16>, vector<128x80xbf16>, vector<64x80xf32> -> vector<64x80xf32>
    %c0_13 = arith.constant 0 : index
    %c0_14 = arith.constant 0 : index
    %10 = vector.load %arg3[%c0_13, %c0_14] : memref<1x80xf32, #tpu.memory_space<vmem>>, vector<1x80xf32>
    %11 = vector.broadcast %10 : vector<1x80xf32> to vector<64x80xf32>
    %12 = arith.mulf %9, %11 : vector<64x80xf32>
    %c0_15 = arith.constant 0 : index
    %c0_16 = arith.constant 0 : index
    %13 = vector.load %arg4[%c0_15, %c0_16] : memref<1x80xf32, #tpu.memory_space<vmem>>, vector<1x80xf32>
    %14 = vector.broadcast %13 : vector<1x80xf32> to vector<64x80xf32>
    %15 = arith.addf %12, %14 : vector<64x80xf32>
    %cst_17 = arith.constant 0.000000e+00 : f32
    %16 = vector.broadcast %cst_17 : f32 to vector<64x80xf32>
    %17 = arith.maximumf %15, %16 : vector<64x80xf32>
    %18 = vector.extract_strided_slice %17 {offsets = [0, 0], sizes = [64, 32], strides = [1, 1]} : vector<64x80xf32> to vector<64x32xf32>
    %19 = vector.extract_strided_slice %17 {offsets = [0, 32], sizes = [64, 24], strides = [1, 1]} : vector<64x80xf32> to vector<64x24xf32>
    %20 = vector.extract_strided_slice %17 {offsets = [0, 56], sizes = [64, 24], strides = [1, 1]} : vector<64x80xf32> to vector<64x24xf32>
    %cst_18 = arith.constant -3.40282347E+38 : f32
    %21 = vector.broadcast %cst_18 : f32 to vector<10x10x128xf32>
    %c0_19 = arith.constant 0 : index
    %c0_20 = arith.constant 0 : index
    %c0_21 = arith.constant 0 : index
    %22 = vector.load %arg18[%c0_19, %c0_20, %c0_21] : memref<10x10x128xf32, #tpu.memory_space<vmem>>, vector<10x10x128xf32>
    tpu.vector_store %arg18[%c0_19, %c0_20, %c0_21], %21 {strides = array<i32>} : memref<10x10x128xf32, #tpu.memory_space<vmem>>, vector<10x10x128xf32>,
    %c1 = arith.constant 1 : index
    %c1_22 = arith.constant 1 : index
    %c0_23 = arith.constant 0 : index
    %23 = vector.load %arg18[%c1, %c1_22, %c0_23] : memref<10x10x128xf32, #tpu.memory_space<vmem>>, vector<8x8x128xf32>
    tpu.vector_store %arg18[%c1, %c1_22, %c0_23], %1 {strides = array<i32>} : memref<10x10x128xf32, #tpu.memory_space<vmem>>, vector<8x8x128xf32>,
    %c0_24 = arith.constant 0 : index
    %c0_25 = arith.constant 0 : index
    %c0_26 = arith.constant 0 : index
    %24 = vector.load %arg18[%c0_24, %c0_25, %c0_26] : memref<10x10x128xf32, #tpu.memory_space<vmem>>, vector<10x8x128xf32>
    %c0_27 = arith.constant 0 : index
    %c1_28 = arith.constant 1 : index
    %c0_29 = arith.constant 0 : index
    %25 = vector.load %arg18[%c0_27, %c1_28, %c0_29] : memref<10x10x128xf32, #tpu.memory_space<vmem>>, vector<10x8x128xf32>
    %26 = arith.maximumf %24, %25 : vector<10x8x128xf32>
    %c0_30 = arith.constant 0 : index
    %c2 = arith.constant 2 : index
    %c0_31 = arith.constant 0 : index
    %27 = vector.load %arg18[%c0_30, %c2, %c0_31] : memref<10x10x128xf32, #tpu.memory_space<vmem>>, vector<10x8x128xf32>
    %28 = arith.maximumf %26, %27 : vector<10x8x128xf32>
    %29 = vector.extract_strided_slice %28 {offsets = [0, 0, 0], sizes = [8, 8, 128], strides = [1, 1, 1]} : vector<10x8x128xf32> to vector<8x8x128xf32>
    %30 = vector.extract_strided_slice %28 {offsets = [1, 0, 0], sizes = [8, 8, 128], strides = [1, 1, 1]} : vector<10x8x128xf32> to vector<8x8x128xf32>
    %31 = arith.maximumf %29, %30 : vector<8x8x128xf32>
    %32 = vector.extract_strided_slice %28 {offsets = [2, 0, 0], sizes = [8, 8, 128], strides = [1, 1, 1]} : vector<10x8x128xf32> to vector<8x8x128xf32>
    %33 = arith.maximumf %31, %32 : vector<8x8x128xf32>
    %34 = vector.shape_cast %33 : vector<8x8x128xf32> to vector<64x128xf32>
    %35 = arith.truncf %34 : vector<64x128xf32> to vector<64x128xbf16>
    %c0_32 = arith.constant 0 : index
    %c0_33 = arith.constant 0 : index
    %36 = vector.load %arg5[%c0_32, %c0_33] : memref<128x32xbf16, #tpu.memory_space<vmem>>, vector<128x32xbf16>
    %cst_34 = arith.constant dense<0.000000e+00> : vector<64x32xf32>
    %37 = tpu.matmul %35, %36, %cst_34 {dimension_numbers = #tpu.dot_dimension_numbers<[1], [0], [0], [1], [0, 0, 1, 1], [], []>} : vector<64x128xbf16>, vector<128x32xbf16>, vector<64x32xf32> -> vector<64x32xf32>
    %c0_35 = arith.constant 0 : index
    %c0_36 = arith.constant 0 : index
    %38 = vector.load %arg6[%c0_35, %c0_36] : memref<1x32xf32, #tpu.memory_space<vmem>>, vector<1x32xf32>
    %39 = vector.broadcast %38 : vector<1x32xf32> to vector<64x32xf32>
    %40 = arith.mulf %37, %39 : vector<64x32xf32>
    %c0_37 = arith.constant 0 : index
    %c0_38 = arith.constant 0 : index
    %41 = vector.load %arg7[%c0_37, %c0_38] : memref<1x32xf32, #tpu.memory_space<vmem>>, vector<1x32xf32>
    %42 = vector.broadcast %41 : vector<1x32xf32> to vector<64x32xf32>
    %43 = arith.addf %40, %42 : vector<64x32xf32>
    %cst_39 = arith.constant 0.000000e+00 : f32
    %44 = vector.broadcast %cst_39 : f32 to vector<64x32xf32>
    %45 = arith.maximumf %43, %44 : vector<64x32xf32>
    %46 = vector.shape_cast %19 : vector<64x24xf32> to vector<8x8x24xf32>
    %c1_40 = arith.constant 1 : index
    %c1_41 = arith.constant 1 : index
    %c0_42 = arith.constant 0 : index
    %47 = vector.load %arg19[%c1_40, %c1_41, %c0_42] : memref<10x10x24xf32, #tpu.memory_space<vmem>>, vector<8x8x24xf32>
    tpu.vector_store %arg19[%c1_40, %c1_41, %c0_42], %46 {strides = array<i32>} : memref<10x10x24xf32, #tpu.memory_space<vmem>>, vector<8x8x24xf32>,
    %cst_43 = arith.constant 0.000000e+00 : f32
    %48 = vector.broadcast %cst_43 : f32 to vector<64x32xf32>
    %c0_44 = arith.constant 0 : index
    %c0_45 = arith.constant 0 : index
    %c0_46 = arith.constant 0 : index
    %49 = vector.load %arg19[%c0_44, %c0_45, %c0_46] : memref<10x10x24xf32, #tpu.memory_space<vmem>>, vector<8x8x24xf32>
    %50 = vector.shape_cast %49 : vector<8x8x24xf32> to vector<64x24xf32>
    %51 = arith.truncf %50 : vector<64x24xf32> to vector<64x24xbf16>
    %c0_47 = arith.constant 0 : index
    %c0_48 = arith.constant 0 : index
    %c0_49 = arith.constant 0 : index
    %52 = vector.load %arg8[%c0_47, %c0_48, %c0_49] : memref<9x24x32xbf16, #tpu.memory_space<vmem>>, vector<1x24x32xbf16>
    %53 = vector.shape_cast %52 : vector<1x24x32xbf16> to vector<24x32xbf16>
    %cst_50 = arith.constant dense<0.000000e+00> : vector<64x32xf32>
    %54 = tpu.matmul %51, %53, %cst_50 {dimension_numbers = #tpu.dot_dimension_numbers<[1], [0], [0], [1], [0, 0, 1, 1], [], []>} : vector<64x24xbf16>, vector<24x32xbf16>, vector<64x32xf32> -> vector<64x32xf32>
    %55 = arith.addf %48, %54 : vector<64x32xf32>
    %c0_51 = arith.constant 0 : index
    %c1_52 = arith.constant 1 : index
    %c0_53 = arith.constant 0 : index
    %56 = vector.load %arg19[%c0_51, %c1_52, %c0_53] : memref<10x10x24xf32, #tpu.memory_space<vmem>>, vector<8x8x24xf32>
    %57 = vector.shape_cast %56 : vector<8x8x24xf32> to vector<64x24xf32>
    %58 = arith.truncf %57 : vector<64x24xf32> to vector<64x24xbf16>
    %c1_54 = arith.constant 1 : index
    %c0_55 = arith.constant 0 : index
    %c0_56 = arith.constant 0 : index
    %59 = vector.load %arg8[%c1_54, %c0_55, %c0_56] : memref<9x24x32xbf16, #tpu.memory_space<vmem>>, vector<1x24x32xbf16>
    %60 = vector.shape_cast %59 : vector<1x24x32xbf16> to vector<24x32xbf16>
    %cst_57 = arith.constant dense<0.000000e+00> : vector<64x32xf32>
    %61 = tpu.matmul %58, %60, %cst_57 {dimension_numbers = #tpu.dot_dimension_numbers<[1], [0], [0], [1], [0, 0, 1, 1], [], []>} : vector<64x24xbf16>, vector<24x32xbf16>, vector<64x32xf32> -> vector<64x32xf32>
    %62 = arith.addf %55, %61 : vector<64x32xf32>
    %c0_58 = arith.constant 0 : index
    %c2_59 = arith.constant 2 : index
    %c0_60 = arith.constant 0 : index
    %63 = vector.load %arg19[%c0_58, %c2_59, %c0_60] : memref<10x10x24xf32, #tpu.memory_space<vmem>>, vector<8x8x24xf32>
    %64 = vector.shape_cast %63 : vector<8x8x24xf32> to vector<64x24xf32>
    %65 = arith.truncf %64 : vector<64x24xf32> to vector<64x24xbf16>
    %c2_61 = arith.constant 2 : index
    %c0_62 = arith.constant 0 : index
    %c0_63 = arith.constant 0 : index
    %66 = vector.load %arg8[%c2_61, %c0_62, %c0_63] : memref<9x24x32xbf16, #tpu.memory_space<vmem>>, vector<1x24x32xbf16>
    %67 = vector.shape_cast %66 : vector<1x24x32xbf16> to vector<24x32xbf16>
    %cst_64 = arith.constant dense<0.000000e+00> : vector<64x32xf32>
    %68 = tpu.matmul %65, %67, %cst_64 {dimension_numbers = #tpu.dot_dimension_numbers<[1], [0], [0], [1], [0, 0, 1, 1], [], []>} : vector<64x24xbf16>, vector<24x32xbf16>, vector<64x32xf32> -> vector<64x32xf32>
    %69 = arith.addf %62, %68 : vector<64x32xf32>
    %c1_65 = arith.constant 1 : index
    %c0_66 = arith.constant 0 : index
    %c0_67 = arith.constant 0 : index
    %70 = vector.load %arg19[%c1_65, %c0_66, %c0_67] : memref<10x10x24xf32, #tpu.memory_space<vmem>>, vector<8x8x24xf32>
    %71 = vector.shape_cast %70 : vector<8x8x24xf32> to vector<64x24xf32>
    %72 = arith.truncf %71 : vector<64x24xf32> to vector<64x24xbf16>
    %c3 = arith.constant 3 : index
    %c0_68 = arith.constant 0 : index
    %c0_69 = arith.constant 0 : index
    %73 = vector.load %arg8[%c3, %c0_68, %c0_69] : memref<9x24x32xbf16, #tpu.memory_space<vmem>>, vector<1x24x32xbf16>
    %74 = vector.shape_cast %73 : vector<1x24x32xbf16> to vector<24x32xbf16>
    %cst_70 = arith.constant dense<0.000000e+00> : vector<64x32xf32>
    %75 = tpu.matmul %72, %74, %cst_70 {dimension_numbers = #tpu.dot_dimension_numbers<[1], [0], [0], [1], [0, 0, 1, 1], [], []>} : vector<64x24xbf16>, vector<24x32xbf16>, vector<64x32xf32> -> vector<64x32xf32>
    %76 = arith.addf %69, %75 : vector<64x32xf32>
    %c1_71 = arith.constant 1 : index
    %c1_72 = arith.constant 1 : index
    %c0_73 = arith.constant 0 : index
    %77 = vector.load %arg19[%c1_71, %c1_72, %c0_73] : memref<10x10x24xf32, #tpu.memory_space<vmem>>, vector<8x8x24xf32>
    %78 = vector.shape_cast %77 : vector<8x8x24xf32> to vector<64x24xf32>
    %79 = arith.truncf %78 : vector<64x24xf32> to vector<64x24xbf16>
    %c4 = arith.constant 4 : index
    %c0_74 = arith.constant 0 : index
    %c0_75 = arith.constant 0 : index
    %80 = vector.load %arg8[%c4, %c0_74, %c0_75] : memref<9x24x32xbf16, #tpu.memory_space<vmem>>, vector<1x24x32xbf16>
    %81 = vector.shape_cast %80 : vector<1x24x32xbf16> to vector<24x32xbf16>
    %cst_76 = arith.constant dense<0.000000e+00> : vector<64x32xf32>
    %82 = tpu.matmul %79, %81, %cst_76 {dimension_numbers = #tpu.dot_dimension_numbers<[1], [0], [0], [1], [0, 0, 1, 1], [], []>} : vector<64x24xbf16>, vector<24x32xbf16>, vector<64x32xf32> -> vector<64x32xf32>
    %83 = arith.addf %76, %82 : vector<64x32xf32>
    %c1_77 = arith.constant 1 : index
    %c2_78 = arith.constant 2 : index
    %c0_79 = arith.constant 0 : index
    %84 = vector.load %arg19[%c1_77, %c2_78, %c0_79] : memref<10x10x24xf32, #tpu.memory_space<vmem>>, vector<8x8x24xf32>
    %85 = vector.shape_cast %84 : vector<8x8x24xf32> to vector<64x24xf32>
    %86 = arith.truncf %85 : vector<64x24xf32> to vector<64x24xbf16>
    %c5 = arith.constant 5 : index
    %c0_80 = arith.constant 0 : index
    %c0_81 = arith.constant 0 : index
    %87 = vector.load %arg8[%c5, %c0_80, %c0_81] : memref<9x24x32xbf16, #tpu.memory_space<vmem>>, vector<1x24x32xbf16>
    %88 = vector.shape_cast %87 : vector<1x24x32xbf16> to vector<24x32xbf16>
    %cst_82 = arith.constant dense<0.000000e+00> : vector<64x32xf32>
    %89 = tpu.matmul %86, %88, %cst_82 {dimension_numbers = #tpu.dot_dimension_numbers<[1], [0], [0], [1], [0, 0, 1, 1], [], []>} : vector<64x24xbf16>, vector<24x32xbf16>, vector<64x32xf32> -> vector<64x32xf32>
    %90 = arith.addf %83, %89 : vector<64x32xf32>
    %c2_83 = arith.constant 2 : index
    %c0_84 = arith.constant 0 : index
    %c0_85 = arith.constant 0 : index
    %91 = vector.load %arg19[%c2_83, %c0_84, %c0_85] : memref<10x10x24xf32, #tpu.memory_space<vmem>>, vector<8x8x24xf32>
    %92 = vector.shape_cast %91 : vector<8x8x24xf32> to vector<64x24xf32>
    %93 = arith.truncf %92 : vector<64x24xf32> to vector<64x24xbf16>
    %c6 = arith.constant 6 : index
    %c0_86 = arith.constant 0 : index
    %c0_87 = arith.constant 0 : index
    %94 = vector.load %arg8[%c6, %c0_86, %c0_87] : memref<9x24x32xbf16, #tpu.memory_space<vmem>>, vector<1x24x32xbf16>
    %95 = vector.shape_cast %94 : vector<1x24x32xbf16> to vector<24x32xbf16>
    %cst_88 = arith.constant dense<0.000000e+00> : vector<64x32xf32>
    %96 = tpu.matmul %93, %95, %cst_88 {dimension_numbers = #tpu.dot_dimension_numbers<[1], [0], [0], [1], [0, 0, 1, 1], [], []>} : vector<64x24xbf16>, vector<24x32xbf16>, vector<64x32xf32> -> vector<64x32xf32>
    %97 = arith.addf %90, %96 : vector<64x32xf32>
    %c2_89 = arith.constant 2 : index
    %c1_90 = arith.constant 1 : index
    %c0_91 = arith.constant 0 : index
    %98 = vector.load %arg19[%c2_89, %c1_90, %c0_91] : memref<10x10x24xf32, #tpu.memory_space<vmem>>, vector<8x8x24xf32>
    %99 = vector.shape_cast %98 : vector<8x8x24xf32> to vector<64x24xf32>
    %100 = arith.truncf %99 : vector<64x24xf32> to vector<64x24xbf16>
    %c7 = arith.constant 7 : index
    %c0_92 = arith.constant 0 : index
    %c0_93 = arith.constant 0 : index
    %101 = vector.load %arg8[%c7, %c0_92, %c0_93] : memref<9x24x32xbf16, #tpu.memory_space<vmem>>, vector<1x24x32xbf16>
    %102 = vector.shape_cast %101 : vector<1x24x32xbf16> to vector<24x32xbf16>
    %cst_94 = arith.constant dense<0.000000e+00> : vector<64x32xf32>
    %103 = tpu.matmul %100, %102, %cst_94 {dimension_numbers = #tpu.dot_dimension_numbers<[1], [0], [0], [1], [0, 0, 1, 1], [], []>} : vector<64x24xbf16>, vector<24x32xbf16>, vector<64x32xf32> -> vector<64x32xf32>
    %104 = arith.addf %97, %103 : vector<64x32xf32>
    %c2_95 = arith.constant 2 : index
    %c2_96 = arith.constant 2 : index
    %c0_97 = arith.constant 0 : index
    %105 = vector.load %arg19[%c2_95, %c2_96, %c0_97] : memref<10x10x24xf32, #tpu.memory_space<vmem>>, vector<8x8x24xf32>
    %106 = vector.shape_cast %105 : vector<8x8x24xf32> to vector<64x24xf32>
    %107 = arith.truncf %106 : vector<64x24xf32> to vector<64x24xbf16>
    %c8 = arith.constant 8 : index
    %c0_98 = arith.constant 0 : index
    %c0_99 = arith.constant 0 : index
    %108 = vector.load %arg8[%c8, %c0_98, %c0_99] : memref<9x24x32xbf16, #tpu.memory_space<vmem>>, vector<1x24x32xbf16>
    %109 = vector.shape_cast %108 : vector<1x24x32xbf16> to vector<24x32xbf16>
    %cst_100 = arith.constant dense<0.000000e+00> : vector<64x32xf32>
    %110 = tpu.matmul %107, %109, %cst_100 {dimension_numbers = #tpu.dot_dimension_numbers<[1], [0], [0], [1], [0, 0, 1, 1], [], []>} : vector<64x24xbf16>, vector<24x32xbf16>, vector<64x32xf32> -> vector<64x32xf32>
    %111 = arith.addf %104, %110 : vector<64x32xf32>
    %c0_101 = arith.constant 0 : index
    %c0_102 = arith.constant 0 : index
    %112 = vector.load %arg9[%c0_101, %c0_102] : memref<1x32xf32, #tpu.memory_space<vmem>>, vector<1x32xf32>
    %113 = vector.broadcast %112 : vector<1x32xf32> to vector<64x32xf32>
    %114 = arith.mulf %111, %113 : vector<64x32xf32>
    %c0_103 = arith.constant 0 : index
    %c0_104 = arith.constant 0 : index
    %115 = vector.load %arg10[%c0_103, %c0_104] : memref<1x32xf32, #tpu.memory_space<vmem>>, vector<1x32xf32>
    %116 = vector.broadcast %115 : vector<1x32xf32> to vector<64x32xf32>
    %117 = arith.addf %114, %116 : vector<64x32xf32>
    %cst_105 = arith.constant 0.000000e+00 : f32
    %118 = vector.broadcast %cst_105 : f32 to vector<64x32xf32>
    %119 = arith.maximumf %117, %118 : vector<64x32xf32>
    %120 = vector.shape_cast %20 : vector<64x24xf32> to vector<8x8x24xf32>
    %c1_106 = arith.constant 1 : index
    %c1_107 = arith.constant 1 : index
    %c0_108 = arith.constant 0 : index
    %121 = vector.load %arg19[%c1_106, %c1_107, %c0_108] : memref<10x10x24xf32, #tpu.memory_space<vmem>>, vector<8x8x24xf32>
    tpu.vector_store %arg19[%c1_106, %c1_107, %c0_108], %120 {strides = array<i32>} : memref<10x10x24xf32, #tpu.memory_space<vmem>>, vector<8x8x24xf32>,
    %cst_109 = arith.constant 0.000000e+00 : f32
    %122 = vector.broadcast %cst_109 : f32 to vector<64x32xf32>
    %c0_110 = arith.constant 0 : index
    %c0_111 = arith.constant 0 : index
    %c0_112 = arith.constant 0 : index
    %123 = vector.load %arg19[%c0_110, %c0_111, %c0_112] : memref<10x10x24xf32, #tpu.memory_space<vmem>>, vector<8x8x24xf32>
    %124 = vector.shape_cast %123 : vector<8x8x24xf32> to vector<64x24xf32>
    %125 = arith.truncf %124 : vector<64x24xf32> to vector<64x24xbf16>
    %c0_113 = arith.constant 0 : index
    %c0_114 = arith.constant 0 : index
    %c0_115 = arith.constant 0 : index
    %126 = vector.load %arg11[%c0_113, %c0_114, %c0_115] : memref<9x24x32xbf16, #tpu.memory_space<vmem>>, vector<1x24x32xbf16>
    %127 = vector.shape_cast %126 : vector<1x24x32xbf16> to vector<24x32xbf16>
    %cst_116 = arith.constant dense<0.000000e+00> : vector<64x32xf32>
    %128 = tpu.matmul %125, %127, %cst_116 {dimension_numbers = #tpu.dot_dimension_numbers<[1], [0], [0], [1], [0, 0, 1, 1], [], []>} : vector<64x24xbf16>, vector<24x32xbf16>, vector<64x32xf32> -> vector<64x32xf32>
    %129 = arith.addf %122, %128 : vector<64x32xf32>
    %c0_117 = arith.constant 0 : index
    %c1_118 = arith.constant 1 : index
    %c0_119 = arith.constant 0 : index
    %130 = vector.load %arg19[%c0_117, %c1_118, %c0_119] : memref<10x10x24xf32, #tpu.memory_space<vmem>>, vector<8x8x24xf32>
    %131 = vector.shape_cast %130 : vector<8x8x24xf32> to vector<64x24xf32>
    %132 = arith.truncf %131 : vector<64x24xf32> to vector<64x24xbf16>
    %c1_120 = arith.constant 1 : index
    %c0_121 = arith.constant 0 : index
    %c0_122 = arith.constant 0 : index
    %133 = vector.load %arg11[%c1_120, %c0_121, %c0_122] : memref<9x24x32xbf16, #tpu.memory_space<vmem>>, vector<1x24x32xbf16>
    %134 = vector.shape_cast %133 : vector<1x24x32xbf16> to vector<24x32xbf16>
    %cst_123 = arith.constant dense<0.000000e+00> : vector<64x32xf32>
    %135 = tpu.matmul %132, %134, %cst_123 {dimension_numbers = #tpu.dot_dimension_numbers<[1], [0], [0], [1], [0, 0, 1, 1], [], []>} : vector<64x24xbf16>, vector<24x32xbf16>, vector<64x32xf32> -> vector<64x32xf32>
    %136 = arith.addf %129, %135 : vector<64x32xf32>
    %c0_124 = arith.constant 0 : index
    %c2_125 = arith.constant 2 : index
    %c0_126 = arith.constant 0 : index
    %137 = vector.load %arg19[%c0_124, %c2_125, %c0_126] : memref<10x10x24xf32, #tpu.memory_space<vmem>>, vector<8x8x24xf32>
    %138 = vector.shape_cast %137 : vector<8x8x24xf32> to vector<64x24xf32>
    %139 = arith.truncf %138 : vector<64x24xf32> to vector<64x24xbf16>
    %c2_127 = arith.constant 2 : index
    %c0_128 = arith.constant 0 : index
    %c0_129 = arith.constant 0 : index
    %140 = vector.load %arg11[%c2_127, %c0_128, %c0_129] : memref<9x24x32xbf16, #tpu.memory_space<vmem>>, vector<1x24x32xbf16>
    %141 = vector.shape_cast %140 : vector<1x24x32xbf16> to vector<24x32xbf16>
    %cst_130 = arith.constant dense<0.000000e+00> : vector<64x32xf32>
    %142 = tpu.matmul %139, %141, %cst_130 {dimension_numbers = #tpu.dot_dimension_numbers<[1], [0], [0], [1], [0, 0, 1, 1], [], []>} : vector<64x24xbf16>, vector<24x32xbf16>, vector<64x32xf32> -> vector<64x32xf32>
    %143 = arith.addf %136, %142 : vector<64x32xf32>
    %c1_131 = arith.constant 1 : index
    %c0_132 = arith.constant 0 : index
    %c0_133 = arith.constant 0 : index
    %144 = vector.load %arg19[%c1_131, %c0_132, %c0_133] : memref<10x10x24xf32, #tpu.memory_space<vmem>>, vector<8x8x24xf32>
    %145 = vector.shape_cast %144 : vector<8x8x24xf32> to vector<64x24xf32>
    %146 = arith.truncf %145 : vector<64x24xf32> to vector<64x24xbf16>
    %c3_134 = arith.constant 3 : index
    %c0_135 = arith.constant 0 : index
    %c0_136 = arith.constant 0 : index
    %147 = vector.load %arg11[%c3_134, %c0_135, %c0_136] : memref<9x24x32xbf16, #tpu.memory_space<vmem>>, vector<1x24x32xbf16>
    %148 = vector.shape_cast %147 : vector<1x24x32xbf16> to vector<24x32xbf16>
    %cst_137 = arith.constant dense<0.000000e+00> : vector<64x32xf32>
    %149 = tpu.matmul %146, %148, %cst_137 {dimension_numbers = #tpu.dot_dimension_numbers<[1], [0], [0], [1], [0, 0, 1, 1], [], []>} : vector<64x24xbf16>, vector<24x32xbf16>, vector<64x32xf32> -> vector<64x32xf32>
    %150 = arith.addf %143, %149 : vector<64x32xf32>
    %c1_138 = arith.constant 1 : index
    %c1_139 = arith.constant 1 : index
    %c0_140 = arith.constant 0 : index
    %151 = vector.load %arg19[%c1_138, %c1_139, %c0_140] : memref<10x10x24xf32, #tpu.memory_space<vmem>>, vector<8x8x24xf32>
    %152 = vector.shape_cast %151 : vector<8x8x24xf32> to vector<64x24xf32>
    %153 = arith.truncf %152 : vector<64x24xf32> to vector<64x24xbf16>
    %c4_141 = arith.constant 4 : index
    %c0_142 = arith.constant 0 : index
    %c0_143 = arith.constant 0 : index
    %154 = vector.load %arg11[%c4_141, %c0_142, %c0_143] : memref<9x24x32xbf16, #tpu.memory_space<vmem>>, vector<1x24x32xbf16>
    %155 = vector.shape_cast %154 : vector<1x24x32xbf16> to vector<24x32xbf16>
    %cst_144 = arith.constant dense<0.000000e+00> : vector<64x32xf32>
    %156 = tpu.matmul %153, %155, %cst_144 {dimension_numbers = #tpu.dot_dimension_numbers<[1], [0], [0], [1], [0, 0, 1, 1], [], []>} : vector<64x24xbf16>, vector<24x32xbf16>, vector<64x32xf32> -> vector<64x32xf32>
    %157 = arith.addf %150, %156 : vector<64x32xf32>
    %c1_145 = arith.constant 1 : index
    %c2_146 = arith.constant 2 : index
    %c0_147 = arith.constant 0 : index
    %158 = vector.load %arg19[%c1_145, %c2_146, %c0_147] : memref<10x10x24xf32, #tpu.memory_space<vmem>>, vector<8x8x24xf32>
    %159 = vector.shape_cast %158 : vector<8x8x24xf32> to vector<64x24xf32>
    %160 = arith.truncf %159 : vector<64x24xf32> to vector<64x24xbf16>
    %c5_148 = arith.constant 5 : index
    %c0_149 = arith.constant 0 : index
    %c0_150 = arith.constant 0 : index
    %161 = vector.load %arg11[%c5_148, %c0_149, %c0_150] : memref<9x24x32xbf16, #tpu.memory_space<vmem>>, vector<1x24x32xbf16>
    %162 = vector.shape_cast %161 : vector<1x24x32xbf16> to vector<24x32xbf16>
    %cst_151 = arith.constant dense<0.000000e+00> : vector<64x32xf32>
    %163 = tpu.matmul %160, %162, %cst_151 {dimension_numbers = #tpu.dot_dimension_numbers<[1], [0], [0], [1], [0, 0, 1, 1], [], []>} : vector<64x24xbf16>, vector<24x32xbf16>, vector<64x32xf32> -> vector<64x32xf32>
    %164 = arith.addf %157, %163 : vector<64x32xf32>
    %c2_152 = arith.constant 2 : index
    %c0_153 = arith.constant 0 : index
    %c0_154 = arith.constant 0 : index
    %165 = vector.load %arg19[%c2_152, %c0_153, %c0_154] : memref<10x10x24xf32, #tpu.memory_space<vmem>>, vector<8x8x24xf32>
    %166 = vector.shape_cast %165 : vector<8x8x24xf32> to vector<64x24xf32>
    %167 = arith.truncf %166 : vector<64x24xf32> to vector<64x24xbf16>
    %c6_155 = arith.constant 6 : index
    %c0_156 = arith.constant 0 : index
    %c0_157 = arith.constant 0 : index
    %168 = vector.load %arg11[%c6_155, %c0_156, %c0_157] : memref<9x24x32xbf16, #tpu.memory_space<vmem>>, vector<1x24x32xbf16>
    %169 = vector.shape_cast %168 : vector<1x24x32xbf16> to vector<24x32xbf16>
    %cst_158 = arith.constant dense<0.000000e+00> : vector<64x32xf32>
    %170 = tpu.matmul %167, %169, %cst_158 {dimension_numbers = #tpu.dot_dimension_numbers<[1], [0], [0], [1], [0, 0, 1, 1], [], []>} : vector<64x24xbf16>, vector<24x32xbf16>, vector<64x32xf32> -> vector<64x32xf32>
    %171 = arith.addf %164, %170 : vector<64x32xf32>
    %c2_159 = arith.constant 2 : index
    %c1_160 = arith.constant 1 : index
    %c0_161 = arith.constant 0 : index
    %172 = vector.load %arg19[%c2_159, %c1_160, %c0_161] : memref<10x10x24xf32, #tpu.memory_space<vmem>>, vector<8x8x24xf32>
    %173 = vector.shape_cast %172 : vector<8x8x24xf32> to vector<64x24xf32>
    %174 = arith.truncf %173 : vector<64x24xf32> to vector<64x24xbf16>
    %c7_162 = arith.constant 7 : index
    %c0_163 = arith.constant 0 : index
    %c0_164 = arith.constant 0 : index
    %175 = vector.load %arg11[%c7_162, %c0_163, %c0_164] : memref<9x24x32xbf16, #tpu.memory_space<vmem>>, vector<1x24x32xbf16>
    %176 = vector.shape_cast %175 : vector<1x24x32xbf16> to vector<24x32xbf16>
    %cst_165 = arith.constant dense<0.000000e+00> : vector<64x32xf32>
    %177 = tpu.matmul %174, %176, %cst_165 {dimension_numbers = #tpu.dot_dimension_numbers<[1], [0], [0], [1], [0, 0, 1, 1], [], []>} : vector<64x24xbf16>, vector<24x32xbf16>, vector<64x32xf32> -> vector<64x32xf32>
    %178 = arith.addf %171, %177 : vector<64x32xf32>
    %c2_166 = arith.constant 2 : index
    %c2_167 = arith.constant 2 : index
    %c0_168 = arith.constant 0 : index
    %179 = vector.load %arg19[%c2_166, %c2_167, %c0_168] : memref<10x10x24xf32, #tpu.memory_space<vmem>>, vector<8x8x24xf32>
    %180 = vector.shape_cast %179 : vector<8x8x24xf32> to vector<64x24xf32>
    %181 = arith.truncf %180 : vector<64x24xf32> to vector<64x24xbf16>
    %c8_169 = arith.constant 8 : index
    %c0_170 = arith.constant 0 : index
    %c0_171 = arith.constant 0 : index
    %182 = vector.load %arg11[%c8_169, %c0_170, %c0_171] : memref<9x24x32xbf16, #tpu.memory_space<vmem>>, vector<1x24x32xbf16>
    %183 = vector.shape_cast %182 : vector<1x24x32xbf16> to vector<24x32xbf16>
    %cst_172 = arith.constant dense<0.000000e+00> : vector<64x32xf32>
    %184 = tpu.matmul %181, %183, %cst_172 {dimension_numbers = #tpu.dot_dimension_numbers<[1], [0], [0], [1], [0, 0, 1, 1], [], []>} : vector<64x24xbf16>, vector<24x32xbf16>, vector<64x32xf32> -> vector<64x32xf32>
    %185 = arith.addf %178, %184 : vector<64x32xf32>
    %c0_173 = arith.constant 0 : index
    %c0_174 = arith.constant 0 : index
    %186 = vector.load %arg12[%c0_173, %c0_174] : memref<1x32xf32, #tpu.memory_space<vmem>>, vector<1x32xf32>
    %187 = vector.broadcast %186 : vector<1x32xf32> to vector<64x32xf32>
    %188 = arith.mulf %185, %187 : vector<64x32xf32>
    %c0_175 = arith.constant 0 : index
    %c0_176 = arith.constant 0 : index
    %189 = vector.load %arg13[%c0_175, %c0_176] : memref<1x32xf32, #tpu.memory_space<vmem>>, vector<1x32xf32>
    %190 = vector.broadcast %189 : vector<1x32xf32> to vector<64x32xf32>
    %191 = arith.addf %188, %190 : vector<64x32xf32>
    %cst_177 = arith.constant 0.000000e+00 : f32
    %192 = vector.broadcast %cst_177 : f32 to vector<64x32xf32>
    %193 = arith.maximumf %191, %192 : vector<64x32xf32>
    %194 = vector.shape_cast %193 : vector<64x32xf32> to vector<8x8x32xf32>
    %c1_178 = arith.constant 1 : index
    %c1_179 = arith.constant 1 : index
    %c0_180 = arith.constant 0 : index
    %195 = vector.load %arg20[%c1_178, %c1_179, %c0_180] : memref<10x10x32xf32, #tpu.memory_space<vmem>>, vector<8x8x32xf32>
    tpu.vector_store %arg20[%c1_178, %c1_179, %c0_180], %194 {strides = array<i32>} : memref<10x10x32xf32, #tpu.memory_space<vmem>>, vector<8x8x32xf32>,
    %cst_181 = arith.constant 0.000000e+00 : f32
    %196 = vector.broadcast %cst_181 : f32 to vector<64x32xf32>
    %c0_182 = arith.constant 0 : index
    %c0_183 = arith.constant 0 : index
    %c0_184 = arith.constant 0 : index
    %197 = vector.load %arg20[%c0_182, %c0_183, %c0_184] : memref<10x10x32xf32, #tpu.memory_space<vmem>>, vector<8x8x32xf32>
    %198 = vector.shape_cast %197 : vector<8x8x32xf32> to vector<64x32xf32>
    %199 = arith.truncf %198 : vector<64x32xf32> to vector<64x32xbf16>
    %c0_185 = arith.constant 0 : index
    %c0_186 = arith.constant 0 : index
    %c0_187 = arith.constant 0 : index
    %200 = vector.load %arg14[%c0_185, %c0_186, %c0_187] : memref<9x32x32xbf16, #tpu.memory_space<vmem>>, vector<1x32x32xbf16>
    %201 = vector.shape_cast %200 : vector<1x32x32xbf16> to vector<32x32xbf16>
    %cst_188 = arith.constant dense<0.000000e+00> : vector<64x32xf32>
    %202 = tpu.matmul %199, %201, %cst_188 {dimension_numbers = #tpu.dot_dimension_numbers<[1], [0], [0], [1], [0, 0, 1, 1], [], []>} : vector<64x32xbf16>, vector<32x32xbf16>, vector<64x32xf32> -> vector<64x32xf32>
    %203 = arith.addf %196, %202 : vector<64x32xf32>
    %c0_189 = arith.constant 0 : index
    %c1_190 = arith.constant 1 : index
    %c0_191 = arith.constant 0 : index
    %204 = vector.load %arg20[%c0_189, %c1_190, %c0_191] : memref<10x10x32xf32, #tpu.memory_space<vmem>>, vector<8x8x32xf32>
    %205 = vector.shape_cast %204 : vector<8x8x32xf32> to vector<64x32xf32>
    %206 = arith.truncf %205 : vector<64x32xf32> to vector<64x32xbf16>
    %c1_192 = arith.constant 1 : index
    %c0_193 = arith.constant 0 : index
    %c0_194 = arith.constant 0 : index
    %207 = vector.load %arg14[%c1_192, %c0_193, %c0_194] : memref<9x32x32xbf16, #tpu.memory_space<vmem>>, vector<1x32x32xbf16>
    %208 = vector.shape_cast %207 : vector<1x32x32xbf16> to vector<32x32xbf16>
    %cst_195 = arith.constant dense<0.000000e+00> : vector<64x32xf32>
    %209 = tpu.matmul %206, %208, %cst_195 {dimension_numbers = #tpu.dot_dimension_numbers<[1], [0], [0], [1], [0, 0, 1, 1], [], []>} : vector<64x32xbf16>, vector<32x32xbf16>, vector<64x32xf32> -> vector<64x32xf32>
    %210 = arith.addf %203, %209 : vector<64x32xf32>
    %c0_196 = arith.constant 0 : index
    %c2_197 = arith.constant 2 : index
    %c0_198 = arith.constant 0 : index
    %211 = vector.load %arg20[%c0_196, %c2_197, %c0_198] : memref<10x10x32xf32, #tpu.memory_space<vmem>>, vector<8x8x32xf32>
    %212 = vector.shape_cast %211 : vector<8x8x32xf32> to vector<64x32xf32>
    %213 = arith.truncf %212 : vector<64x32xf32> to vector<64x32xbf16>
    %c2_199 = arith.constant 2 : index
    %c0_200 = arith.constant 0 : index
    %c0_201 = arith.constant 0 : index
    %214 = vector.load %arg14[%c2_199, %c0_200, %c0_201] : memref<9x32x32xbf16, #tpu.memory_space<vmem>>, vector<1x32x32xbf16>
    %215 = vector.shape_cast %214 : vector<1x32x32xbf16> to vector<32x32xbf16>
    %cst_202 = arith.constant dense<0.000000e+00> : vector<64x32xf32>
    %216 = tpu.matmul %213, %215, %cst_202 {dimension_numbers = #tpu.dot_dimension_numbers<[1], [0], [0], [1], [0, 0, 1, 1], [], []>} : vector<64x32xbf16>, vector<32x32xbf16>, vector<64x32xf32> -> vector<64x32xf32>
    %217 = arith.addf %210, %216 : vector<64x32xf32>
    %c1_203 = arith.constant 1 : index
    %c0_204 = arith.constant 0 : index
    %c0_205 = arith.constant 0 : index
    %218 = vector.load %arg20[%c1_203, %c0_204, %c0_205] : memref<10x10x32xf32, #tpu.memory_space<vmem>>, vector<8x8x32xf32>
    %219 = vector.shape_cast %218 : vector<8x8x32xf32> to vector<64x32xf32>
    %220 = arith.truncf %219 : vector<64x32xf32> to vector<64x32xbf16>
    %c3_206 = arith.constant 3 : index
    %c0_207 = arith.constant 0 : index
    %c0_208 = arith.constant 0 : index
    %221 = vector.load %arg14[%c3_206, %c0_207, %c0_208] : memref<9x32x32xbf16, #tpu.memory_space<vmem>>, vector<1x32x32xbf16>
    %222 = vector.shape_cast %221 : vector<1x32x32xbf16> to vector<32x32xbf16>
    %cst_209 = arith.constant dense<0.000000e+00> : vector<64x32xf32>
    %223 = tpu.matmul %220, %222, %cst_209 {dimension_numbers = #tpu.dot_dimension_numbers<[1], [0], [0], [1], [0, 0, 1, 1], [], []>} : vector<64x32xbf16>, vector<32x32xbf16>, vector<64x32xf32> -> vector<64x32xf32>
    %224 = arith.addf %217, %223 : vector<64x32xf32>
    %c1_210 = arith.constant 1 : index
    %c1_211 = arith.constant 1 : index
    %c0_212 = arith.constant 0 : index
    %225 = vector.load %arg20[%c1_210, %c1_211, %c0_212] : memref<10x10x32xf32, #tpu.memory_space<vmem>>, vector<8x8x32xf32>
    %226 = vector.shape_cast %225 : vector<8x8x32xf32> to vector<64x32xf32>
    %227 = arith.truncf %226 : vector<64x32xf32> to vector<64x32xbf16>
    %c4_213 = arith.constant 4 : index
    %c0_214 = arith.constant 0 : index
    %c0_215 = arith.constant 0 : index
    %228 = vector.load %arg14[%c4_213, %c0_214, %c0_215] : memref<9x32x32xbf16, #tpu.memory_space<vmem>>, vector<1x32x32xbf16>
    %229 = vector.shape_cast %228 : vector<1x32x32xbf16> to vector<32x32xbf16>
    %cst_216 = arith.constant dense<0.000000e+00> : vector<64x32xf32>
    %230 = tpu.matmul %227, %229, %cst_216 {dimension_numbers = #tpu.dot_dimension_numbers<[1], [0], [0], [1], [0, 0, 1, 1], [], []>} : vector<64x32xbf16>, vector<32x32xbf16>, vector<64x32xf32> -> vector<64x32xf32>
    %231 = arith.addf %224, %230 : vector<64x32xf32>
    %c1_217 = arith.constant 1 : index
    %c2_218 = arith.constant 2 : index
    %c0_219 = arith.constant 0 : index
    %232 = vector.load %arg20[%c1_217, %c2_218, %c0_219] : memref<10x10x32xf32, #tpu.memory_space<vmem>>, vector<8x8x32xf32>
    %233 = vector.shape_cast %232 : vector<8x8x32xf32> to vector<64x32xf32>
    %234 = arith.truncf %233 : vector<64x32xf32> to vector<64x32xbf16>
    %c5_220 = arith.constant 5 : index
    %c0_221 = arith.constant 0 : index
    %c0_222 = arith.constant 0 : index
    %235 = vector.load %arg14[%c5_220, %c0_221, %c0_222] : memref<9x32x32xbf16, #tpu.memory_space<vmem>>, vector<1x32x32xbf16>
    %236 = vector.shape_cast %235 : vector<1x32x32xbf16> to vector<32x32xbf16>
    %cst_223 = arith.constant dense<0.000000e+00> : vector<64x32xf32>
    %237 = tpu.matmul %234, %236, %cst_223 {dimension_numbers = #tpu.dot_dimension_numbers<[1], [0], [0], [1], [0, 0, 1, 1], [], []>} : vector<64x32xbf16>, vector<32x32xbf16>, vector<64x32xf32> -> vector<64x32xf32>
    %238 = arith.addf %231, %237 : vector<64x32xf32>
    %c2_224 = arith.constant 2 : index
    %c0_225 = arith.constant 0 : index
    %c0_226 = arith.constant 0 : index
    %239 = vector.load %arg20[%c2_224, %c0_225, %c0_226] : memref<10x10x32xf32, #tpu.memory_space<vmem>>, vector<8x8x32xf32>
    %240 = vector.shape_cast %239 : vector<8x8x32xf32> to vector<64x32xf32>
    %241 = arith.truncf %240 : vector<64x32xf32> to vector<64x32xbf16>
    %c6_227 = arith.constant 6 : index
    %c0_228 = arith.constant 0 : index
    %c0_229 = arith.constant 0 : index
    %242 = vector.load %arg14[%c6_227, %c0_228, %c0_229] : memref<9x32x32xbf16, #tpu.memory_space<vmem>>, vector<1x32x32xbf16>
    %243 = vector.shape_cast %242 : vector<1x32x32xbf16> to vector<32x32xbf16>
    %cst_230 = arith.constant dense<0.000000e+00> : vector<64x32xf32>
    %244 = tpu.matmul %241, %243, %cst_230 {dimension_numbers = #tpu.dot_dimension_numbers<[1], [0], [0], [1], [0, 0, 1, 1], [], []>} : vector<64x32xbf16>, vector<32x32xbf16>, vector<64x32xf32> -> vector<64x32xf32>
    %245 = arith.addf %238, %244 : vector<64x32xf32>
    %c2_231 = arith.constant 2 : index
    %c1_232 = arith.constant 1 : index
    %c0_233 = arith.constant 0 : index
    %246 = vector.load %arg20[%c2_231, %c1_232, %c0_233] : memref<10x10x32xf32, #tpu.memory_space<vmem>>, vector<8x8x32xf32>
    %247 = vector.shape_cast %246 : vector<8x8x32xf32> to vector<64x32xf32>
    %248 = arith.truncf %247 : vector<64x32xf32> to vector<64x32xbf16>
    %c7_234 = arith.constant 7 : index
    %c0_235 = arith.constant 0 : index
    %c0_236 = arith.constant 0 : index
    %249 = vector.load %arg14[%c7_234, %c0_235, %c0_236] : memref<9x32x32xbf16, #tpu.memory_space<vmem>>, vector<1x32x32xbf16>
    %250 = vector.shape_cast %249 : vector<1x32x32xbf16> to vector<32x32xbf16>
    %cst_237 = arith.constant dense<0.000000e+00> : vector<64x32xf32>
    %251 = tpu.matmul %248, %250, %cst_237 {dimension_numbers = #tpu.dot_dimension_numbers<[1], [0], [0], [1], [0, 0, 1, 1], [], []>} : vector<64x32xbf16>, vector<32x32xbf16>, vector<64x32xf32> -> vector<64x32xf32>
    %252 = arith.addf %245, %251 : vector<64x32xf32>
    %c2_238 = arith.constant 2 : index
    %c2_239 = arith.constant 2 : index
    %c0_240 = arith.constant 0 : index
    %253 = vector.load %arg20[%c2_238, %c2_239, %c0_240] : memref<10x10x32xf32, #tpu.memory_space<vmem>>, vector<8x8x32xf32>
    %254 = vector.shape_cast %253 : vector<8x8x32xf32> to vector<64x32xf32>
    %255 = arith.truncf %254 : vector<64x32xf32> to vector<64x32xbf16>
    %c8_241 = arith.constant 8 : index
    %c0_242 = arith.constant 0 : index
    %c0_243 = arith.constant 0 : index
    %256 = vector.load %arg14[%c8_241, %c0_242, %c0_243] : memref<9x32x32xbf16, #tpu.memory_space<vmem>>, vector<1x32x32xbf16>
    %257 = vector.shape_cast %256 : vector<1x32x32xbf16> to vector<32x32xbf16>
    %cst_244 = arith.constant dense<0.000000e+00> : vector<64x32xf32>
    %258 = tpu.matmul %255, %257, %cst_244 {dimension_numbers = #tpu.dot_dimension_numbers<[1], [0], [0], [1], [0, 0, 1, 1], [], []>} : vector<64x32xbf16>, vector<32x32xbf16>, vector<64x32xf32> -> vector<64x32xf32>
    %259 = arith.addf %252, %258 : vector<64x32xf32>
    %c0_245 = arith.constant 0 : index
    %c0_246 = arith.constant 0 : index
    %260 = vector.load %arg15[%c0_245, %c0_246] : memref<1x32xf32, #tpu.memory_space<vmem>>, vector<1x32xf32>
    %261 = vector.broadcast %260 : vector<1x32xf32> to vector<64x32xf32>
    %262 = arith.mulf %259, %261 : vector<64x32xf32>
    %c0_247 = arith.constant 0 : index
    %c0_248 = arith.constant 0 : index
    %263 = vector.load %arg16[%c0_247, %c0_248] : memref<1x32xf32, #tpu.memory_space<vmem>>, vector<1x32xf32>
    %264 = vector.broadcast %263 : vector<1x32xf32> to vector<64x32xf32>
    %265 = arith.addf %262, %264 : vector<64x32xf32>
    %cst_249 = arith.constant 0.000000e+00 : f32
    %266 = vector.broadcast %cst_249 : f32 to vector<64x32xf32>
    %267 = arith.maximumf %265, %266 : vector<64x32xf32>
    %268 = vector.shape_cast %18 : vector<64x32xf32> to vector<8x8x32xf32>
    %c0_250 = arith.constant 0 : index
    %c0_251 = arith.constant 0 : index
    %c0_252 = arith.constant 0 : index
    %c0_253 = arith.constant 0 : index
    %269 = vector.load %arg17[%c0_250, %c0_251, %c0_252, %c0_253] : memref<1x8x8x128xf32, #tpu.memory_space<vmem>>, vector<1x8x8x32xf32>
    %270 = vector.shape_cast %269 : vector<1x8x8x32xf32> to vector<8x8x32xf32>
    %271 = vector.shape_cast %268 : vector<8x8x32xf32> to vector<1x8x8x32xf32>
    tpu.vector_store %arg17[%c0_250, %c0_251, %c0_252, %c0_253], %271 {strides = array<i32>} : memref<1x8x8x128xf32, #tpu.memory_space<vmem>>, vector<1x8x8x32xf32>,
    %272 = vector.shape_cast %45 : vector<64x32xf32> to vector<8x8x32xf32>
    %c0_254 = arith.constant 0 : index
    %c0_255 = arith.constant 0 : index
    %c0_256 = arith.constant 0 : index
    %c32 = arith.constant 32 : index
    %273 = vector.load %arg17[%c0_254, %c0_255, %c0_256, %c32] : memref<1x8x8x128xf32, #tpu.memory_space<vmem>>, vector<1x8x8x32xf32>
    %274 = vector.shape_cast %273 : vector<1x8x8x32xf32> to vector<8x8x32xf32>
    %275 = vector.shape_cast %272 : vector<8x8x32xf32> to vector<1x8x8x32xf32>
    tpu.vector_store %arg17[%c0_254, %c0_255, %c0_256, %c32], %275 {strides = array<i32>} : memref<1x8x8x128xf32, #tpu.memory_space<vmem>>, vector<1x8x8x32xf32>,
    %276 = vector.shape_cast %119 : vector<64x32xf32> to vector<8x8x32xf32>
    %c0_257 = arith.constant 0 : index
    %c0_258 = arith.constant 0 : index
    %c0_259 = arith.constant 0 : index
    %c64 = arith.constant 64 : index
    %277 = vector.load %arg17[%c0_257, %c0_258, %c0_259, %c64] : memref<1x8x8x128xf32, #tpu.memory_space<vmem>>, vector<1x8x8x32xf32>
    %278 = vector.shape_cast %277 : vector<1x8x8x32xf32> to vector<8x8x32xf32>
    %279 = vector.shape_cast %276 : vector<8x8x32xf32> to vector<1x8x8x32xf32>
    tpu.vector_store %arg17[%c0_257, %c0_258, %c0_259, %c64], %279 {strides = array<i32>} : memref<1x8x8x128xf32, #tpu.memory_space<vmem>>, vector<1x8x8x32xf32>,
    %280 = vector.shape_cast %267 : vector<64x32xf32> to vector<8x8x32xf32>
    %c0_260 = arith.constant 0 : index
    %c0_261 = arith.constant 0 : index
    %c0_262 = arith.constant 0 : index
    %c96 = arith.constant 96 : index
    %281 = vector.load %arg17[%c0_260, %c0_261, %c0_262, %c96] : memref<1x8x8x128xf32, #tpu.memory_space<vmem>>, vector<1x8x8x32xf32>
    %282 = vector.shape_cast %281 : vector<1x8x8x32xf32> to vector<8x8x32xf32>
    %283 = vector.shape_cast %280 : vector<8x8x32xf32> to vector<1x8x8x32xf32>
    tpu.vector_store %arg17[%c0_260, %c0_261, %c0_262, %c96], %283 {strides = array<i32>} : memref<1x8x8x128xf32, #tpu.memory_space<vmem>>, vector<1x8x8x32xf32>,
    return
  }
  func.func @transform_0(%arg0: i32) -> (i32, i32, i32, i32) {
    %c0_i32 = arith.constant 0 : i32
    %c0_i32_0 = arith.constant 0 : i32
    %c0_i32_1 = arith.constant 0 : i32
    %c0_i32_2 = arith.constant 0 : i32
    return %arg0, %c0_i32, %c0_i32_0, %c0_i32_1 : i32, i32, i32, i32
  }
  func.func @transform_1(%arg0: i32) -> (i32, i32) {
    %c0_i32 = arith.constant 0 : i32
    %c0_i32_0 = arith.constant 0 : i32
    %c0_i32_1 = arith.constant 0 : i32
    return %c0_i32, %c0_i32_0 : i32, i32
  }
  func.func @transform_2(%arg0: i32) -> (i32, i32) {
    %c0_i32 = arith.constant 0 : i32
    %c0_i32_0 = arith.constant 0 : i32
    %c0_i32_1 = arith.constant 0 : i32
    return %c0_i32, %c0_i32_0 : i32, i32
  }
  func.func @transform_3(%arg0: i32) -> (i32, i32) {
    %c0_i32 = arith.constant 0 : i32
    %c0_i32_0 = arith.constant 0 : i32
    %c0_i32_1 = arith.constant 0 : i32
    return %c0_i32, %c0_i32_0 : i32, i32
  }
  func.func @transform_4(%arg0: i32) -> (i32, i32) {
    %c0_i32 = arith.constant 0 : i32
    %c0_i32_0 = arith.constant 0 : i32
    %c0_i32_1 = arith.constant 0 : i32
    return %c0_i32, %c0_i32_0 : i32, i32
  }
  func.func @transform_5(%arg0: i32) -> (i32, i32) {
    %c0_i32 = arith.constant 0 : i32
    %c0_i32_0 = arith.constant 0 : i32
    %c0_i32_1 = arith.constant 0 : i32
    return %c0_i32, %c0_i32_0 : i32, i32
  }
  func.func @transform_6(%arg0: i32) -> (i32, i32) {
    %c0_i32 = arith.constant 0 : i32
    %c0_i32_0 = arith.constant 0 : i32
    %c0_i32_1 = arith.constant 0 : i32
    return %c0_i32, %c0_i32_0 : i32, i32
  }
  func.func @transform_7(%arg0: i32) -> (i32, i32, i32) {
    %c0_i32 = arith.constant 0 : i32
    %c0_i32_0 = arith.constant 0 : i32
    %c0_i32_1 = arith.constant 0 : i32
    %c0_i32_2 = arith.constant 0 : i32
    return %c0_i32, %c0_i32_0, %c0_i32_1 : i32, i32, i32
  }
  func.func @transform_8(%arg0: i32) -> (i32, i32) {
    %c0_i32 = arith.constant 0 : i32
    %c0_i32_0 = arith.constant 0 : i32
    %c0_i32_1 = arith.constant 0 : i32
    return %c0_i32, %c0_i32_0 : i32, i32
  }
  func.func @transform_9(%arg0: i32) -> (i32, i32) {
    %c0_i32 = arith.constant 0 : i32
    %c0_i32_0 = arith.constant 0 : i32
    %c0_i32_1 = arith.constant 0 : i32
    return %c0_i32, %c0_i32_0 : i32, i32
  }
  func.func @transform_10(%arg0: i32) -> (i32, i32, i32) {
    %c0_i32 = arith.constant 0 : i32
    %c0_i32_0 = arith.constant 0 : i32
    %c0_i32_1 = arith.constant 0 : i32
    %c0_i32_2 = arith.constant 0 : i32
    return %c0_i32, %c0_i32_0, %c0_i32_1 : i32, i32, i32
  }
  func.func @transform_11(%arg0: i32) -> (i32, i32) {
    %c0_i32 = arith.constant 0 : i32
    %c0_i32_0 = arith.constant 0 : i32
    %c0_i32_1 = arith.constant 0 : i32
    return %c0_i32, %c0_i32_0 : i32, i32
  }
  func.func @transform_12(%arg0: i32) -> (i32, i32) {
    %c0_i32 = arith.constant 0 : i32
    %c0_i32_0 = arith.constant 0 : i32
    %c0_i32_1 = arith.constant 0 : i32
    return %c0_i32, %c0_i32_0 : i32, i32
  }
  func.func @transform_13(%arg0: i32) -> (i32, i32, i32) {
    %c0_i32 = arith.constant 0 : i32
    %c0_i32_0 = arith.constant 0 : i32
    %c0_i32_1 = arith.constant 0 : i32
    %c0_i32_2 = arith.constant 0 : i32
    return %c0_i32, %c0_i32_0, %c0_i32_1 : i32, i32, i32
  }
  func.func @transform_14(%arg0: i32) -> (i32, i32) {
    %c0_i32 = arith.constant 0 : i32
    %c0_i32_0 = arith.constant 0 : i32
    %c0_i32_1 = arith.constant 0 : i32
    return %c0_i32, %c0_i32_0 : i32, i32
  }
  func.func @transform_15(%arg0: i32) -> (i32, i32) {
    %c0_i32 = arith.constant 0 : i32
    %c0_i32_0 = arith.constant 0 : i32
    %c0_i32_1 = arith.constant 0 : i32
    return %c0_i32, %c0_i32_0 : i32, i32
  }
  func.func @transform_16(%arg0: i32) -> (i32, i32, i32, i32) {
    %c0_i32 = arith.constant 0 : i32
    %c0_i32_0 = arith.constant 0 : i32
    %c0_i32_1 = arith.constant 0 : i32
    %c0_i32_2 = arith.constant 0 : i32
    return %arg0, %c0_i32, %c0_i32_0, %c0_i32_1 : i32, i32, i32, i32
  }
}

</mosaic_0001>

<llo_original>
// kernel: inception_forward.1
$region0: #{inception_forward.1}
  #allocation0 [shape = 'u32[]', space=smem, size = 0x4, offset = 0x4, fixed_abs, tag = 'smem constant byte address 0x4 - core index']
  #allocation1 [shape = 'u32[144,128]{1,0:T(1,128)}', space=vmem, size = 0x12000, scoped, tag = 'internal scratch']
  #allocation2 [shape = 'f32[10,10,128]{2,1,0:T(8,128)}', space=vmem, size = 0x14000, scoped, tag = 'scratch operand']
  #allocation3 [shape = 'f32[10,10,24]{2,1,0:T(8,128)}', space=vmem, size = 0x14000, scoped, tag = 'scratch operand']
  #allocation4 [shape = 'f32[10,10,32]{2,1,0:T(8,128)}', space=vmem, size = 0x14000, scoped, tag = 'scratch operand']
  %s0 = inlined_call_operand.hbm [shape: f32[2,8,8,128], index: 0, kind: input, shape index: {}]
  %s1 = inlined_call_operand.vmem [shape: bf16[128,80], index: 1, kind: input, shape index: {}]
  %s2 = inlined_call_operand.vmem [shape: f32[1,80], index: 2, kind: input, shape index: {}]
  %s3 = inlined_call_operand.vmem [shape: f32[1,80], index: 3, kind: input, shape index: {}]
  %s4 = inlined_call_operand.vmem [shape: bf16[128,32], index: 4, kind: input, shape index: {}]
  %s5 = inlined_call_operand.vmem [shape: f32[1,32], index: 5, kind: input, shape index: {}]
  %s6 = inlined_call_operand.vmem [shape: f32[1,32], index: 6, kind: input, shape index: {}]
  %s7 = inlined_call_operand.hbm [shape: bf16[9,24,32], index: 7, kind: input, shape index: {}]
  %s8 = inlined_call_operand.vmem [shape: f32[1,32], index: 8, kind: input, shape index: {}]
  %s9 = inlined_call_operand.vmem [shape: f32[1,32], index: 9, kind: input, shape index: {}]
  %s10 = inlined_call_operand.hbm [shape: bf16[9,24,32], index: 10, kind: input, shape index: {}]
  %s11 = inlined_call_operand.vmem [shape: f32[1,32], index: 11, kind: input, shape index: {}]
  %s12 = inlined_call_operand.vmem [shape: f32[1,32], index: 12, kind: input, shape index: {}]
  %s13 = inlined_call_operand.vmem [shape: bf16[9,32,32], index: 13, kind: input, shape index: {}]
  %s14 = inlined_call_operand.vmem [shape: f32[1,32], index: 14, kind: input, shape index: {}]
  %s15 = inlined_call_operand.vmem [shape: f32[1,32], index: 15, kind: input, shape index: {}]
  %s16 = inlined_call_operand.hbm [shape: f32[2,8,8,128], index: 16, kind: output, shape index: {}]
  %s17 = sld [smem:[#allocation0]]
  $region109: #{inception_forward.1} parent=0
    _
  %s19 = ssub.s32 1, %s17
  %s20 = scalar_select 0, %s19, %s17
  $region1: #{inception_forward.1} parent=0
    #allocation5 [shape = 'u8[65536]{0}', space=vmem, size = 0x10000, scoped, tag = 'input window, operand 0']
    #allocation6 [shape = 's32[2]{0}', space=sflag, size = 0x8, scoped, tag = 'scoped memory for inception_forward.1']
    #allocation7 [shape = 's32[2]{0}', space=sflag, size = 0x8, scoped, tag = 'scoped memory for inception_forward.1']
    #allocation8 [shape = 'u8[55296]{0}', space=vmem, size = 0xd800, scoped, tag = 'input window, operand 7, single buffered']
    #allocation9 [shape = 's32[1]{0}', space=sflag, size = 0x4, scoped, tag = 'scoped memory for inception_forward.1']
    #allocation10 [shape = 'u8[55296]{0}', space=vmem, size = 0xd800, scoped, tag = 'input window, operand 10, single buffered']
    #allocation11 [shape = 'u8[65536]{0}', space=vmem, size = 0x10000, scoped, tag = 'output window, operand 0']
    %21 = vsyncpa [#allocation6], 0
    %s22 = scalar_lea.sflag [#allocation6], 1
    %23 = vsyncpa %s22, 0
    %24 = vsyncpa [#allocation9], 0
    %25 = vsyncpa [#allocation7], 0
    %s26 = scalar_lea.sflag [#allocation7], 1
    %27 = vsyncpa %s26, 0
    loop: start=0, step=1, limit=4
    $region2: #{inception_forward.1} parent=1 // loop_pre_header
      _
    $region3: #{inception_forward.1} parent=1 // loop_header
      %s29 = sphi 0, %s33
      %p30 = scmp.ge.s32.totalorder %s29, 4
      %s39 = sphi 0, %s41
      %s42 = sphi 0, %s39
      %s43 = sphi 0, %s42
      %s59 = sphi 0, %s43
      %s63 = sphi 0, %s63
      %s65 = sphi 0, %s63
      %s66 = sphi 0, %s65
      %s80 = sphi 0, %s66
      %s84 = sphi 0, %s84
      %s86 = sphi 0, %s84
      %s87 = sphi 0, %s86
      %s101 = sphi 0, %s87
      %s105 = sphi 0, %s105
      %s107 = sphi 0, %s105
      %s108 = sphi 0, %s107
      %s122 = sphi 0, %s108
      %s126 = sphi 0, %s126
      %s128 = sphi 0, %s126
      %s129 = sphi 0, %s128
      %s143 = sphi 0, %s129
      %s147 = sphi 0, %s147
      %s149 = sphi 0, %s147
      %s150 = sphi 0, %s149
      %s164 = sphi 0, %s150
      %s168 = sphi 0, %s168
      %s170 = sphi 0, %s168
      %s171 = sphi 0, %s170
      %s185 = sphi 0, %s171
      %s189 = sphi 0, %s189
      %s191 = sphi 0, %s189
      %s192 = sphi 0, %s191
      %s206 = sphi 0, %s192
      %s210 = sphi 0, %s210
      %s212 = sphi 0, %s210
      %s213 = sphi 0, %s212
      %s227 = sphi 0, %s213
      %s231 = sphi 0, %s231
      %s233 = sphi 0, %s231
      %s234 = sphi 0, %s233
      %s248 = sphi 0, %s234
      %s252 = sphi 0, %s252
      %s254 = sphi 0, %s252
      %s255 = sphi 0, %s254
      %s269 = sphi 0, %s255
      %s273 = sphi 0, %s273
      %s275 = sphi 0, %s273
      %s276 = sphi 0, %s275
      %s290 = sphi 0, %s276
      %s294 = sphi 0, %s294
      %s296 = sphi 0, %s294
      %s297 = sphi 0, %s296
      %s311 = sphi 0, %s297
      %s315 = sphi 0, %s315
      %s317 = sphi 0, %s315
      %s318 = sphi 0, %s317
      %s332 = sphi 0, %s318
      %s336 = sphi 0, %s336
      %s338 = sphi 0, %s336
      %s339 = sphi 0, %s338
      %s353 = sphi 0, %s339
      %s357 = sphi 0, %s357
      %s359 = sphi 0, %s357
      %s360 = sphi 0, %s359
      %s374 = sphi 0, %s360
      %s380 = sphi 0, %s382
      %s383 = sphi 0, %s380
      %s384 = sphi 0, %s383
      %s400 = sphi 0, %s384
    $region4: #{inception_forward.1} parent=1 // loop_header_branch
      %32 = sbr.rel (%p30) target = $region8
    $region5: #{inception_forward.1} parent=1 // loop_body
      %s34 = ssub.s32 %s29, 1
      %s35 = ssub.s32 %s29, 2
      %s36 = sadd.s32 %s29, 1
      %s37 = ssub.s32 %s29, %s36
      %p38 = scmp.eq.s32.totalorder %s37, 0
      %s40 = sadd.s32 %s39, 1
      %s41 = scalar_select %p38, %s39, %s40
      %p44 = pneg %p38
      %p45 = scmp.eq.s32.totalorder %s29, 1
      %p46 = por %p44, %p45
      %p47 = scmp.ne.s32.totalorder %s39, %s42
      %p48 = scmp.eq.s32.totalorder %s29, 0
      %p49 = por %p47, %p48
      %p50 = scmp.ne.s32.totalorder %s39, %s42
      %p51 = scmp.eq.s32.totalorder %s34, 1
      %p52 = por %p50, %p51
      %p53 = scmp.ne.s32.totalorder %s42, %s43
      %p54 = scmp.eq.s32.totalorder %s34, 0
      %p55 = por %p53, %p54
      %p56 = scmp.ne.s32.totalorder %s42, %s43
      %p57 = scmp.eq.s32.totalorder %s35, 1
      %p58 = por %p56, %p57
      %p60 = scmp.ne.s32.totalorder %s43, %s59
      %p61 = scmp.eq.s32.totalorder %s35, 0
      %p62 = por %p60, %p61
      %s64 = sadd.s32 %s63, 1
      %p67 = scmp.eq.s32.totalorder %s29, 1
      %p68 = scmp.ne.s32.totalorder %s63, %s65
      %p69 = scmp.eq.s32.totalorder %s29, 0
      %p70 = por %p68, %p69
      %p71 = scmp.ne.s32.totalorder %s63, %s65
      %p72 = scmp.eq.s32.totalorder %s34, 1
      %p73 = por %p71, %p72
      %p74 = scmp.ne.s32.totalorder %s65, %s66
      %p75 = scmp.eq.s32.totalorder %s34, 0
      %p76 = por %p74, %p75
      %p77 = scmp.ne.s32.totalorder %s65, %s66
      %p78 = scmp.eq.s32.totalorder %s35, 1
      %p79 = por %p77, %p78
      %p81 = scmp.ne.s32.totalorder %s66, %s80
      %p82 = scmp.eq.s32.totalorder %s35, 0
      %p83 = por %p81, %p82
      %s85 = sadd.s32 %s84, 1
      %p88 = scmp.eq.s32.totalorder %s29, 1
      %p89 = scmp.ne.s32.totalorder %s84, %s86
      %p90 = scmp.eq.s32.totalorder %s29, 0
      %p91 = por %p89, %p90
      %p92 = scmp.ne.s32.totalorder %s84, %s86
      %p93 = scmp.eq.s32.totalorder %s34, 1
      %p94 = por %p92, %p93
      %p95 = scmp.ne.s32.totalorder %s86, %s87
      %p96 = scmp.eq.s32.totalorder %s34, 0
      %p97 = por %p95, %p96
      %p98 = scmp.ne.s32.totalorder %s86, %s87
      %p99 = scmp.eq.s32.totalorder %s35, 1
      %p100 = por %p98, %p99
      %p102 = scmp.ne.s32.totalorder %s87, %s101
      %p103 = scmp.eq.s32.totalorder %s35, 0
      %p104 = por %p102, %p103
      %s106 = sadd.s32 %s105, 1
      %p109 = scmp.eq.s32.totalorder %s29, 1
      %p110 = scmp.ne.s32.totalorder %s105, %s107
      %p111 = scmp.eq.s32.totalorder %s29, 0
      %p112 = por %p110, %p111
      %p113 = scmp.ne.s32.totalorder %s105, %s107
      %p114 = scmp.eq.s32.totalorder %s34, 1
      %p115 = por %p113, %p114
      %p116 = scmp.ne.s32.totalorder %s107, %s108
      %p117 = scmp.eq.s32.totalorder %s34, 0
      %p118 = por %p116, %p117
      %p119 = scmp.ne.s32.totalorder %s107, %s108
      %p120 = scmp.eq.s32.totalorder %s35, 1
      %p121 = por %p119, %p120
      %p123 = scmp.ne.s32.totalorder %s108, %s122
      %p124 = scmp.eq.s32.totalorder %s35, 0
      %p125 = por %p123, %p124
      %s127 = sadd.s32 %s126, 1
      %p130 = scmp.eq.s32.totalorder %s29, 1
      %p131 = scmp.ne.s32.totalorder %s126, %s128
      %p132 = scmp.eq.s32.totalorder %s29, 0
      %p133 = por %p131, %p132
      %p134 = scmp.ne.s32.totalorder %s126, %s128
      %p135 = scmp.eq.s32.totalorder %s34, 1
      %p136 = por %p134, %p135
      %p137 = scmp.ne.s32.totalorder %s128, %s129
      %p138 = scmp.eq.s32.totalorder %s34, 0
      %p139 = por %p137, %p138
      %p140 = scmp.ne.s32.totalorder %s128, %s129
      %p141 = scmp.eq.s32.totalorder %s35, 1
      %p142 = por %p140, %p141
      %p144 = scmp.ne.s32.totalorder %s129, %s143
      %p145 = scmp.eq.s32.totalorder %s35, 0
      %p146 = por %p144, %p145
      %s148 = sadd.s32 %s147, 1
      %p151 = scmp.eq.s32.totalorder %s29, 1
      %p152 = scmp.ne.s32.totalorder %s147, %s149
      %p153 = scmp.eq.s32.totalorder %s29, 0
      %p154 = por %p152, %p153
      %p155 = scmp.ne.s32.totalorder %s147, %s149
      %p156 = scmp.eq.s32.totalorder %s34, 1
      %p157 = por %p155, %p156
      %p158 = scmp.ne.s32.totalorder %s149, %s150
      %p159 = scmp.eq.s32.totalorder %s34, 0
      %p160 = por %p158, %p159
      %p161 = scmp.ne.s32.totalorder %s149, %s150
      %p162 = scmp.eq.s32.totalorder %s35, 1
      %p163 = por %p161, %p162
      %p165 = scmp.ne.s32.totalorder %s150, %s164
      %p166 = scmp.eq.s32.totalorder %s35, 0
      %p167 = por %p165, %p166
      %s169 = sadd.s32 %s168, 1
      %p172 = scmp.eq.s32.totalorder %s29, 1
      %p173 = scmp.ne.s32.totalorder %s168, %s170
      %p174 = scmp.eq.s32.totalorder %s29, 0
      %p175 = por %p173, %p174
      %p176 = scmp.ne.s32.totalorder %s168, %s170
      %p177 = scmp.eq.s32.totalorder %s34, 1
      %p178 = por %p176, %p177
      %p179 = scmp.ne.s32.totalorder %s170, %s171
      %p180 = scmp.eq.s32.totalorder %s34, 0
      %p181 = por %p179, %p180
      %p182 = scmp.ne.s32.totalorder %s170, %s171
      %p183 = scmp.eq.s32.totalorder %s35, 1
      %p184 = por %p182, %p183
      %p186 = scmp.ne.s32.totalorder %s171, %s185
      %p187 = scmp.eq.s32.totalorder %s35, 0
      %p188 = por %p186, %p187
      %s190 = sadd.s32 %s189, 1
      %p193 = scmp.eq.s32.totalorder %s29, 1
      %p194 = scmp.ne.s32.totalorder %s189, %s191
      %p195 = scmp.eq.s32.totalorder %s29, 0
      %p196 = por %p194, %p195
      %p197 = scmp.ne.s32.totalorder %s189, %s191
      %p198 = scmp.eq.s32.totalorder %s34, 1
      %p199 = por %p197, %p198
      %p200 = scmp.ne.s32.totalorder %s191, %s192
      %p201 = scmp.eq.s32.totalorder %s34, 0
      %p202 = por %p200, %p201
      %p203 = scmp.ne.s32.totalorder %s191, %s192
      %p204 = scmp.eq.s32.totalorder %s35, 1
      %p205 = por %p203, %p204
      %p207 = scmp.ne.s32.totalorder %s192, %s206
      %p208 = scmp.eq.s32.totalorder %s35, 0
      %p209 = por %p207, %p208
      %s211 = sadd.s32 %s210, 1
      %p214 = scmp.eq.s32.totalorder %s29, 1
      %p215 = scmp.ne.s32.totalorder %s210, %s212
      %p216 = scmp.eq.s32.totalorder %s29, 0
      %p217 = por %p215, %p216
      %p218 = scmp.ne.s32.totalorder %s210, %s212
      %p219 = scmp.eq.s32.totalorder %s34, 1
      %p220 = por %p218, %p219
      %p221 = scmp.ne.s32.totalorder %s212, %s213
      %p222 = scmp.eq.s32.totalorder %s34, 0
      %p223 = por %p221, %p222
      %p224 = scmp.ne.s32.totalorder %s212, %s213
      %p225 = scmp.eq.s32.totalorder %s35, 1
      %p226 = por %p224, %p225
      %p228 = scmp.ne.s32.totalorder %s213, %s227
      %p229 = scmp.eq.s32.totalorder %s35, 0
      %p230 = por %p228, %p229
      %s232 = sadd.s32 %s231, 1
      %p235 = scmp.eq.s32.totalorder %s29, 1
      %p236 = scmp.ne.s32.totalorder %s231, %s233
      %p237 = scmp.eq.s32.totalorder %s29, 0
      %p238 = por %p236, %p237
      %p239 = scmp.ne.s32.totalorder %s231, %s233
      %p240 = scmp.eq.s32.totalorder %s34, 1
      %p241 = por %p239, %p240
      %p242 = scmp.ne.s32.totalorder %s233, %s234
      %p243 = scmp.eq.s32.totalorder %s34, 0
      %p244 = por %p242, %p243
      %p245 = scmp.ne.s32.totalorder %s233, %s234
      %p246 = scmp.eq.s32.totalorder %s35, 1
      %p247 = por %p245, %p246
      %p249 = scmp.ne.s32.totalorder %s234, %s248
      %p250 = scmp.eq.s32.totalorder %s35, 0
      %p251 = por %p249, %p250
      %s253 = sadd.s32 %s252, 1
      %p256 = scmp.eq.s32.totalorder %s29, 1
      %p257 = scmp.ne.s32.totalorder %s252, %s254
      %p258 = scmp.eq.s32.totalorder %s29, 0
      %p259 = por %p257, %p258
      %p260 = scmp.ne.s32.totalorder %s252, %s254
      %p261 = scmp.eq.s32.totalorder %s34, 1
      %p262 = por %p260, %p261
      %p263 = scmp.ne.s32.totalorder %s254, %s255
      %p264 = scmp.eq.s32.totalorder %s34, 0
      %p265 = por %p263, %p264
      %p266 = scmp.ne.s32.totalorder %s254, %s255
      %p267 = scmp.eq.s32.totalorder %s35, 1
      %p268 = por %p266, %p267
      %p270 = scmp.ne.s32.totalorder %s255, %s269
      %p271 = scmp.eq.s32.totalorder %s35, 0
      %p272 = por %p270, %p271
      %s274 = sadd.s32 %s273, 1
      %p277 = scmp.eq.s32.totalorder %s29, 1
      %p278 = scmp.ne.s32.totalorder %s273, %s275
      %p279 = scmp.eq.s32.totalorder %s29, 0
      %p280 = por %p278, %p279
      %p281 = scmp.ne.s32.totalorder %s273, %s275
      %p282 = scmp.eq.s32.totalorder %s34, 1
      %p283 = por %p281, %p282
      %p284 = scmp.ne.s32.totalorder %s275, %s276
      %p285 = scmp.eq.s32.totalorder %s34, 0
      %p286 = por %p284, %p285
      %p287 = scmp.ne.s32.totalorder %s275, %s276
      %p288 = scmp.eq.s32.totalorder %s35, 1
      %p289 = por %p287, %p288
      %p291 = scmp.ne.s32.totalorder %s276, %s290
      %p292 = scmp.eq.s32.totalorder %s35, 0
      %p293 = por %p291, %p292
      %s295 = sadd.s32 %s294, 1
      %p298 = scmp.eq.s32.totalorder %s29, 1
      %p299 = scmp.ne.s32.totalorder %s294, %s296
      %p300 = scmp.eq.s32.totalorder %s29, 0
      %p301 = por %p299, %p300
      %p302 = scmp.ne.s32.totalorder %s294, %s296
      %p303 = scmp.eq.s32.totalorder %s34, 1
      %p304 = por %p302, %p303
      %p305 = scmp.ne.s32.totalorder %s296, %s297
      %p306 = scmp.eq.s32.totalorder %s34, 0
      %p307 = por %p305, %p306
      %p308 = scmp.ne.s32.totalorder %s296, %s297
      %p309 = scmp.eq.s32.totalorder %s35, 1
      %p310 = por %p308, %p309
      %p312 = scmp.ne.s32.totalorder %s297, %s311
      %p313 = scmp.eq.s32.totalorder %s35, 0
      %p314 = por %p312, %p313
      %s316 = sadd.s32 %s315, 1
      %p319 = scmp.eq.s32.totalorder %s29, 1
      %p320 = scmp.ne.s32.totalorder %s315, %s317
      %p321 = scmp.eq.s32.totalorder %s29, 0
      %p322 = por %p320, %p321
      %p323 = scmp.ne.s32.totalorder %s315, %s317
      %p324 = scmp.eq.s32.totalorder %s34, 1
      %p325 = por %p323, %p324
      %p326 = scmp.ne.s32.totalorder %s317, %s318
      %p327 = scmp.eq.s32.totalorder %s34, 0
      %p328 = por %p326, %p327
      %p329 = scmp.ne.s32.totalorder %s317, %s318
      %p330 = scmp.eq.s32.totalorder %s35, 1
      %p331 = por %p329, %p330
      %p333 = scmp.ne.s32.totalorder %s318, %s332
      %p334 = scmp.eq.s32.totalorder %s35, 0
      %p335 = por %p333, %p334
      %s337 = sadd.s32 %s336, 1
      %p340 = scmp.eq.s32.totalorder %s29, 1
      %p341 = scmp.ne.s32.totalorder %s336, %s338
      %p342 = scmp.eq.s32.totalorder %s29, 0
      %p343 = por %p341, %p342
      %p344 = scmp.ne.s32.totalorder %s336, %s338
      %p345 = scmp.eq.s32.totalorder %s34, 1
      %p346 = por %p344, %p345
      %p347 = scmp.ne.s32.totalorder %s338, %s339
      %p348 = scmp.eq.s32.totalorder %s34, 0
      %p349 = por %p347, %p348
      %p350 = scmp.ne.s32.totalorder %s338, %s339
      %p351 = scmp.eq.s32.totalorder %s35, 1
      %p352 = por %p350, %p351
      %p354 = scmp.ne.s32.totalorder %s339, %s353
      %p355 = scmp.eq.s32.totalorder %s35, 0
      %p356 = por %p354, %p355
      %s358 = sadd.s32 %s357, 1
      %p361 = scmp.eq.s32.totalorder %s29, 1
      %p362 = scmp.ne.s32.totalorder %s357, %s359
      %p363 = scmp.eq.s32.totalorder %s29, 0
      %p364 = por %p362, %p363
      %p365 = scmp.ne.s32.totalorder %s357, %s359
      %p366 = scmp.eq.s32.totalorder %s34, 1
      %p367 = por %p365, %p366
      %p368 = scmp.ne.s32.totalorder %s359, %s360
      %p369 = scmp.eq.s32.totalorder %s34, 0
      %p370 = por %p368, %p369
      %p371 = scmp.ne.s32.totalorder %s359, %s360
      %p372 = scmp.eq.s32.totalorder %s35, 1
      %p373 = por %p371, %p372
      %p375 = scmp.ne.s32.totalorder %s360, %s374
      %p376 = scmp.eq.s32.totalorder %s35, 0
      %p377 = por %p375, %p376
      %s378 = ssub.s32 %s29, %s36
      %p379 = scmp.eq.s32.totalorder %s378, 0
      %s381 = sadd.s32 %s380, 1
      %s382 = scalar_select %p379, %s380, %s381
      %p385 = pneg %p379
      %p386 = scmp.eq.s32.totalorder %s29, 1
      %p387 = por %p385, %p386
      %p388 = scmp.ne.s32.totalorder %s380, %s383
      %p389 = scmp.eq.s32.totalorder %s29, 0
      %p390 = por %p388, %p389
      %p391 = scmp.ne.s32.totalorder %s380, %s383
      %p392 = scmp.eq.s32.totalorder %s34, 1
      %p393 = por %p391, %p392
      %p394 = scmp.ne.s32.totalorder %s383, %s384
      %p395 = scmp.eq.s32.totalorder %s34, 0
      %p396 = por %p394, %p395
      %p397 = scmp.ne.s32.totalorder %s383, %s384
      %p398 = scmp.eq.s32.totalorder %s35, 1
      %p399 = por %p397, %p398
      %p401 = scmp.ne.s32.totalorder %s384, %s400
      %p402 = scmp.eq.s32.totalorder %s35, 0
      %p403 = por %p401, %p402
      %p404 = scmp.le.s32.totalorder 1, %s29
      %p405 = scmp.lt.s32.totalorder %s29, 3
      %p406 = pnand %p404, %p405
      %p407 = pneg %p406
      // Predicated region
      $region9: #{inception_forward.1} parent=5 // pred_check
        _
      $region10: #{inception_forward.1} parent=5 // pred_check_branch
        %409 = sbr.rel (%p406) target = $region12
      $region11: #{inception_forward.1} parent=5 // pred_region
        %s410 = ssub.s32 %s29, 1
        // Predicated region
        $region13: #{inception_forward.1} parent=11 // pred_check
          %p411 = pneg %p76
        $region14: #{inception_forward.1} parent=11 // pred_check_branch
          %413 = sbr.rel (%p411) target = $region16
        $region15: #{inception_forward.1} parent=11 // pred_region
          _
        $region16: #{inception_forward.1} parent=11 // pred_fallthru
          _
        // Predicated region
        $region17: #{inception_forward.1} parent=11 // pred_check
          %p414 = pneg %p97
        $region18: #{inception_forward.1} parent=11 // pred_check_branch
          %416 = sbr.rel (%p414) target = $region20
        $region19: #{inception_forward.1} parent=11 // pred_region
          _
        $region20: #{inception_forward.1} parent=11 // pred_fallthru
          _
        // Predicated region
        $region21: #{inception_forward.1} parent=11 // pred_check
          %p417 = pneg %p118
        $region22: #{inception_forward.1} parent=11 // pred_check_branch
          %419 = sbr.rel (%p417) target = $region24
        $region23: #{inception_forward.1} parent=11 // pred_region
          _
        $region24: #{inception_forward.1} parent=11 // pred_fallthru
          _
        // Predicated region
        $region25: #{inception_forward.1} parent=11 // pred_check
          %p420 = pneg %p139
        $region26: #{inception_forward.1} parent=11 // pred_check_branch
          %422 = sbr.rel (%p420) target = $region28
        $region27: #{inception_forward.1} parent=11 // pred_region
          _
        $region28: #{inception_forward.1} parent=11 // pred_fallthru
          _
        // Predicated region
        $region29: #{inception_forward.1} parent=11 // pred_check
          %p423 = pneg %p160
        $region30: #{inception_forward.1} parent=11 // pred_check_branch
          %425 = sbr.rel (%p423) target = $region32
        $region31: #{inception_forward.1} parent=11 // pred_region
          _
        $region32: #{inception_forward.1} parent=11 // pred_fallthru
          _
        // Predicated region
        $region33: #{inception_forward.1} parent=11 // pred_check
          %p426 = pneg %p181
        $region34: #{inception_forward.1} parent=11 // pred_check_branch
          %428 = sbr.rel (%p426) target = $region36
        $region35: #{inception_forward.1} parent=11 // pred_region
          _
        $region36: #{inception_forward.1} parent=11 // pred_fallthru
          _
        // Predicated region
        $region37: #{inception_forward.1} parent=11 // pred_check
          %p429 = pneg %p202
        $region38: #{inception_forward.1} parent=11 // pred_check_branch
          %431 = sbr.rel (%p429) target = $region40
        $region39: #{inception_forward.1} parent=11 // pred_region
          %s433 = ssub.s32 1728, 1728
          %434 = vsyncadd [#allocation9], %s433
          %s435 = sshll.u32 [#allocation8], 4
          %s436 = int_to_ptr.vmem [resolvable:$true] %s435
          %441 = dma.hbm_to_vmem [thread:$0]  %s7, 1728, %s436, [#allocation9], 64, 64, 4
        $region40: #{inception_forward.1} parent=11 // pred_fallthru
          _
        // Predicated region
        $region41: #{inception_forward.1} parent=11 // pred_check
          %p442 = pneg %p223
        $region42: #{inception_forward.1} parent=11 // pred_check_branch
          %444 = sbr.rel (%p442) target = $region44
        $region43: #{inception_forward.1} parent=11 // pred_region
          _
        $region44: #{inception_forward.1} parent=11 // pred_fallthru
          _
        // Predicated region
        $region45: #{inception_forward.1} parent=11 // pred_check
          %p445 = pneg %p244
        $region46: #{inception_forward.1} parent=11 // pred_check_branch
          %447 = sbr.rel (%p445) target = $region48
        $region47: #{inception_forward.1} parent=11 // pred_region
          _
        $region48: #{inception_forward.1} parent=11 // pred_fallthru
          _
        // Predicated region
        $region49: #{inception_forward.1} parent=11 // pred_check
          %p448 = pneg %p265
        $region50: #{inception_forward.1} parent=11 // pred_check_branch
          %450 = sbr.rel (%p448) target = $region52
        $region51: #{inception_forward.1} parent=11 // pred_region
          %s452 = ssub.s32 1728, 1728
          %453 = vsyncadd [#allocation9], %s452
          %s454 = sshll.u32 [#allocation10], 4
          %s455 = int_to_ptr.vmem [resolvable:$true] %s454
          %460 = dma.hbm_to_vmem [thread:$0]  %s10, 1728, %s455, [#allocation9], 64, 64, 4
        $region52: #{inception_forward.1} parent=11 // pred_fallthru
          _
        // Predicated region
        $region53: #{inception_forward.1} parent=11 // pred_check
          %p461 = pneg %p286
        $region54: #{inception_forward.1} parent=11 // pred_check_branch
          %463 = sbr.rel (%p461) target = $region56
        $region55: #{inception_forward.1} parent=11 // pred_region
          _
        $region56: #{inception_forward.1} parent=11 // pred_fallthru
          _
        // Predicated region
        $region57: #{inception_forward.1} parent=11 // pred_check
          %p464 = pneg %p307
        $region58: #{inception_forward.1} parent=11 // pred_check_branch
          %466 = sbr.rel (%p464) target = $region60
        $region59: #{inception_forward.1} parent=11 // pred_region
          _
        $region60: #{inception_forward.1} parent=11 // pred_fallthru
          _
        // Predicated region
        $region61: #{inception_forward.1} parent=11 // pred_check
          %p467 = pneg %p328
        $region62: #{inception_forward.1} parent=11 // pred_check_branch
          %469 = sbr.rel (%p467) target = $region64
        $region63: #{inception_forward.1} parent=11 // pred_region
          _
        $region64: #{inception_forward.1} parent=11 // pred_fallthru
          _
        // Predicated region
        $region65: #{inception_forward.1} parent=11 // pred_check
          %p470 = pneg %p349
        $region66: #{inception_forward.1} parent=11 // pred_check_branch
          %472 = sbr.rel (%p470) target = $region68
        $region67: #{inception_forward.1} parent=11 // pred_region
          _
        $region68: #{inception_forward.1} parent=11 // pred_fallthru
          _
        // Predicated region
        $region69: #{inception_forward.1} parent=11 // pred_check
          %p473 = pneg %p370
        $region70: #{inception_forward.1} parent=11 // pred_check_branch
          %475 = sbr.rel (%p473) target = $region72
        $region71: #{inception_forward.1} parent=11 // pred_region
          _
        $region72: #{inception_forward.1} parent=11 // pred_fallthru
          _
      $region12: #{inception_forward.1} parent=5 // pred_fallthru
        _
      %p476 = scmp.lt.s32.totalorder %s29, 2
      // Predicated region
      $region73: #{inception_forward.1} parent=5 // pred_check
        %p477 = pneg %p476
      $region74: #{inception_forward.1} parent=5 // pred_check_branch
        %479 = sbr.rel (%p477) target = $region76
      $region75: #{inception_forward.1} parent=5 // pred_region
        // Predicated region
        $region77: #{inception_forward.1} parent=75 // pred_check
          %p480 = pneg %p49
        $region78: #{inception_forward.1} parent=75 // pred_check_branch
          %482 = sbr.rel (%p480) target = $region80
        $region79: #{inception_forward.1} parent=75 // pred_region
          %s483 = sand.u32 %s39, 1
          %s484 = scalar_lea.sflag [#allocation6], %s483
          %s485 = sand.u32 %s39, 1
          %s486 = smul.addr %s485, 64
          %s487 = scalar_lea.vmem [#allocation5], %s486
          %s489 = ssub.s32 1024, 1024
          %490 = vsyncadd %s484, %s489
          %s491 = smul.addr %s29, 8
          %s492 = smul.addr %s491, 128
          %s493 = scalar_lea.hbm %s0, %s492
          %s494 = sshll.u32 %s487, 4
          %s495 = int_to_ptr.vmem [resolvable:$true] %s494
          %500 = dma.hbm_to_vmem [thread:$0]  %s493, 1024, %s495, %s484, 128, 128, 8
        $region80: #{inception_forward.1} parent=75 // pred_fallthru
          _
      $region76: #{inception_forward.1} parent=5 // pred_fallthru
        _
      %p501 = scmp.le.s32.totalorder 1, %s29
      %p502 = scmp.lt.s32.totalorder %s29, 3
      %p503 = pnand %p501, %p502
      %p504 = pneg %p503
      // Predicated region
      $region81: #{inception_forward.1} parent=5 // pred_check
        _
      $region82: #{inception_forward.1} parent=5 // pred_check_branch
        %506 = sbr.rel (%p503) target = $region84
      $region83: #{inception_forward.1} parent=5 // pred_region
        %s507 = ssub.s32 %s29, 1
        %s508 = sand.u32 %s42, 1
        %s509 = scalar_lea.sflag [#allocation6], %s508
        %s510 = sand.u32 %s42, 1
        %s511 = smul.addr %s510, 64
        %s512 = scalar_lea.vmem [#allocation5], %s511
        // Predicated region
        $region85: #{inception_forward.1} parent=83 // pred_check
          %p513 = pneg %p55
        $region86: #{inception_forward.1} parent=83 // pred_check_branch
          %515 = sbr.rel (%p513) target = $region88
        $region87: #{inception_forward.1} parent=83 // pred_region
          %516 = dma.done %s509, 1024
        $region88: #{inception_forward.1} parent=83 // pred_fallthru
          _
        // Predicated region
        $region89: #{inception_forward.1} parent=83 // pred_check
          %p517 = pneg %p202
        $region90: #{inception_forward.1} parent=83 // pred_check_branch
          %519 = sbr.rel (%p517) target = $region92
        $region91: #{inception_forward.1} parent=83 // pred_region
          %520 = dma.done [#allocation9], 1728
        $region92: #{inception_forward.1} parent=83 // pred_fallthru
          _
        // Predicated region
        $region93: #{inception_forward.1} parent=83 // pred_check
          %p521 = pneg %p265
        $region94: #{inception_forward.1} parent=83 // pred_check_branch
          %523 = sbr.rel (%p521) target = $region96
        $region95: #{inception_forward.1} parent=83 // pred_region
          %524 = dma.done [#allocation9], 1728
        $region96: #{inception_forward.1} parent=83 // pred_fallthru
          _
        %s525 = sand.u32 %s42, 1
        %s526 = scalar_lea.sflag [#allocation6], %s525
        %s527 = sand.u32 %s42, 1
        %s528 = smul.addr %s527, 64
        %s529 = scalar_lea.vmem [#allocation5], %s528
        %p530 = pneg %p55
        %p531 = pneg %p52
        %p532 = pneg %p76
        %p533 = pneg %p73
        %p534 = pneg %p97
        %p535 = pneg %p94
        %p536 = pneg %p118
        %p537 = pneg %p115
        %p538 = pneg %p139
        %p539 = pneg %p136
        %p540 = pneg %p160
        %p541 = pneg %p157
        %p542 = pneg %p181
        %p543 = pneg %p178
        %p544 = pneg %p202
        %p545 = pneg %p199
        %p546 = pneg %p223
        %p547 = pneg %p220
        %p548 = pneg %p244
        %p549 = pneg %p241
        %p550 = pneg %p265
        %p551 = pneg %p262
        %p552 = pneg %p286
        %p553 = pneg %p283
        %p554 = pneg %p307
        %p555 = pneg %p304
        %p556 = pneg %p328
        %p557 = pneg %p325
        %p558 = pneg %p349
        %p559 = pneg %p346
        %p560 = pneg %p370
        %p561 = pneg %p367
        %p562 = pneg %p396
        %p563 = pneg %p393
        %s564 = sand.u32 %s383, 1
        %s565 = scalar_lea.sflag [#allocation7], %s564
        %s566 = sand.u32 %s383, 1
        %s567 = smul.addr %s566, 64
        %s568 = scalar_lea.vmem [#allocation11], %s567
        %v570 = vld [vmem:[%s512] sm:$0xff]
        %v571 = vld [vmem:[%s512 + $0x8] sm:$0xff]
        %v572 = vld [vmem:[%s512 + $0x10] sm:$0xff]
        %v573 = vld [vmem:[%s512 + $0x18] sm:$0xff]
        %v574 = vld [vmem:[%s512 + $0x20] sm:$0xff]
        %v575 = vld [vmem:[%s512 + $0x28] sm:$0xff]
        %v576 = vld [vmem:[%s512 + $0x30] sm:$0xff]
        %v577 = vld [vmem:[%s512 + $0x38] sm:$0xff]
        %v578 = vpack.c.bf16 %v571, %v570
        %v579 = vpack.c.bf16 %v573, %v572
        %v580 = vpack.c.bf16 %v575, %v574
        %v581 = vpack.c.bf16 %v577, %v576
        %vm582 = vcmask 195584
        %583 = vst.msk [vmem:[#allocation3] sm:$0xff] %vm582, 0.0
        %vm584 = vcmask 189440
        %585 = vst.msk [vmem:[#allocation3 + $0x8] sm:$0x3] %vm584, 0.0
        %586 = vst.msk [vmem:[#allocation3 + $0x10] sm:$0xff] %vm582, 0.0
        %587 = vst.msk [vmem:[#allocation3 + $0x18] sm:$0x3] %vm584, 0.0
        %588 = vst.msk [vmem:[#allocation3 + $0x20] sm:$0xff] %vm582, 0.0
        %589 = vst.msk [vmem:[#allocation3 + $0x28] sm:$0x3] %vm584, 0.0
        %590 = vst.msk [vmem:[#allocation3 + $0x30] sm:$0xff] %vm582, 0.0
        %591 = vst.msk [vmem:[#allocation3 + $0x38] sm:$0x3] %vm584, 0.0
        %592 = vst.msk [vmem:[#allocation3 + $0x40] sm:$0xff] %vm582, 0.0
        %593 = vst.msk [vmem:[#allocation3 + $0x48] sm:$0x3] %vm584, 0.0
        %594 = vst.msk [vmem:[#allocation3 + $0x50] sm:$0xff] %vm582, 0.0
        %595 = vst.msk [vmem:[#allocation3 + $0x58] sm:$0x3] %vm584, 0.0
        %596 = vst.msk [vmem:[#allocation3 + $0x60] sm:$0xff] %vm582, 0.0
        %597 = vst.msk [vmem:[#allocation3 + $0x68] sm:$0x3] %vm584, 0.0
        %598 = vst.msk [vmem:[#allocation3 + $0x70] sm:$0xff] %vm582, 0.0
        %599 = vst.msk [vmem:[#allocation3 + $0x78] sm:$0x3] %vm584, 0.0
        %600 = vst.msk [vmem:[#allocation3 + $0x80] sm:$0xff] %vm582, 0.0
        %601 = vst.msk [vmem:[#allocation3 + $0x88] sm:$0x3] %vm584, 0.0
        %602 = vst.msk [vmem:[#allocation3 + $0x90] sm:$0xff] %vm582, 0.0
        %603 = vst.msk [vmem:[#allocation3 + $0x98] sm:$0x3] %vm584, 0.0
        %vm604 = vcmask 261120
        %605 = vst.msk [vmem:[#allocation4] sm:$0xff] %vm604, 0.0
        %vm606 = vcmask 254976
        %607 = vst.msk [vmem:[#allocation4 + $0x8] sm:$0x3] %vm606, 0.0
        %608 = vst.msk [vmem:[#allocation4 + $0x10] sm:$0xff] %vm604, 0.0
        %609 = vst.msk [vmem:[#allocation4 + $0x18] sm:$0x3] %vm606, 0.0
        %610 = vst.msk [vmem:[#allocation4 + $0x20] sm:$0xff] %vm604, 0.0
        %611 = vst.msk [vmem:[#allocation4 + $0x28] sm:$0x3] %vm606, 0.0
        %612 = vst.msk [vmem:[#allocation4 + $0x30] sm:$0xff] %vm604, 0.0
        %613 = vst.msk [vmem:[#allocation4 + $0x38] sm:$0x3] %vm606, 0.0
        %614 = vst.msk [vmem:[#allocation4 + $0x40] sm:$0xff] %vm604, 0.0
        %615 = vst.msk [vmem:[#allocation4 + $0x48] sm:$0x3] %vm606, 0.0
        %616 = vst.msk [vmem:[#allocation4 + $0x50] sm:$0xff] %vm604, 0.0
        %617 = vst.msk [vmem:[#allocation4 + $0x58] sm:$0x3] %vm606, 0.0
        %618 = vst.msk [vmem:[#allocation4 + $0x60] sm:$0xff] %vm604, 0.0
        %619 = vst.msk [vmem:[#allocation4 + $0x68] sm:$0x3] %vm606, 0.0
        %620 = vst.msk [vmem:[#allocation4 + $0x70] sm:$0xff] %vm604, 0.0
        %621 = vst.msk [vmem:[#allocation4 + $0x78] sm:$0x3] %vm606, 0.0
        %622 = vst.msk [vmem:[#allocation4 + $0x80] sm:$0xff] %vm604, 0.0
        %623 = vst.msk [vmem:[#allocation4 + $0x88] sm:$0x3] %vm606, 0.0
        %624 = vst.msk [vmem:[#allocation4 + $0x90] sm:$0xff] %vm604, 0.0
        %625 = vst.msk [vmem:[#allocation4 + $0x98] sm:$0x3] %vm606, 0.0
        %v626 = vld [vmem:[%s1] sm:$0xf]
        %v627 = vld [vmem:[%s1 + $0x4] sm:$0xf]
        %v628 = vld [vmem:[%s1 + $0x8] sm:$0xf]
        %v629 = vld [vmem:[%s1 + $0xc] sm:$0xf]
        %v630 = vld [vmem:[%s1 + $0x10] sm:$0xf]
        %v631 = vld [vmem:[%s1 + $0x14] sm:$0xf]
        %v632 = vld [vmem:[%s1 + $0x18] sm:$0xf]
        %v633 = vld [vmem:[%s1 + $0x1c] sm:$0xf]
        %v634 = vld [vmem:[%s1 + $0x20] sm:$0xf]
        %v635 = vld [vmem:[%s1 + $0x24] sm:$0xf]
        %v636 = vld [vmem:[%s1 + $0x28] sm:$0xf]
        %v637 = vld [vmem:[%s1 + $0x2c] sm:$0xf]
        %v638 = vld [vmem:[%s1 + $0x30] sm:$0xf]
        %v639 = vld [vmem:[%s1 + $0x34] sm:$0xf]
        %v640 = vld [vmem:[%s1 + $0x38] sm:$0xf]
        %v641 = vld [vmem:[%s1 + $0x3c] sm:$0xf]
        %v658 = vunpack.c.l.b16 %v626
        %v659 = vunpack.c.l.b16 %v627
        %v660 = vunpack.c.l.b16 %v628
        %v661 = vunpack.c.l.b16 %v629
        %v662 = vunpack.c.l.b16 %v630
        %v663 = vunpack.c.l.b16 %v631
        %v664 = vunpack.c.l.b16 %v632
        %v665 = vunpack.c.l.b16 %v633
        %v666 = vunpack.c.l.b16 %v634
        %v667 = vunpack.c.l.b16 %v635
        %v668 = vunpack.c.l.b16 %v636
        %v669 = vunpack.c.l.b16 %v637
        %v670 = vunpack.c.l.b16 %v638
        %v671 = vunpack.c.l.b16 %v639
        %v672 = vunpack.c.l.b16 %v640
        %v673 = vunpack.c.l.b16 %v641
        %v674 = vpack.c.b16 %v659, %v658
        %v675 = vpack.c.b16 %v661, %v660
        %v676 = vpack.c.b16 %v663, %v662
        %v677 = vpack.c.b16 %v665, %v664
        %v678 = vpack.c.b16 %v667, %v666
        %v679 = vpack.c.b16 %v669, %v668
        %v680 = vpack.c.b16 %v671, %v670
        %v681 = vpack.c.b16 %v673, %v672
        %690 = vmatprep.subr.bf16.mxu0 0
        %691 = vmatpush1.bf16.msra.mxu0 %v674
        %692 = vmatprep.subr.bf16.mxu0 0
        %693 = vmatpush1.bf16.msra.mxu0 %v675
        %694 = vmatprep.subr.bf16.mxu0 0
        %695 = vmatpush1.bf16.msra.mxu0 %v676
        %696 = vmatprep.subr.bf16.mxu0 0
        %697 = vmatpush1.bf16.msra.mxu0 %v677
        %698 = vmatprep.subr.bf16.mxu0 0
        %699 = vmatpush1.bf16.msra.mxu0 %v678
        %700 = vmatprep.subr.bf16.mxu0 0
        %701 = vmatpush1.bf16.msra.mxu0 %v679
        %702 = vmatprep.subr.bf16.mxu0 0
        %703 = vmatpush1.bf16.msra.mxu0 %v680
        %704 = vmatprep.subr.bf16.mxu0 0
        %705 = vmatpush1.bf16.msra.mxu0 %v681
        %706 = vmatprep.subr.bf16.mxu0 0
        %707 = vmatpush1.bf16.msra.mxu0 0
        %708 = vmatprep.subr.bf16.mxu0 0
        %709 = vmatpush1.bf16.msra.mxu0 0
        %710 = vmatprep.subr.bf16.mxu0 0
        %711 = vmatpush1.bf16.msra.mxu0 0
        %712 = vmatprep.subr.bf16.mxu0 0
        %713 = vmatpush1.bf16.msra.mxu0 0
        %714 = vmatprep.subr.bf16.mxu0 0
        %715 = vmatpush1.bf16.msra.mxu0 0
        %716 = vmatprep.subr.bf16.mxu0 0
        %717 = vmatpush1.bf16.msra.mxu0 0
        %718 = vmatprep.subr.bf16.mxu0 0
        %719 = vmatpush1.bf16.msra.mxu0 0
        %720 = vmatprep.subr.bf16.mxu0 0
        %721 = vmatpush1.bf16.msra.mxu0 0
        %722 = vmatprep.mubr.bf16.mxu0 0
        %723 = vmatmul.mubr.bf16.gmra.mrb[0].mxu0 %v578
        %v724 = vpop.f32.mrb[0].mxu0
        %v725 = vadd.f32 0.0, %v724
        %v726 = vpop.f32.mrb[0].mxu0
        %v727 = vpop.f32.mrb[0].mxu0
        %v728 = vadd.f32 0.0, %v727
        %v729 = vpop.f32.mrb[0].mxu0
        %730 = vmatprep.mubr.bf16.mxu0 0
        %731 = vmatmul.mubr.bf16.gmra.mrb[0].mxu0 %v579
        %v732 = vpop.f32.mrb[0].mxu0
        %v733 = vadd.f32 0.0, %v732
        %v734 = vpop.f32.mrb[0].mxu0
        %v735 = vpop.f32.mrb[0].mxu0
        %v736 = vadd.f32 0.0, %v735
        %v737 = vpop.f32.mrb[0].mxu0
        %738 = vmatprep.mubr.bf16.mxu0 0
        %739 = vmatmul.mubr.bf16.gmra.mrb[0].mxu0 %v580
        %v740 = vpop.f32.mrb[0].mxu0
        %v741 = vadd.f32 0.0, %v740
        %v742 = vpop.f32.mrb[0].mxu0
        %v743 = vpop.f32.mrb[0].mxu0
        %v744 = vadd.f32 0.0, %v743
        %v745 = vpop.f32.mrb[0].mxu0
        %746 = vmatprep.mubr.bf16.mxu0 0
        %747 = vmatmul.mubr.bf16.gmra.mrb[0].mxu0 %v581
        %v748 = vpop.f32.mrb[0].mxu0
        %v749 = vadd.f32 0.0, %v748
        %v750 = vpop.f32.mrb[0].mxu0
        %v751 = vpop.f32.mrb[0].mxu0
        %v752 = vadd.f32 0.0, %v751
        %v753 = vpop.f32.mrb[0].mxu0
        %754 = vdwg.mxu0
        %v755 = vld [vmem:[%s2] sm:$0x1]
        %v757 = vlaneseq
        %v758 = vshrl.u32 %v757, 7
        %v759 = vsub.s32 0, %v758
        %v760 = vrot.slane %v755, %v759
        %v762 = vmul.f32 %v725, %v760
        %v763 = vmul.f32 %v728, %v760
        %v764 = vmul.f32 %v733, %v760
        %v765 = vmul.f32 %v736, %v760
        %v766 = vmul.f32 %v741, %v760
        %v767 = vmul.f32 %v744, %v760
        %v768 = vmul.f32 %v749, %v760
        %v769 = vmul.f32 %v752, %v760
        %v770 = vld [vmem:[%s3] sm:$0x1]
        %v772 = vlaneseq
        %v773 = vshrl.u32 %v772, 7
        %v774 = vsub.s32 0, %v773
        %v775 = vrot.slane %v770, %v774
        %v777 = vadd.f32 %v762, %v775
        %v778 = vadd.f32 %v763, %v775
        %v779 = vadd.f32 %v764, %v775
        %v780 = vadd.f32 %v765, %v775
        %v781 = vadd.f32 %v766, %v775
        %v782 = vadd.f32 %v767, %v775
        %v783 = vadd.f32 %v768, %v775
        %v784 = vadd.f32 %v769, %v775
        %v785 = vmax.f32 %v777, 0.0
        %v786 = vmax.f32 %v778, 0.0
        %v787 = vmax.f32 %v779, 0.0
        %v788 = vmax.f32 %v780, 0.0
        %v789 = vmax.f32 %v781, 0.0
        %v790 = vmax.f32 %v782, 0.0
        %v791 = vmax.f32 %v783, 0.0
        %v792 = vmax.f32 %v784, 0.0
        %793 = vst [vmem:[#allocation2] sm:$0xff] -3.4028235e+38
        %794 = vst [vmem:[#allocation2 + $0x8] sm:$0x3] -3.4028235e+38
        %795 = vst [vmem:[#allocation2 + $0x10] sm:$0xff] -3.4028235e+38
        %796 = vst [vmem:[#allocation2 + $0x18] sm:$0x3] -3.4028235e+38
        %797 = vst [vmem:[#allocation2 + $0x20] sm:$0xff] -3.4028235e+38
        %798 = vst [vmem:[#allocation2 + $0x28] sm:$0x3] -3.4028235e+38
        %799 = vst [vmem:[#allocation2 + $0x30] sm:$0xff] -3.4028235e+38
        %800 = vst [vmem:[#allocation2 + $0x38] sm:$0x3] -3.4028235e+38
        %801 = vst [vmem:[#allocation2 + $0x40] sm:$0xff] -3.4028235e+38
        %802 = vst [vmem:[#allocation2 + $0x48] sm:$0x3] -3.4028235e+38
        %803 = vst [vmem:[#allocation2 + $0x50] sm:$0xff] -3.4028235e+38
        %804 = vst [vmem:[#allocation2 + $0x58] sm:$0x3] -3.4028235e+38
        %805 = vst [vmem:[#allocation2 + $0x60] sm:$0xff] -3.4028235e+38
        %806 = vst [vmem:[#allocation2 + $0x68] sm:$0x3] -3.4028235e+38
        %807 = vst [vmem:[#allocation2 + $0x70] sm:$0xff] -3.4028235e+38
        %808 = vst [vmem:[#allocation2 + $0x78] sm:$0x3] -3.4028235e+38
        %809 = vst [vmem:[#allocation2 + $0x80] sm:$0xff] -3.4028235e+38
        %810 = vst [vmem:[#allocation2 + $0x88] sm:$0x3] -3.4028235e+38
        %811 = vst [vmem:[#allocation2 + $0x90] sm:$0xff] -3.4028235e+38
        %812 = vst [vmem:[#allocation2 + $0x98] sm:$0x3] -3.4028235e+38
        %s813 = scalar_lea.vmem [#allocation2], 16
        %814 = vst [vmem:[%s813 + $0x1] sm:$0xff] %v570
        %815 = vst [vmem:[%s813 + $0x11] sm:$0xff] %v571
        %816 = vst [vmem:[%s813 + $0x21] sm:$0xff] %v572
        %817 = vst [vmem:[%s813 + $0x31] sm:$0xff] %v573
        %818 = vst [vmem:[%s813 + $0x41] sm:$0xff] %v574
        %819 = vst [vmem:[%s813 + $0x51] sm:$0xff] %v575
        %820 = vst [vmem:[%s813 + $0x61] sm:$0xff] %v576
        %821 = vst [vmem:[%s813 + $0x71] sm:$0xff] %v577
        %v822 = vld [vmem:[#allocation2] sm:$0xff]
        %v823 = vld [vmem:[#allocation2 + $0x10] sm:$0xff]
        %v824 = vld [vmem:[#allocation2 + $0x20] sm:$0xff]
        %v825 = vld [vmem:[#allocation2 + $0x30] sm:$0xff]
        %v826 = vld [vmem:[#allocation2 + $0x40] sm:$0xff]
        %v827 = vld [vmem:[#allocation2 + $0x50] sm:$0xff]
        %v828 = vld [vmem:[#allocation2 + $0x60] sm:$0xff]
        %v829 = vld [vmem:[#allocation2 + $0x70] sm:$0xff]
        %v830 = vld [vmem:[#allocation2 + $0x80] sm:$0xff]
        %v831 = vld [vmem:[#allocation2 + $0x90] sm:$0xff]
        %v832 = vld [vmem:[#allocation2 + $0x1] sm:$0xff]
        %v833 = vld [vmem:[#allocation2 + $0x11] sm:$0xff]
        %v834 = vld [vmem:[#allocation2 + $0x21] sm:$0xff]
        %v835 = vld [vmem:[#allocation2 + $0x31] sm:$0xff]
        %v836 = vld [vmem:[#allocation2 + $0x41] sm:$0xff]
        %v837 = vld [vmem:[#allocation2 + $0x51] sm:$0xff]
        %v838 = vld [vmem:[#allocation2 + $0x61] sm:$0xff]
        %v839 = vld [vmem:[#allocation2 + $0x71] sm:$0xff]
        %v840 = vld [vmem:[#allocation2 + $0x81] sm:$0xff]
        %v841 = vld [vmem:[#allocation2 + $0x91] sm:$0xff]
        %v842 = vmax.f32 %v822, %v832
        %v843 = vmax.f32 %v823, %v833
        %v844 = vmax.f32 %v824, %v834
        %v845 = vmax.f32 %v825, %v835
        %v846 = vmax.f32 %v826, %v836
        %v847 = vmax.f32 %v827, %v837
        %v848 = vmax.f32 %v828, %v838
        %v849 = vmax.f32 %v829, %v839
        %v850 = vmax.f32 %v830, %v840
        %v851 = vmax.f32 %v831, %v841
        %v852 = vld [vmem:[#allocation2 + $0x2] sm:$0xff]
        %v853 = vld [vmem:[#allocation2 + $0x12] sm:$0xff]
        %v854 = vld [vmem:[#allocation2 + $0x22] sm:$0xff]
        %v855 = vld [vmem:[#allocation2 + $0x32] sm:$0xff]
        %v856 = vld [vmem:[#allocation2 + $0x42] sm:$0xff]
        %v857 = vld [vmem:[#allocation2 + $0x52] sm:$0xff]
        %v858 = vld [vmem:[#allocation2 + $0x62] sm:$0xff]
        %v859 = vld [vmem:[#allocation2 + $0x72] sm:$0xff]
        %v860 = vld [vmem:[#allocation2 + $0x82] sm:$0xff]
        %v861 = vld [vmem:[#allocation2 + $0x92] sm:$0xff]
        %v862 = vmax.f32 %v842, %v852
        %v863 = vmax.f32 %v843, %v853
        %v864 = vmax.f32 %v844, %v854
        %v865 = vmax.f32 %v845, %v855
        %v866 = vmax.f32 %v846, %v856
        %v867 = vmax.f32 %v847, %v857
        %v868 = vmax.f32 %v848, %v858
        %v869 = vmax.f32 %v849, %v859
        %v870 = vmax.f32 %v850, %v860
        %v871 = vmax.f32 %v851, %v861
        %v872 = vmax.f32 %v862, %v863
        %v873 = vmax.f32 %v863, %v864
        %v874 = vmax.f32 %v864, %v865
        %v875 = vmax.f32 %v865, %v866
        %v876 = vmax.f32 %v866, %v867
        %v877 = vmax.f32 %v867, %v868
        %v878 = vmax.f32 %v868, %v869
        %v879 = vmax.f32 %v869, %v870
        %v880 = vmax.f32 %v872, %v864
        %v881 = vmax.f32 %v873, %v865
        %v882 = vmax.f32 %v874, %v866
        %v883 = vmax.f32 %v875, %v867
        %v884 = vmax.f32 %v876, %v868
        %v885 = vmax.f32 %v877, %v869
        %v886 = vmax.f32 %v878, %v870
        %v887 = vmax.f32 %v879, %v871
        %v888 = vpack.c.bf16 %v881, %v880
        %v889 = vpack.c.bf16 %v883, %v882
        %v890 = vpack.c.bf16 %v885, %v884
        %v891 = vpack.c.bf16 %v887, %v886
        %v892 = vld [vmem:[%s4] sm:$0xf]
        %v893 = vld [vmem:[%s4 + $0x4] sm:$0xf]
        %v894 = vld [vmem:[%s4 + $0x8] sm:$0xf]
        %v895 = vld [vmem:[%s4 + $0xc] sm:$0xf]
        %v896 = vld [vmem:[%s4 + $0x10] sm:$0xf]
        %v897 = vld [vmem:[%s4 + $0x14] sm:$0xf]
        %v898 = vld [vmem:[%s4 + $0x18] sm:$0xf]
        %v899 = vld [vmem:[%s4 + $0x1c] sm:$0xf]
        %v900 = vld [vmem:[%s4 + $0x20] sm:$0xf]
        %v901 = vld [vmem:[%s4 + $0x24] sm:$0xf]
        %v902 = vld [vmem:[%s4 + $0x28] sm:$0xf]
        %v903 = vld [vmem:[%s4 + $0x2c] sm:$0xf]
        %v904 = vld [vmem:[%s4 + $0x30] sm:$0xf]
        %v905 = vld [vmem:[%s4 + $0x34] sm:$0xf]
        %v906 = vld [vmem:[%s4 + $0x38] sm:$0xf]
        %v907 = vld [vmem:[%s4 + $0x3c] sm:$0xf]
        %v924 = vunpack.c.l.b16 %v892
        %v925 = vunpack.c.l.b16 %v893
        %v926 = vunpack.c.l.b16 %v894
        %v927 = vunpack.c.l.b16 %v895
        %v928 = vunpack.c.l.b16 %v896
        %v929 = vunpack.c.l.b16 %v897
        %v930 = vunpack.c.l.b16 %v898
        %v931 = vunpack.c.l.b16 %v899
        %v932 = vunpack.c.l.b16 %v900
        %v933 = vunpack.c.l.b16 %v901
        %v934 = vunpack.c.l.b16 %v902
        %v935 = vunpack.c.l.b16 %v903
        %v936 = vunpack.c.l.b16 %v904
        %v937 = vunpack.c.l.b16 %v905
        %v938 = vunpack.c.l.b16 %v906
        %v939 = vunpack.c.l.b16 %v907
        %v940 = vpack.c.b16 %v925, %v924
        %v941 = vpack.c.b16 %v927, %v926
        %v942 = vpack.c.b16 %v929, %v928
        %v943 = vpack.c.b16 %v931, %v930
        %v944 = vpack.c.b16 %v933, %v932
        %v945 = vpack.c.b16 %v935, %v934
        %v946 = vpack.c.b16 %v937, %v936
        %v947 = vpack.c.b16 %v939, %v938
        %956 = vmatprep.subr.bf16.mxu0 0
        %957 = vmatpush1.bf16.msra.mxu0 %v940
        %958 = vmatprep.subr.bf16.mxu0 0
        %959 = vmatpush1.bf16.msra.mxu0 %v941
        %960 = vmatprep.subr.bf16.mxu0 0
        %961 = vmatpush1.bf16.msra.mxu0 %v942
        %962 = vmatprep.subr.bf16.mxu0 0
        %963 = vmatpush1.bf16.msra.mxu0 %v943
        %964 = vmatprep.subr.bf16.mxu0 0
        %965 = vmatpush1.bf16.msra.mxu0 %v944
        %966 = vmatprep.subr.bf16.mxu0 0
        %967 = vmatpush1.bf16.msra.mxu0 %v945
        %968 = vmatprep.subr.bf16.mxu0 0
        %969 = vmatpush1.bf16.msra.mxu0 %v946
        %970 = vmatprep.subr.bf16.mxu0 0
        %971 = vmatpush1.bf16.msra.mxu0 %v947
        %972 = vmatprep.subr.bf16.mxu0 0
        %973 = vmatpush1.bf16.msra.mxu0 0
        %974 = vmatprep.subr.bf16.mxu0 0
        %975 = vmatpush1.bf16.msra.mxu0 0
        %976 = vmatprep.subr.bf16.mxu0 0
        %977 = vmatpush1.bf16.msra.mxu0 0
        %978 = vmatprep.subr.bf16.mxu0 0
        %979 = vmatpush1.bf16.msra.mxu0 0
        %980 = vmatprep.subr.bf16.mxu0 0
        %981 = vmatpush1.bf16.msra.mxu0 0
        %982 = vmatprep.subr.bf16.mxu0 0
        %983 = vmatpush1.bf16.msra.mxu0 0
        %984 = vmatprep.subr.bf16.mxu0 0
        %985 = vmatpush1.bf16.msra.mxu0 0
        %986 = vmatprep.subr.bf16.mxu0 0
        %987 = vmatpush1.bf16.msra.mxu0 0
        %988 = vmatprep.mubr.bf16.mxu0 0
        %989 = vmatmul.mubr.bf16.gmra.mrb[0].mxu0 %v888
        %v990 = vpop.f32.mrb[0].mxu0
        %v991 = vadd.f32 0.0, %v990
        %v992 = vpop.f32.mrb[0].mxu0
        %v993 = vpop.f32.mrb[0].mxu0
        %v994 = vadd.f32 0.0, %v993
        %v995 = vpop.f32.mrb[0].mxu0
        %996 = vmatprep.mubr.bf16.mxu0 0
        %997 = vmatmul.mubr.bf16.gmra.mrb[0].mxu0 %v889
        %v998 = vpop.f32.mrb[0].mxu0
        %v999 = vadd.f32 0.0, %v998
        %v1000 = vpop.f32.mrb[0].mxu0
        %v1001 = vpop.f32.mrb[0].mxu0
        %v1002 = vadd.f32 0.0, %v1001
        %v1003 = vpop.f32.mrb[0].mxu0
        %1004 = vmatprep.mubr.bf16.mxu0 0
        %1005 = vmatmul.mubr.bf16.gmra.mrb[0].mxu0 %v890
        %v1006 = vpop.f32.mrb[0].mxu0
        %v1007 = vadd.f32 0.0, %v1006
        %v1008 = vpop.f32.mrb[0].mxu0
        %v1009 = vpop.f32.mrb[0].mxu0
        %v1010 = vadd.f32 0.0, %v1009
        %v1011 = vpop.f32.mrb[0].mxu0
        %1012 = vmatprep.mubr.bf16.mxu0 0
        %1013 = vmatmul.mubr.bf16.gmra.mrb[0].mxu0 %v891
        %v1014 = vpop.f32.mrb[0].mxu0
        %v1015 = vadd.f32 0.0, %v1014
        %v1016 = vpop.f32.mrb[0].mxu0
        %v1017 = vpop.f32.mrb[0].mxu0
        %v1018 = vadd.f32 0.0, %v1017
        %v1019 = vpop.f32.mrb[0].mxu0
        %1020 = vdwg.mxu0
        %v1021 = vld [vmem:[%s5] sm:$0x1]
        %v1023 = vlaneseq
        %v1024 = vshrl.u32 %v1023, 7
        %v1025 = vsub.s32 0, %v1024
        %v1026 = vrot.slane %v1021, %v1025
        %v1028 = vmul.f32 %v991, %v1026
        %v1029 = vmul.f32 %v994, %v1026
        %v1030 = vmul.f32 %v999, %v1026
        %v1031 = vmul.f32 %v1002, %v1026
        %v1032 = vmul.f32 %v1007, %v1026
        %v1033 = vmul.f32 %v1010, %v1026
        %v1034 = vmul.f32 %v1015, %v1026
        %v1035 = vmul.f32 %v1018, %v1026
        %v1036 = vld [vmem:[%s6] sm:$0x1]
        %v1038 = vlaneseq
        %v1039 = vshrl.u32 %v1038, 7
        %v1040 = vsub.s32 0, %v1039
        %v1041 = vrot.slane %v1036, %v1040
        %v1043 = vadd.f32 %v1028, %v1041
        %v1044 = vadd.f32 %v1029, %v1041
        %v1045 = vadd.f32 %v1030, %v1041
        %v1046 = vadd.f32 %v1031, %v1041
        %v1047 = vadd.f32 %v1032, %v1041
        %v1048 = vadd.f32 %v1033, %v1041
        %v1049 = vadd.f32 %v1034, %v1041
        %v1050 = vadd.f32 %v1035, %v1041
        %v1051 = vmax.f32 %v1043, 0.0
        %v1052 = vmax.f32 %v1044, 0.0
        %v1053 = vmax.f32 %v1045, 0.0
        %v1054 = vmax.f32 %v1046, 0.0
        %v1055 = vmax.f32 %v1047, 0.0
        %v1056 = vmax.f32 %v1048, 0.0
        %v1057 = vmax.f32 %v1049, 0.0
        %v1058 = vmax.f32 %v1050, 0.0
        %1067 = vrot.lane.b32.xlu0 %v785, 96
        %v1068 = vpop.permute.xlu0 %1067
        %1069 = vrot.lane.b32.xlu0 %v786, 96
        %v1070 = vpop.permute.xlu0 %1069
        %1071 = vrot.lane.b32.xlu0 %v787, 96
        %v1072 = vpop.permute.xlu0 %1071
        %1073 = vrot.lane.b32.xlu0 %v788, 96
        %v1074 = vpop.permute.xlu0 %1073
        %1075 = vrot.lane.b32.xlu0 %v789, 96
        %v1076 = vpop.permute.xlu0 %1075
        %1077 = vrot.lane.b32.xlu0 %v790, 96
        %v1078 = vpop.permute.xlu0 %1077
        %1079 = vrot.lane.b32.xlu0 %v791, 96
        %v1080 = vpop.permute.xlu0 %1079
        %1081 = vrot.lane.b32.xlu0 %v792, 96
        %v1082 = vpop.permute.xlu0 %1081
        %s1091 = scalar_lea.vmem [#allocation3], 16
        %1092 = vst.msk [vmem:[%s1091 + $0x1] sm:$0xff] %vm582, %v1068
        %1093 = vst.msk [vmem:[%s1091 + $0x11] sm:$0xff] %vm582, %v1070
        %1094 = vst.msk [vmem:[%s1091 + $0x21] sm:$0xff] %vm582, %v1072
        %1095 = vst.msk [vmem:[%s1091 + $0x31] sm:$0xff] %vm582, %v1074
        %1096 = vst.msk [vmem:[%s1091 + $0x41] sm:$0xff] %vm582, %v1076
        %1097 = vst.msk [vmem:[%s1091 + $0x51] sm:$0xff] %vm582, %v1078
        %1098 = vst.msk [vmem:[%s1091 + $0x61] sm:$0xff] %vm582, %v1080
        %1099 = vst.msk [vmem:[%s1091 + $0x71] sm:$0xff] %vm582, %v1082
        %v1100 = vld [vmem:[#allocation3] sm:$0xff]
        %v1101 = vld [vmem:[#allocation3 + $0x10] sm:$0xff]
        %v1102 = vld [vmem:[#allocation3 + $0x20] sm:$0xff]
        %v1103 = vld [vmem:[#allocation3 + $0x30] sm:$0xff]
        %v1104 = vld [vmem:[#allocation3 + $0x40] sm:$0xff]
        %v1105 = vld [vmem:[#allocation3 + $0x50] sm:$0xff]
        %v1106 = vld [vmem:[#allocation3 + $0x60] sm:$0xff]
        %v1107 = vld [vmem:[#allocation3 + $0x70] sm:$0xff]
        %v1108 = vpack.c.bf16 %v1101, %v1100
        %v1109 = vpack.c.bf16 %v1103, %v1102
        %v1110 = vpack.c.bf16 %v1105, %v1104
        %v1111 = vpack.c.bf16 %v1107, %v1106
        %v1112 = vld [vmem:[#allocation8] sm:$0xf]
        %v1113 = vld [vmem:[#allocation8 + $0x4] sm:$0xf]
        %v1114 = vld [vmem:[#allocation8 + $0x8] sm:$0xf]
        %v1115 = vld [vmem:[#allocation3 + $0x1] sm:$0xff]
        %v1116 = vld [vmem:[#allocation3 + $0x11] sm:$0xff]
        %v1117 = vld [vmem:[#allocation3 + $0x21] sm:$0xff]
        %v1118 = vld [vmem:[#allocation3 + $0x31] sm:$0xff]
        %v1119 = vld [vmem:[#allocation3 + $0x41] sm:$0xff]
        %v1120 = vld [vmem:[#allocation3 + $0x51] sm:$0xff]
        %v1121 = vld [vmem:[#allocation3 + $0x61] sm:$0xff]
        %v1122 = vld [vmem:[#allocation3 + $0x71] sm:$0xff]
        %v1123 = vpack.c.bf16 %v1116, %v1115
        %v1124 = vpack.c.bf16 %v1118, %v1117
        %v1125 = vpack.c.bf16 %v1120, %v1119
        %v1126 = vpack.c.bf16 %v1122, %v1121
        %s1127 = scalar_lea.vmem [#allocation8], 12
        %v1128 = vld [vmem:[%s1127] sm:$0xf]
        %v1129 = vld [vmem:[%s1127 + $0x4] sm:$0xf]
        %v1130 = vld [vmem:[%s1127 + $0x8] sm:$0xf]
        %v1134 = vunpack.c.l.b16 %v1128
        %v1135 = vunpack.c.l.b16 %v1129
        %v1136 = vunpack.c.l.b16 %v1130
        %v1137 = vpack.c.b16 %v1135, %v1134
        %v1138 = vpack.c.b16 %v1136, %v1136
        %v1141 = vsel %vm582, %v1123, 0
        %v1144 = vsel %vm582, %v1124, 0
        %v1147 = vsel %vm582, %v1125, 0
        %v1150 = vsel %vm582, %v1126, 0
        %vm1152 = vcmask 1043456
        %v1154 = vsel %vm1152, %v1138, 0
        %1156 = vmatprep.subr.bf16.mxu0 0
        %1157 = vmatpush1.bf16.msra.mxu0 %v1137
        %1158 = vmatprep.subr.bf16.mxu0 0
        %1159 = vmatpush1.bf16.msra.mxu0 %v1154
        %1160 = vmatprep.subr.bf16.mxu0 0
        %1161 = vmatpush1.bf16.msra.mxu0 0
        %1162 = vmatprep.subr.bf16.mxu0 0
        %1163 = vmatpush1.bf16.msra.mxu0 0
        %1164 = vmatprep.subr.bf16.mxu0 0
        %1165 = vmatpush1.bf16.msra.mxu0 0
        %1166 = vmatprep.subr.bf16.mxu0 0
        %1167 = vmatpush1.bf16.msra.mxu0 0
        %1168 = vmatprep.subr.bf16.mxu0 0
        %1169 = vmatpush1.bf16.msra.mxu0 0
        %1170 = vmatprep.subr.bf16.mxu0 0
        %1171 = vmatpush1.bf16.msra.mxu0 0
        %1172 = vmatprep.subr.bf16.mxu0 0
        %1173 = vmatpush1.bf16.msra.mxu0 0
        %1174 = vmatprep.subr.bf16.mxu0 0
        %1175 = vmatpush1.bf16.msra.mxu0 0
        %1176 = vmatprep.subr.bf16.mxu0 0
        %1177 = vmatpush1.bf16.msra.mxu0 0
        %1178 = vmatprep.subr.bf16.mxu0 0
        %1179 = vmatpush1.bf16.msra.mxu0 0
        %1180 = vmatprep.subr.bf16.mxu0 0
        %1181 = vmatpush1.bf16.msra.mxu0 0
        %1182 = vmatprep.subr.bf16.mxu0 0
        %1183 = vmatpush1.bf16.msra.mxu0 0
        %1184 = vmatprep.subr.bf16.mxu0 0
        %1185 = vmatpush1.bf16.msra.mxu0 0
        %1186 = vmatprep.subr.bf16.mxu0 0
        %1187 = vmatpush1.bf16.msra.mxu0 0
        %1188 = vmatprep.mubr.bf16.mxu0 0
        %1189 = vmatmul.mubr.bf16.gmra.mrb[0].mxu0 %v1141
        %v1190 = vpop.f32.mrb[0].mxu0
        %v1191 = vadd.f32 0.0, %v1190
        %v1192 = vpop.f32.mrb[0].mxu0
        %v1193 = vpop.f32.mrb[0].mxu0
        %v1194 = vadd.f32 0.0, %v1193
        %v1195 = vpop.f32.mrb[0].mxu0
        %1196 = vmatprep.mubr.bf16.mxu0 0
        %1197 = vmatmul.mubr.bf16.gmra.mrb[0].mxu0 %v1144
        %v1198 = vpop.f32.mrb[0].mxu0
        %v1199 = vadd.f32 0.0, %v1198
        %v1200 = vpop.f32.mrb[0].mxu0
        %v1201 = vpop.f32.mrb[0].mxu0
        %v1202 = vadd.f32 0.0, %v1201
        %v1203 = vpop.f32.mrb[0].mxu0
        %1204 = vmatprep.mubr.bf16.mxu0 0
        %1205 = vmatmul.mubr.bf16.gmra.mrb[0].mxu0 %v1147
        %v1206 = vpop.f32.mrb[0].mxu0
        %v1207 = vadd.f32 0.0, %v1206
        %v1208 = vpop.f32.mrb[0].mxu0
        %v1209 = vpop.f32.mrb[0].mxu0
        %v1210 = vadd.f32 0.0, %v1209
        %v1211 = vpop.f32.mrb[0].mxu0
        %1212 = vmatprep.mubr.bf16.mxu0 0
        %1213 = vmatmul.mubr.bf16.gmra.mrb[0].mxu0 %v1150
        %v1214 = vpop.f32.mrb[0].mxu0
        %v1215 = vadd.f32 0.0, %v1214
        %v1216 = vpop.f32.mrb[0].mxu0
        %v1217 = vpop.f32.mrb[0].mxu0
        %v1218 = vadd.f32 0.0, %v1217
        %v1219 = vpop.f32.mrb[0].mxu0
        %1220 = vdwg.mxu0
        %v1224 = vunpack.c.l.b16 %v1112
        %v1225 = vunpack.c.l.b16 %v1113
        %v1226 = vunpack.c.l.b16 %v1114
        %v1227 = vpack.c.b16 %v1225, %v1224
        %v1228 = vpack.c.b16 %v1226, %v1226
        %v1231 = vsel %vm582, %v1108, 0
        %v1234 = vsel %vm582, %v1109, 0
        %v1237 = vsel %vm582, %v1110, 0
        %v1240 = vsel %vm582, %v1111, 0
        %v1243 = vsel %vm1152, %v1228, 0
        %1245 = vmatprep.subr.bf16.mxu0 0
        %1246 = vmatpush1.bf16.msra.mxu0 %v1227
        %1247 = vmatprep.subr.bf16.mxu0 0
        %1248 = vmatpush1.bf16.msra.mxu0 %v1243
        %1249 = vmatprep.subr.bf16.mxu0 0
        %1250 = vmatpush1.bf16.msra.mxu0 0
        %1251 = vmatprep.subr.bf16.mxu0 0
        %1252 = vmatpush1.bf16.msra.mxu0 0
        %1253 = vmatprep.subr.bf16.mxu0 0
        %1254 = vmatpush1.bf16.msra.mxu0 0
        %1255 = vmatprep.subr.bf16.mxu0 0
        %1256 = vmatpush1.bf16.msra.mxu0 0
        %1257 = vmatprep.subr.bf16.mxu0 0
        %1258 = vmatpush1.bf16.msra.mxu0 0
        %1259 = vmatprep.subr.bf16.mxu0 0
        %1260 = vmatpush1.bf16.msra.mxu0 0
        %1261 = vmatprep.subr.bf16.mxu0 0
        %1262 = vmatpush1.bf16.msra.mxu0 0
        %1263 = vmatprep.subr.bf16.mxu0 0
        %1264 = vmatpush1.bf16.msra.mxu0 0
        %1265 = vmatprep.subr.bf16.mxu0 0
        %1266 = vmatpush1.bf16.msra.mxu0 0
        %1267 = vmatprep.subr.bf16.mxu0 0
        %1268 = vmatpush1.bf16.msra.mxu0 0
        %1269 = vmatprep.subr.bf16.mxu0 0
        %1270 = vmatpush1.bf16.msra.mxu0 0
        %1271 = vmatprep.subr.bf16.mxu0 0
        %1272 = vmatpush1.bf16.msra.mxu0 0
        %1273 = vmatprep.subr.bf16.mxu0 0
        %1274 = vmatpush1.bf16.msra.mxu0 0
        %1275 = vmatprep.subr.bf16.mxu0 0
        %1276 = vmatpush1.bf16.msra.mxu0 0
        %1277 = vmatprep.mubr.bf16.mxu0 0
        %1278 = vmatmul.mubr.bf16.gmra.mrb[0].mxu0 %v1231
        %v1279 = vpop.f32.mrb[0].mxu0
        %v1280 = vadd.f32 %v1191, %v1279
        %v1281 = vpop.f32.mrb[0].mxu0
        %v1282 = vpop.f32.mrb[0].mxu0
        %v1283 = vadd.f32 %v1194, %v1282
        %v1284 = vpop.f32.mrb[0].mxu0
        %1285 = vmatprep.mubr.bf16.mxu0 0
        %1286 = vmatmul.mubr.bf16.gmra.mrb[0].mxu0 %v1234
        %v1287 = vpop.f32.mrb[0].mxu0
        %v1288 = vadd.f32 %v1199, %v1287
        %v1289 = vpop.f32.mrb[0].mxu0
        %v1290 = vpop.f32.mrb[0].mxu0
        %v1291 = vadd.f32 %v1202, %v1290
        %v1292 = vpop.f32.mrb[0].mxu0
        %1293 = vmatprep.mubr.bf16.mxu0 0
        %1294 = vmatmul.mubr.bf16.gmra.mrb[0].mxu0 %v1237
        %v1295 = vpop.f32.mrb[0].mxu0
        %v1296 = vadd.f32 %v1207, %v1295
        %v1297 = vpop.f32.mrb[0].mxu0
        %v1298 = vpop.f32.mrb[0].mxu0
        %v1299 = vadd.f32 %v1210, %v1298
        %v1300 = vpop.f32.mrb[0].mxu0
        %1301 = vmatprep.mubr.bf16.mxu0 0
        %1302 = vmatmul.mubr.bf16.gmra.mrb[0].mxu0 %v1240
        %v1303 = vpop.f32.mrb[0].mxu0
        %v1304 = vadd.f32 %v1215, %v1303
        %v1305 = vpop.f32.mrb[0].mxu0
        %v1306 = vpop.f32.mrb[0].mxu0
        %v1307 = vadd.f32 %v1218, %v1306
        %v1308 = vpop.f32.mrb[0].mxu0
        %1309 = vdwg.mxu0
        %v1310 = vld [vmem:[#allocation3 + $0x2] sm:$0xff]
        %v1311 = vld [vmem:[#allocation3 + $0x12] sm:$0xff]
        %v1312 = vld [vmem:[#allocation3 + $0x22] sm:$0xff]
        %v1313 = vld [vmem:[#allocation3 + $0x32] sm:$0xff]
        %v1314 = vld [vmem:[#allocation3 + $0x42] sm:$0xff]
        %v1315 = vld [vmem:[#allocation3 + $0x52] sm:$0xff]
        %v1316 = vld [vmem:[#allocation3 + $0x62] sm:$0xff]
        %v1317 = vld [vmem:[#allocation3 + $0x72] sm:$0xff]
        %v1318 = vpack.c.bf16 %v1311, %v1310
        %v1319 = vpack.c.bf16 %v1313, %v1312
        %v1320 = vpack.c.bf16 %v1315, %v1314
        %v1321 = vpack.c.bf16 %v1317, %v1316
        %s1322 = scalar_lea.vmem [#allocation8], 24
        %v1323 = vld [vmem:[%s1322] sm:$0xf]
        %v1324 = vld [vmem:[%s1322 + $0x4] sm:$0xf]
        %v1325 = vld [vmem:[%s1322 + $0x8] sm:$0xf]
        %v1329 = vunpack.c.l.b16 %v1323
        %v1330 = vunpack.c.l.b16 %v1324
        %v1331 = vunpack.c.l.b16 %v1325
        %v1332 = vpack.c.b16 %v1330, %v1329
        %v1333 = vpack.c.b16 %v1331, %v1331
        %v1336 = vsel %vm582, %v1318, 0
        %v1339 = vsel %vm582, %v1319, 0
        %v1342 = vsel %vm582, %v1320, 0
        %v1345 = vsel %vm582, %v1321, 0
        %v1348 = vsel %vm1152, %v1333, 0
        %1350 = vmatprep.subr.bf16.mxu0 0
        %1351 = vmatpush1.bf16.msra.mxu0 %v1332
        %1352 = vmatprep.subr.bf16.mxu0 0
        %1353 = vmatpush1.bf16.msra.mxu0 %v1348
        %1354 = vmatprep.subr.bf16.mxu0 0
        %1355 = vmatpush1.bf16.msra.mxu0 0
        %1356 = vmatprep.subr.bf16.mxu0 0
        %1357 = vmatpush1.bf16.msra.mxu0 0
        %1358 = vmatprep.subr.bf16.mxu0 0
        %1359 = vmatpush1.bf16.msra.mxu0 0
        %1360 = vmatprep.subr.bf16.mxu0 0
        %1361 = vmatpush1.bf16.msra.mxu0 0
        %1362 = vmatprep.subr.bf16.mxu0 0
        %1363 = vmatpush1.bf16.msra.mxu0 0
        %1364 = vmatprep.subr.bf16.mxu0 0
        %1365 = vmatpush1.bf16.msra.mxu0 0
        %1366 = vmatprep.subr.bf16.mxu0 0
        %1367 = vmatpush1.bf16.msra.mxu0 0
        %1368 = vmatprep.subr.bf16.mxu0 0
        %1369 = vmatpush1.bf16.msra.mxu0 0
        %1370 = vmatprep.subr.bf16.mxu0 0
        %1371 = vmatpush1.bf16.msra.mxu0 0
        %1372 = vmatprep.subr.bf16.mxu0 0
        %1373 = vmatpush1.bf16.msra.mxu0 0
        %1374 = vmatprep.subr.bf16.mxu0 0
        %1375 = vmatpush1.bf16.msra.mxu0 0
        %1376 = vmatprep.subr.bf16.mxu0 0
        %1377 = vmatpush1.bf16.msra.mxu0 0
        %1378 = vmatprep.subr.bf16.mxu0 0
        %1379 = vmatpush1.bf16.msra.mxu0 0
        %1380 = vmatprep.subr.bf16.mxu0 0
        %1381 = vmatpush1.bf16.msra.mxu0 0
        %1382 = vmatprep.mubr.bf16.mxu0 0
        %1383 = vmatmul.mubr.bf16.gmra.mrb[0].mxu0 %v1336
        %v1384 = vpop.f32.mrb[0].mxu0
        %v1385 = vadd.f32 0.0, %v1384
        %v1386 = vpop.f32.mrb[0].mxu0
        %v1387 = vpop.f32.mrb[0].mxu0
        %v1388 = vadd.f32 0.0, %v1387
        %v1389 = vpop.f32.mrb[0].mxu0
        %1390 = vmatprep.mubr.bf16.mxu0 0
        %1391 = vmatmul.mubr.bf16.gmra.mrb[0].mxu0 %v1339
        %v1392 = vpop.f32.mrb[0].mxu0
        %v1393 = vadd.f32 0.0, %v1392
        %v1394 = vpop.f32.mrb[0].mxu0
        %v1395 = vpop.f32.mrb[0].mxu0
        %v1396 = vadd.f32 0.0, %v1395
        %v1397 = vpop.f32.mrb[0].mxu0
        %1398 = vmatprep.mubr.bf16.mxu0 0
        %1399 = vmatmul.mubr.bf16.gmra.mrb[0].mxu0 %v1342
        %v1400 = vpop.f32.mrb[0].mxu0
        %v1401 = vadd.f32 0.0, %v1400
        %v1402 = vpop.f32.mrb[0].mxu0
        %v1403 = vpop.f32.mrb[0].mxu0
        %v1404 = vadd.f32 0.0, %v1403
        %v1405 = vpop.f32.mrb[0].mxu0
        %1406 = vmatprep.mubr.bf16.mxu0 0
        %1407 = vmatmul.mubr.bf16.gmra.mrb[0].mxu0 %v1345
        %v1408 = vpop.f32.mrb[0].mxu0
        %v1409 = vadd.f32 0.0, %v1408
        %v1410 = vpop.f32.mrb[0].mxu0
        %v1411 = vpop.f32.mrb[0].mxu0
        %v1412 = vadd.f32 0.0, %v1411
        %v1413 = vpop.f32.mrb[0].mxu0
        %1414 = vdwg.mxu0
        %v1415 = vadd.f32 %v1280, %v1385
        %v1416 = vadd.f32 %v1283, %v1388
        %v1417 = vadd.f32 %v1288, %v1393
        %v1418 = vadd.f32 %v1291, %v1396
        %v1419 = vadd.f32 %v1296, %v1401
        %v1420 = vadd.f32 %v1299, %v1404
        %v1421 = vadd.f32 %v1304, %v1409
        %v1422 = vadd.f32 %v1307, %v1412
        %v1423 = vld [vmem:[%s1091] sm:$0xff]
        %v1424 = vld [vmem:[%s1091 + $0x10] sm:$0xff]
        %v1425 = vld [vmem:[%s1091 + $0x20] sm:$0xff]
        %v1426 = vld [vmem:[%s1091 + $0x30] sm:$0xff]
        %v1427 = vld [vmem:[%s1091 + $0x40] sm:$0xff]
        %v1428 = vld [vmem:[%s1091 + $0x50] sm:$0xff]
        %v1429 = vld [vmem:[%s1091 + $0x60] sm:$0xff]
        %v1430 = vld [vmem:[%s1091 + $0x70] sm:$0xff]
        %v1431 = vpack.c.bf16 %v1424, %v1423
        %v1432 = vpack.c.bf16 %v1426, %v1425
        %v1433 = vpack.c.bf16 %v1428, %v1427
        %v1434 = vpack.c.bf16 %v1430, %v1429
        %s1435 = scalar_lea.vmem [#allocation8], 36
        %v1436 = vld [vmem:[%s1435] sm:$0xf]
        %v1437 = vld [vmem:[%s1435 + $0x4] sm:$0xf]
        %v1438 = vld [vmem:[%s1435 + $0x8] sm:$0xf]
        %v1442 = vunpack.c.l.b16 %v1436
        %v1443 = vunpack.c.l.b16 %v1437
        %v1444 = vunpack.c.l.b16 %v1438
        %v1445 = vpack.c.b16 %v1443, %v1442
        %v1446 = vpack.c.b16 %v1444, %v1444
        %v1449 = vsel %vm582, %v1431, 0
        %v1452 = vsel %vm582, %v1432, 0
        %v1455 = vsel %vm582, %v1433, 0
        %v1458 = vsel %vm582, %v1434, 0
        %v1461 = vsel %vm1152, %v1446, 0
        %1463 = vmatprep.subr.bf16.mxu0 0
        %1464 = vmatpush1.bf16.msra.mxu0 %v1445
        %1465 = vmatprep.subr.bf16.mxu0 0
        %1466 = vmatpush1.bf16.msra.mxu0 %v1461
        %1467 = vmatprep.subr.bf16.mxu0 0
        %1468 = vmatpush1.bf16.msra.mxu0 0
        %1469 = vmatprep.subr.bf16.mxu0 0
        %1470 = vmatpush1.bf16.msra.mxu0 0
        %1471 = vmatprep.subr.bf16.mxu0 0
        %1472 = vmatpush1.bf16.msra.mxu0 0
        %1473 = vmatprep.subr.bf16.mxu0 0
        %1474 = vmatpush1.bf16.msra.mxu0 0
        %1475 = vmatprep.subr.bf16.mxu0 0
        %1476 = vmatpush1.bf16.msra.mxu0 0
        %1477 = vmatprep.subr.bf16.mxu0 0
        %1478 = vmatpush1.bf16.msra.mxu0 0
        %1479 = vmatprep.subr.bf16.mxu0 0
        %1480 = vmatpush1.bf16.msra.mxu0 0
        %1481 = vmatprep.subr.bf16.mxu0 0
        %1482 = vmatpush1.bf16.msra.mxu0 0
        %1483 = vmatprep.subr.bf16.mxu0 0
        %1484 = vmatpush1.bf16.msra.mxu0 0
        %1485 = vmatprep.subr.bf16.mxu0 0
        %1486 = vmatpush1.bf16.msra.mxu0 0
        %1487 = vmatprep.subr.bf16.mxu0 0
        %1488 = vmatpush1.bf16.msra.mxu0 0
        %1489 = vmatprep.subr.bf16.mxu0 0
        %1490 = vmatpush1.bf16.msra.mxu0 0
        %1491 = vmatprep.subr.bf16.mxu0 0
        %1492 = vmatpush1.bf16.msra.mxu0 0
        %1493 = vmatprep.subr.bf16.mxu0 0
        %1494 = vmatpush1.bf16.msra.mxu0 0
        %1495 = vmatprep.mubr.bf16.mxu0 0
        %1496 = vmatmul.mubr.bf16.gmra.mrb[0].mxu0 %v1449
        %v1497 = vpop.f32.mrb[0].mxu0
        %v1498 = vadd.f32 0.0, %v1497
        %v1499 = vpop.f32.mrb[0].mxu0
        %v1500 = vpop.f32.mrb[0].mxu0
        %v1501 = vadd.f32 0.0, %v1500
        %v1502 = vpop.f32.mrb[0].mxu0
        %1503 = vmatprep.mubr.bf16.mxu0 0
        %1504 = vmatmul.mubr.bf16.gmra.mrb[0].mxu0 %v1452
        %v1505 = vpop.f32.mrb[0].mxu0
        %v1506 = vadd.f32 0.0, %v1505
        %v1507 = vpop.f32.mrb[0].mxu0
        %v1508 = vpop.f32.mrb[0].mxu0
        %v1509 = vadd.f32 0.0, %v1508
        %v1510 = vpop.f32.mrb[0].mxu0
        %1511 = vmatprep.mubr.bf16.mxu0 0
        %1512 = vmatmul.mubr.bf16.gmra.mrb[0].mxu0 %v1455
        %v1513 = vpop.f32.mrb[0].mxu0
        %v1514 = vadd.f32 0.0, %v1513
        %v1515 = vpop.f32.mrb[0].mxu0
        %v1516 = vpop.f32.mrb[0].mxu0
        %v1517 = vadd.f32 0.0, %v1516
        %v1518 = vpop.f32.mrb[0].mxu0
        %1519 = vmatprep.mubr.bf16.mxu0 0
        %1520 = vmatmul.mubr.bf16.gmra.mrb[0].mxu0 %v1458
        %v1521 = vpop.f32.mrb[0].mxu0
        %v1522 = vadd.f32 0.0, %v1521
        %v1523 = vpop.f32.mrb[0].mxu0
        %v1524 = vpop.f32.mrb[0].mxu0
        %v1525 = vadd.f32 0.0, %v1524
        %v1526 = vpop.f32.mrb[0].mxu0
        %1527 = vdwg.mxu0
        %v1528 = vadd.f32 %v1415, %v1498
        %v1529 = vadd.f32 %v1416, %v1501
        %v1530 = vadd.f32 %v1417, %v1506
        %v1531 = vadd.f32 %v1418, %v1509
        %v1532 = vadd.f32 %v1419, %v1514
        %v1533 = vadd.f32 %v1420, %v1517
        %v1534 = vadd.f32 %v1421, %v1522
        %v1535 = vadd.f32 %v1422, %v1525
        %v1536 = vld [vmem:[%s1091 + $0x1] sm:$0xff]
        %v1537 = vld [vmem:[%s1091 + $0x11] sm:$0xff]
        %v1538 = vld [vmem:[%s1091 + $0x21] sm:$0xff]
        %v1539 = vld [vmem:[%s1091 + $0x31] sm:$0xff]
        %v1540 = vld [vmem:[%s1091 + $0x41] sm:$0xff]
        %v1541 = vld [vmem:[%s1091 + $0x51] sm:$0xff]
        %v1542 = vld [vmem:[%s1091 + $0x61] sm:$0xff]
        %v1543 = vld [vmem:[%s1091 + $0x71] sm:$0xff]
        %v1544 = vpack.c.bf16 %v1537, %v1536
        %v1545 = vpack.c.bf16 %v1539, %v1538
        %v1546 = vpack.c.bf16 %v1541, %v1540
        %v1547 = vpack.c.bf16 %v1543, %v1542
        %s1548 = scalar_lea.vmem [#allocation8], 48
        %v1549 = vld [vmem:[%s1548] sm:$0xf]
        %v1550 = vld [vmem:[%s1548 + $0x4] sm:$0xf]
        %v1551 = vld [vmem:[%s1548 + $0x8] sm:$0xf]
        %v1555 = vunpack.c.l.b16 %v1549
        %v1556 = vunpack.c.l.b16 %v1550
        %v1557 = vunpack.c.l.b16 %v1551
        %v1558 = vpack.c.b16 %v1556, %v1555
        %v1559 = vpack.c.b16 %v1557, %v1557
        %v1562 = vsel %vm582, %v1544, 0
        %v1565 = vsel %vm582, %v1545, 0
        %v1568 = vsel %vm582, %v1546, 0
        %v1571 = vsel %vm582, %v1547, 0
        %v1574 = vsel %vm1152, %v1559, 0
        %1576 = vmatprep.subr.bf16.mxu0 0
        %1577 = vmatpush1.bf16.msra.mxu0 %v1558
        %1578 = vmatprep.subr.bf16.mxu0 0
        %1579 = vmatpush1.bf16.msra.mxu0 %v1574
        %1580 = vmatprep.subr.bf16.mxu0 0
        %1581 = vmatpush1.bf16.msra.mxu0 0
        %1582 = vmatprep.subr.bf16.mxu0 0
        %1583 = vmatpush1.bf16.msra.mxu0 0
        %1584 = vmatprep.subr.bf16.mxu0 0
        %1585 = vmatpush1.bf16.msra.mxu0 0
        %1586 = vmatprep.subr.bf16.mxu0 0
        %1587 = vmatpush1.bf16.msra.mxu0 0
        %1588 = vmatprep.subr.bf16.mxu0 0
        %1589 = vmatpush1.bf16.msra.mxu0 0
        %1590 = vmatprep.subr.bf16.mxu0 0
        %1591 = vmatpush1.bf16.msra.mxu0 0
        %1592 = vmatprep.subr.bf16.mxu0 0
        %1593 = vmatpush1.bf16.msra.mxu0 0
        %1594 = vmatprep.subr.bf16.mxu0 0
        %1595 = vmatpush1.bf16.msra.mxu0 0
        %1596 = vmatprep.subr.bf16.mxu0 0
        %1597 = vmatpush1.bf16.msra.mxu0 0
        %1598 = vmatprep.subr.bf16.mxu0 0
        %1599 = vmatpush1.bf16.msra.mxu0 0
        %1600 = vmatprep.subr.bf16.mxu0 0
        %1601 = vmatpush1.bf16.msra.mxu0 0
        %1602 = vmatprep.subr.bf16.mxu0 0
        %1603 = vmatpush1.bf16.msra.mxu0 0
        %1604 = vmatprep.subr.bf16.mxu0 0
        %1605 = vmatpush1.bf16.msra.mxu0 0
        %1606 = vmatprep.subr.bf16.mxu0 0
        %1607 = vmatpush1.bf16.msra.mxu0 0
        %1608 = vmatprep.mubr.bf16.mxu0 0
        %1609 = vmatmul.mubr.bf16.gmra.mrb[0].mxu0 %v1562
        %v1610 = vpop.f32.mrb[0].mxu0
        %v1611 = vadd.f32 0.0, %v1610
        %v1612 = vpop.f32.mrb[0].mxu0
        %v1613 = vpop.f32.mrb[0].mxu0
        %v1614 = vadd.f32 0.0, %v1613
        %v1615 = vpop.f32.mrb[0].mxu0
        %1616 = vmatprep.mubr.bf16.mxu0 0
        %1617 = vmatmul.mubr.bf16.gmra.mrb[0].mxu0 %v1565
        %v1618 = vpop.f32.mrb[0].mxu0
        %v1619 = vadd.f32 0.0, %v1618
        %v1620 = vpop.f32.mrb[0].mxu0
        %v1621 = vpop.f32.mrb[0].mxu0
        %v1622 = vadd.f32 0.0, %v1621
        %v1623 = vpop.f32.mrb[0].mxu0
        %1624 = vmatprep.mubr.bf16.mxu0 0
        %1625 = vmatmul.mubr.bf16.gmra.mrb[0].mxu0 %v1568
        %v1626 = vpop.f32.mrb[0].mxu0
        %v1627 = vadd.f32 0.0, %v1626
        %v1628 = vpop.f32.mrb[0].mxu0
        %v1629 = vpop.f32.mrb[0].mxu0
        %v1630 = vadd.f32 0.0, %v1629
        %v1631 = vpop.f32.mrb[0].mxu0
        %1632 = vmatprep.mubr.bf16.mxu0 0
        %1633 = vmatmul.mubr.bf16.gmra.mrb[0].mxu0 %v1571
        %v1634 = vpop.f32.mrb[0].mxu0
        %v1635 = vadd.f32 0.0, %v1634
        %v1636 = vpop.f32.mrb[0].mxu0
        %v1637 = vpop.f32.mrb[0].mxu0
        %v1638 = vadd.f32 0.0, %v1637
        %v1639 = vpop.f32.mrb[0].mxu0
        %1640 = vdwg.mxu0
        %v1641 = vadd.f32 %v1528, %v1611
        %v1642 = vadd.f32 %v1529, %v1614
        %v1643 = vadd.f32 %v1530, %v1619
        %v1644 = vadd.f32 %v1531, %v1622
        %v1645 = vadd.f32 %v1532, %v1627
        %v1646 = vadd.f32 %v1533, %v1630
        %v1647 = vadd.f32 %v1534, %v1635
        %v1648 = vadd.f32 %v1535, %v1638
        %v1649 = vld [vmem:[%s1091 + $0x2] sm:$0xff]
        %v1650 = vld [vmem:[%s1091 + $0x12] sm:$0xff]
        %v1651 = vld [vmem:[%s1091 + $0x22] sm:$0xff]
        %v1652 = vld [vmem:[%s1091 + $0x32] sm:$0xff]
        %v1653 = vld [vmem:[%s1091 + $0x42] sm:$0xff]
        %v1654 = vld [vmem:[%s1091 + $0x52] sm:$0xff]
        %v1655 = vld [vmem:[%s1091 + $0x62] sm:$0xff]
        %v1656 = vld [vmem:[%s1091 + $0x72] sm:$0xff]
        %v1657 = vpack.c.bf16 %v1650, %v1649
        %v1658 = vpack.c.bf16 %v1652, %v1651
        %v1659 = vpack.c.bf16 %v1654, %v1653
        %v1660 = vpack.c.bf16 %v1656, %v1655
        %s1661 = scalar_lea.vmem [#allocation8], 60
        %v1662 = vld [vmem:[%s1661] sm:$0xf]
        %v1663 = vld [vmem:[%s1661 + $0x4] sm:$0xf]
        %v1664 = vld [vmem:[%s1661 + $0x8] sm:$0xf]
        %v1668 = vunpack.c.l.b16 %v1662
        %v1669 = vunpack.c.l.b16 %v1663
        %v1670 = vunpack.c.l.b16 %v1664
        %v1671 = vpack.c.b16 %v1669, %v1668
        %v1672 = vpack.c.b16 %v1670, %v1670
        %v1675 = vsel %vm582, %v1657, 0
        %v1678 = vsel %vm582, %v1658, 0
        %v1681 = vsel %vm582, %v1659, 0
        %v1684 = vsel %vm582, %v1660, 0
        %v1687 = vsel %vm1152, %v1672, 0
        %1689 = vmatprep.subr.bf16.mxu0 0
        %1690 = vmatpush1.bf16.msra.mxu0 %v1671
        %1691 = vmatprep.subr.bf16.mxu0 0
        %1692 = vmatpush1.bf16.msra.mxu0 %v1687
        %1693 = vmatprep.subr.bf16.mxu0 0
        %1694 = vmatpush1.bf16.msra.mxu0 0
        %1695 = vmatprep.subr.bf16.mxu0 0
        %1696 = vmatpush1.bf16.msra.mxu0 0
        %1697 = vmatprep.subr.bf16.mxu0 0
        %1698 = vmatpush1.bf16.msra.mxu0 0
        %1699 = vmatprep.subr.bf16.mxu0 0
        %1700 = vmatpush1.bf16.msra.mxu0 0
        %1701 = vmatprep.subr.bf16.mxu0 0
        %1702 = vmatpush1.bf16.msra.mxu0 0
        %1703 = vmatprep.subr.bf16.mxu0 0
        %1704 = vmatpush1.bf16.msra.mxu0 0
        %1705 = vmatprep.subr.bf16.mxu0 0
        %1706 = vmatpush1.bf16.msra.mxu0 0
        %1707 = vmatprep.subr.bf16.mxu0 0
        %1708 = vmatpush1.bf16.msra.mxu0 0
        %1709 = vmatprep.subr.bf16.mxu0 0
        %1710 = vmatpush1.bf16.msra.mxu0 0
        %1711 = vmatprep.subr.bf16.mxu0 0
        %1712 = vmatpush1.bf16.msra.mxu0 0
        %1713 = vmatprep.subr.bf16.mxu0 0
        %1714 = vmatpush1.bf16.msra.mxu0 0
        %1715 = vmatprep.subr.bf16.mxu0 0
        %1716 = vmatpush1.bf16.msra.mxu0 0
        %1717 = vmatprep.subr.bf16.mxu0 0
        %1718 = vmatpush1.bf16.msra.mxu0 0
        %1719 = vmatprep.subr.bf16.mxu0 0
        %1720 = vmatpush1.bf16.msra.mxu0 0
        %1721 = vmatprep.mubr.bf16.mxu0 0
        %1722 = vmatmul.mubr.bf16.gmra.mrb[0].mxu0 %v1675
        %v1723 = vpop.f32.mrb[0].mxu0
        %v1724 = vadd.f32 0.0, %v1723
        %v1725 = vpop.f32.mrb[0].mxu0
        %v1726 = vpop.f32.mrb[0].mxu0
        %v1727 = vadd.f32 0.0, %v1726
        %v1728 = vpop.f32.mrb[0].mxu0
        %1729 = vmatprep.mubr.bf16.mxu0 0
        %1730 = vmatmul.mubr.bf16.gmra.mrb[0].mxu0 %v1678
        %v1731 = vpop.f32.mrb[0].mxu0
        %v1732 = vadd.f32 0.0, %v1731
        %v1733 = vpop.f32.mrb[0].mxu0
        %v1734 = vpop.f32.mrb[0].mxu0
        %v1735 = vadd.f32 0.0, %v1734
        %v1736 = vpop.f32.mrb[0].mxu0
        %1737 = vmatprep.mubr.bf16.mxu0 0
        %1738 = vmatmul.mubr.bf16.gmra.mrb[0].mxu0 %v1681
        %v1739 = vpop.f32.mrb[0].mxu0
        %v1740 = vadd.f32 0.0, %v1739
        %v1741 = vpop.f32.mrb[0].mxu0
        %v1742 = vpop.f32.mrb[0].mxu0
        %v1743 = vadd.f32 0.0, %v1742
        %v1744 = vpop.f32.mrb[0].mxu0
        %1745 = vmatprep.mubr.bf16.mxu0 0
        %1746 = vmatmul.mubr.bf16.gmra.mrb[0].mxu0 %v1684
        %v1747 = vpop.f32.mrb[0].mxu0
        %v1748 = vadd.f32 0.0, %v1747
        %v1749 = vpop.f32.mrb[0].mxu0
        %v1750 = vpop.f32.mrb[0].mxu0
        %v1751 = vadd.f32 0.0, %v1750
        %v1752 = vpop.f32.mrb[0].mxu0
        %1753 = vdwg.mxu0
        %v1754 = vadd.f32 %v1641, %v1724
        %v1755 = vadd.f32 %v1642, %v1727
        %v1756 = vadd.f32 %v1643, %v1732
        %v1757 = vadd.f32 %v1644, %v1735
        %v1758 = vadd.f32 %v1645, %v1740
        %v1759 = vadd.f32 %v1646, %v1743
        %v1760 = vadd.f32 %v1647, %v1748
        %v1761 = vadd.f32 %v1648, %v1751
        %s1762 = scalar_lea.vmem [#allocation3], 32
        %v1763 = vld [vmem:[%s1762] sm:$0xff]
        %v1764 = vld [vmem:[%s1762 + $0x10] sm:$0xff]
        %v1765 = vld [vmem:[%s1762 + $0x20] sm:$0xff]
        %v1766 = vld [vmem:[%s1762 + $0x30] sm:$0xff]
        %v1767 = vld [vmem:[%s1762 + $0x40] sm:$0xff]
        %v1768 = vld [vmem:[%s1762 + $0x50] sm:$0xff]
        %v1769 = vld [vmem:[%s1762 + $0x60] sm:$0xff]
        %v1770 = vld [vmem:[%s1762 + $0x70] sm:$0xff]
        %v1771 = vpack.c.bf16 %v1764, %v1763
        %v1772 = vpack.c.bf16 %v1766, %v1765
        %v1773 = vpack.c.bf16 %v1768, %v1767
        %v1774 = vpack.c.bf16 %v1770, %v1769
        %s1775 = scalar_lea.vmem [#allocation8], 72
        %v1776 = vld [vmem:[%s1775] sm:$0xf]
        %v1777 = vld [vmem:[%s1775 + $0x4] sm:$0xf]
        %v1778 = vld [vmem:[%s1775 + $0x8] sm:$0xf]
        %v1782 = vunpack.c.l.b16 %v1776
        %v1783 = vunpack.c.l.b16 %v1777
        %v1784 = vunpack.c.l.b16 %v1778
        %v1785 = vpack.c.b16 %v1783, %v1782
        %v1786 = vpack.c.b16 %v1784, %v1784
        %v1789 = vsel %vm582, %v1771, 0
        %v1792 = vsel %vm582, %v1772, 0
        %v1795 = vsel %vm582, %v1773, 0
        %v1798 = vsel %vm582, %v1774, 0
        %v1801 = vsel %vm1152, %v1786, 0
        %1803 = vmatprep.subr.bf16.mxu0 0
        %1804 = vmatpush1.bf16.msra.mxu0 %v1785
        %1805 = vmatprep.subr.bf16.mxu0 0
        %1806 = vmatpush1.bf16.msra.mxu0 %v1801
        %1807 = vmatprep.subr.bf16.mxu0 0
        %1808 = vmatpush1.bf16.msra.mxu0 0
        %1809 = vmatprep.subr.bf16.mxu0 0
        %1810 = vmatpush1.bf16.msra.mxu0 0
        %1811 = vmatprep.subr.bf16.mxu0 0
        %1812 = vmatpush1.bf16.msra.mxu0 0
        %1813 = vmatprep.subr.bf16.mxu0 0
        %1814 = vmatpush1.bf16.msra.mxu0 0
        %1815 = vmatprep.subr.bf16.mxu0 0
        %1816 = vmatpush1.bf16.msra.mxu0 0
        %1817 = vmatprep.subr.bf16.mxu0 0
        %1818 = vmatpush1.bf16.msra.mxu0 0
        %1819 = vmatprep.subr.bf16.mxu0 0
        %1820 = vmatpush1.bf16.msra.mxu0 0
        %1821 = vmatprep.subr.bf16.mxu0 0
        %1822 = vmatpush1.bf16.msra.mxu0 0
        %1823 = vmatprep.subr.bf16.mxu0 0
        %1824 = vmatpush1.bf16.msra.mxu0 0
        %1825 = vmatprep.subr.bf16.mxu0 0
        %1826 = vmatpush1.bf16.msra.mxu0 0
        %1827 = vmatprep.subr.bf16.mxu0 0
        %1828 = vmatpush1.bf16.msra.mxu0 0
        %1829 = vmatprep.subr.bf16.mxu0 0
        %1830 = vmatpush1.bf16.msra.mxu0 0
        %1831 = vmatprep.subr.bf16.mxu0 0
        %1832 = vmatpush1.bf16.msra.mxu0 0
        %1833 = vmatprep.subr.bf16.mxu0 0
        %1834 = vmatpush1.bf16.msra.mxu0 0
        %1835 = vmatprep.mubr.bf16.mxu0 0
        %1836 = vmatmul.mubr.bf16.gmra.mrb[0].mxu0 %v1789
        %v1837 = vpop.f32.mrb[0].mxu0
        %v1838 = vadd.f32 0.0, %v1837
        %v1839 = vpop.f32.mrb[0].mxu0
        %v1840 = vpop.f32.mrb[0].mxu0
        %v1841 = vadd.f32 0.0, %v1840
        %v1842 = vpop.f32.mrb[0].mxu0
        %1843 = vmatprep.mubr.bf16.mxu0 0
        %1844 = vmatmul.mubr.bf16.gmra.mrb[0].mxu0 %v1792
        %v1845 = vpop.f32.mrb[0].mxu0
        %v1846 = vadd.f32 0.0, %v1845
        %v1847 = vpop.f32.mrb[0].mxu0
        %v1848 = vpop.f32.mrb[0].mxu0
        %v1849 = vadd.f32 0.0, %v1848
        %v1850 = vpop.f32.mrb[0].mxu0
        %1851 = vmatprep.mubr.bf16.mxu0 0
        %1852 = vmatmul.mubr.bf16.gmra.mrb[0].mxu0 %v1795
        %v1853 = vpop.f32.mrb[0].mxu0
        %v1854 = vadd.f32 0.0, %v1853
        %v1855 = vpop.f32.mrb[0].mxu0
        %v1856 = vpop.f32.mrb[0].mxu0
        %v1857 = vadd.f32 0.0, %v1856
        %v1858 = vpop.f32.mrb[0].mxu0
        %1859 = vmatprep.mubr.bf16.mxu0 0
        %1860 = vmatmul.mubr.bf16.gmra.mrb[0].mxu0 %v1798
        %v1861 = vpop.f32.mrb[0].mxu0
        %v1862 = vadd.f32 0.0, %v1861
        %v1863 = vpop.f32.mrb[0].mxu0
        %v1864 = vpop.f32.mrb[0].mxu0
        %v1865 = vadd.f32 0.0, %v1864
        %v1866 = vpop.f32.mrb[0].mxu0
        %1867 = vdwg.mxu0
        %v1868 = vadd.f32 %v1754, %v1838
        %v1869 = vadd.f32 %v1755, %v1841
        %v1870 = vadd.f32 %v1756, %v1846
        %v1871 = vadd.f32 %v1757, %v1849
        %v1872 = vadd.f32 %v1758, %v1854
        %v1873 = vadd.f32 %v1759, %v1857
        %v1874 = vadd.f32 %v1760, %v1862
        %v1875 = vadd.f32 %v1761, %v1865
        %v1876 = vld [vmem:[%s1762 + $0x1] sm:$0xff]
        %v1877 = vld [vmem:[%s1762 + $0x11] sm:$0xff]
        %v1878 = vld [vmem:[%s1762 + $0x21] sm:$0xff]
        %v1879 = vld [vmem:[%s1762 + $0x31] sm:$0xff]
        %v1880 = vld [vmem:[%s1762 + $0x41] sm:$0xff]
        %v1881 = vld [vmem:[%s1762 + $0x51] sm:$0xff]
        %v1882 = vld [vmem:[%s1762 + $0x61] sm:$0xff]
        %v1883 = vld [vmem:[%s1762 + $0x71] sm:$0xff]
        %v1884 = vpack.c.bf16 %v1877, %v1876
        %v1885 = vpack.c.bf16 %v1879, %v1878
        %v1886 = vpack.c.bf16 %v1881, %v1880
        %v1887 = vpack.c.bf16 %v1883, %v1882
        %s1888 = scalar_lea.vmem [#allocation8], 84
        %v1889 = vld [vmem:[%s1888] sm:$0xf]
        %v1890 = vld [vmem:[%s1888 + $0x4] sm:$0xf]
        %v1891 = vld [vmem:[%s1888 + $0x8] sm:$0xf]
        %v1895 = vunpack.c.l.b16 %v1889
        %v1896 = vunpack.c.l.b16 %v1890
        %v1897 = vunpack.c.l.b16 %v1891
        %v1898 = vpack.c.b16 %v1896, %v1895
        %v1899 = vpack.c.b16 %v1897, %v1897
        %v1902 = vsel %vm582, %v1884, 0
        %v1905 = vsel %vm582, %v1885, 0
        %v1908 = vsel %vm582, %v1886, 0
        %v1911 = vsel %vm582, %v1887, 0
        %v1914 = vsel %vm1152, %v1899, 0
        %1916 = vmatprep.subr.bf16.mxu0 0
        %1917 = vmatpush1.bf16.msra.mxu0 %v1898
        %1918 = vmatprep.subr.bf16.mxu0 0
        %1919 = vmatpush1.bf16.msra.mxu0 %v1914
        %1920 = vmatprep.subr.bf16.mxu0 0
        %1921 = vmatpush1.bf16.msra.mxu0 0
        %1922 = vmatprep.subr.bf16.mxu0 0
        %1923 = vmatpush1.bf16.msra.mxu0 0
        %1924 = vmatprep.subr.bf16.mxu0 0
        %1925 = vmatpush1.bf16.msra.mxu0 0
        %1926 = vmatprep.subr.bf16.mxu0 0
        %1927 = vmatpush1.bf16.msra.mxu0 0
        %1928 = vmatprep.subr.bf16.mxu0 0
        %1929 = vmatpush1.bf16.msra.mxu0 0
        %1930 = vmatprep.subr.bf16.mxu0 0
        %1931 = vmatpush1.bf16.msra.mxu0 0
        %1932 = vmatprep.subr.bf16.mxu0 0
        %1933 = vmatpush1.bf16.msra.mxu0 0
        %1934 = vmatprep.subr.bf16.mxu0 0
        %1935 = vmatpush1.bf16.msra.mxu0 0
        %1936 = vmatprep.subr.bf16.mxu0 0
        %1937 = vmatpush1.bf16.msra.mxu0 0
        %1938 = vmatprep.subr.bf16.mxu0 0
        %1939 = vmatpush1.bf16.msra.mxu0 0
        %1940 = vmatprep.subr.bf16.mxu0 0
        %1941 = vmatpush1.bf16.msra.mxu0 0
        %1942 = vmatprep.subr.bf16.mxu0 0
        %1943 = vmatpush1.bf16.msra.mxu0 0
        %1944 = vmatprep.subr.bf16.mxu0 0
        %1945 = vmatpush1.bf16.msra.mxu0 0
        %1946 = vmatprep.subr.bf16.mxu0 0
        %1947 = vmatpush1.bf16.msra.mxu0 0
        %1948 = vmatprep.mubr.bf16.mxu0 0
        %1949 = vmatmul.mubr.bf16.gmra.mrb[0].mxu0 %v1902
        %v1950 = vpop.f32.mrb[0].mxu0
        %v1951 = vadd.f32 0.0, %v1950
        %v1952 = vpop.f32.mrb[0].mxu0
        %v1953 = vpop.f32.mrb[0].mxu0
        %v1954 = vadd.f32 0.0, %v1953
        %v1955 = vpop.f32.mrb[0].mxu0
        %1956 = vmatprep.mubr.bf16.mxu0 0
        %1957 = vmatmul.mubr.bf16.gmra.mrb[0].mxu0 %v1905
        %v1958 = vpop.f32.mrb[0].mxu0
        %v1959 = vadd.f32 0.0, %v1958
        %v1960 = vpop.f32.mrb[0].mxu0
        %v1961 = vpop.f32.mrb[0].mxu0
        %v1962 = vadd.f32 0.0, %v1961
        %v1963 = vpop.f32.mrb[0].mxu0
        %1964 = vmatprep.mubr.bf16.mxu0 0
        %1965 = vmatmul.mubr.bf16.gmra.mrb[0].mxu0 %v1908
        %v1966 = vpop.f32.mrb[0].mxu0
        %v1967 = vadd.f32 0.0, %v1966
        %v1968 = vpop.f32.mrb[0].mxu0
        %v1969 = vpop.f32.mrb[0].mxu0
        %v1970 = vadd.f32 0.0, %v1969
        %v1971 = vpop.f32.mrb[0].mxu0
        %1972 = vmatprep.mubr.bf16.mxu0 0
        %1973 = vmatmul.mubr.bf16.gmra.mrb[0].mxu0 %v1911
        %v1974 = vpop.f32.mrb[0].mxu0
        %v1975 = vadd.f32 0.0, %v1974
        %v1976 = vpop.f32.mrb[0].mxu0
        %v1977 = vpop.f32.mrb[0].mxu0
        %v1978 = vadd.f32 0.0, %v1977
        %v1979 = vpop.f32.mrb[0].mxu0
        %1980 = vdwg.mxu0
        %v1981 = vadd.f32 %v1868, %v1951
        %v1982 = vadd.f32 %v1869, %v1954
        %v1983 = vadd.f32 %v1870, %v1959
        %v1984 = vadd.f32 %v1871, %v1962
        %v1985 = vadd.f32 %v1872, %v1967
        %v1986 = vadd.f32 %v1873, %v1970
        %v1987 = vadd.f32 %v1874, %v1975
        %v1988 = vadd.f32 %v1875, %v1978
        %v1989 = vld [vmem:[%s1762 + $0x2] sm:$0xff]
        %v1990 = vld [vmem:[%s1762 + $0x12] sm:$0xff]
        %v1991 = vld [vmem:[%s1762 + $0x22] sm:$0xff]
        %v1992 = vld [vmem:[%s1762 + $0x32] sm:$0xff]
        %v1993 = vld [vmem:[%s1762 + $0x42] sm:$0xff]
        %v1994 = vld [vmem:[%s1762 + $0x52] sm:$0xff]
        %v1995 = vld [vmem:[%s1762 + $0x62] sm:$0xff]
        %v1996 = vld [vmem:[%s1762 + $0x72] sm:$0xff]
        %v1997 = vpack.c.bf16 %v1990, %v1989
        %v1998 = vpack.c.bf16 %v1992, %v1991
        %v1999 = vpack.c.bf16 %v1994, %v1993
        %v2000 = vpack.c.bf16 %v1996, %v1995
        %s2001 = scalar_lea.vmem [#allocation8], 96
        %v2002 = vld [vmem:[%s2001] sm:$0xf]
        %v2003 = vld [vmem:[%s2001 + $0x4] sm:$0xf]
        %v2004 = vld [vmem:[%s2001 + $0x8] sm:$0xf]
        %v2008 = vunpack.c.l.b16 %v2002
        %v2009 = vunpack.c.l.b16 %v2003
        %v2010 = vunpack.c.l.b16 %v2004
        %v2011 = vpack.c.b16 %v2009, %v2008
        %v2012 = vpack.c.b16 %v2010, %v2010
        %v2015 = vsel %vm582, %v1997, 0
        %v2018 = vsel %vm582, %v1998, 0
        %v2021 = vsel %vm582, %v1999, 0
        %v2024 = vsel %vm582, %v2000, 0
        %v2027 = vsel %vm1152, %v2012, 0
        %2029 = vmatprep.subr.bf16.mxu0 0
        %2030 = vmatpush1.bf16.msra.mxu0 %v2011
        %2031 = vmatprep.subr.bf16.mxu0 0
        %2032 = vmatpush1.bf16.msra.mxu0 %v2027
        %2033 = vmatprep.subr.bf16.mxu0 0
        %2034 = vmatpush1.bf16.msra.mxu0 0
        %2035 = vmatprep.subr.bf16.mxu0 0
        %2036 = vmatpush1.bf16.msra.mxu0 0
        %2037 = vmatprep.subr.bf16.mxu0 0
        %2038 = vmatpush1.bf16.msra.mxu0 0
        %2039 = vmatprep.subr.bf16.mxu0 0
        %2040 = vmatpush1.bf16.msra.mxu0 0
        %2041 = vmatprep.subr.bf16.mxu0 0
        %2042 = vmatpush1.bf16.msra.mxu0 0
        %2043 = vmatprep.subr.bf16.mxu0 0
        %2044 = vmatpush1.bf16.msra.mxu0 0
        %2045 = vmatprep.subr.bf16.mxu0 0
        %2046 = vmatpush1.bf16.msra.mxu0 0
        %2047 = vmatprep.subr.bf16.mxu0 0
        %2048 = vmatpush1.bf16.msra.mxu0 0
        %2049 = vmatprep.subr.bf16.mxu0 0
        %2050 = vmatpush1.bf16.msra.mxu0 0
        %2051 = vmatprep.subr.bf16.mxu0 0
        %2052 = vmatpush1.bf16.msra.mxu0 0
        %2053 = vmatprep.subr.bf16.mxu0 0
        %2054 = vmatpush1.bf16.msra.mxu0 0
        %2055 = vmatprep.subr.bf16.mxu0 0
        %2056 = vmatpush1.bf16.msra.mxu0 0
        %2057 = vmatprep.subr.bf16.mxu0 0
        %2058 = vmatpush1.bf16.msra.mxu0 0
        %2059 = vmatprep.subr.bf16.mxu0 0
        %2060 = vmatpush1.bf16.msra.mxu0 0
        %2061 = vmatprep.mubr.bf16.mxu0 0
        %2062 = vmatmul.mubr.bf16.gmra.mrb[0].mxu0 %v2015
        %v2063 = vpop.f32.mrb[0].mxu0
        %v2064 = vadd.f32 0.0, %v2063
        %v2065 = vpop.f32.mrb[0].mxu0
        %v2066 = vpop.f32.mrb[0].mxu0
        %v2067 = vadd.f32 0.0, %v2066
        %v2068 = vpop.f32.mrb[0].mxu0
        %2069 = vmatprep.mubr.bf16.mxu0 0
        %2070 = vmatmul.mubr.bf16.gmra.mrb[0].mxu0 %v2018
        %v2071 = vpop.f32.mrb[0].mxu0
        %v2072 = vadd.f32 0.0, %v2071
        %v2073 = vpop.f32.mrb[0].mxu0
        %v2074 = vpop.f32.mrb[0].mxu0
        %v2075 = vadd.f32 0.0, %v2074
        %v2076 = vpop.f32.mrb[0].mxu0
        %2077 = vmatprep.mubr.bf16.mxu0 0
        %2078 = vmatmul.mubr.bf16.gmra.mrb[0].mxu0 %v2021
        %v2079 = vpop.f32.mrb[0].mxu0
        %v2080 = vadd.f32 0.0, %v2079
        %v2081 = vpop.f32.mrb[0].mxu0
        %v2082 = vpop.f32.mrb[0].mxu0
        %v2083 = vadd.f32 0.0, %v2082
        %v2084 = vpop.f32.mrb[0].mxu0
        %2085 = vmatprep.mubr.bf16.mxu0 0
        %2086 = vmatmul.mubr.bf16.gmra.mrb[0].mxu0 %v2024
        %v2087 = vpop.f32.mrb[0].mxu0
        %v2088 = vadd.f32 0.0, %v2087
        %v2089 = vpop.f32.mrb[0].mxu0
        %v2090 = vpop.f32.mrb[0].mxu0
        %v2091 = vadd.f32 0.0, %v2090
        %v2092 = vpop.f32.mrb[0].mxu0
        %2093 = vdwg.mxu0
        %v2094 = vadd.f32 %v1981, %v2064
        %v2095 = vadd.f32 %v1982, %v2067
        %v2096 = vadd.f32 %v1983, %v2072
        %v2097 = vadd.f32 %v1984, %v2075
        %v2098 = vadd.f32 %v1985, %v2080
        %v2099 = vadd.f32 %v1986, %v2083
        %v2100 = vadd.f32 %v1987, %v2088
        %v2101 = vadd.f32 %v1988, %v2091
        %v2102 = vld [vmem:[%s8] sm:$0x1]
        %v2104 = vlaneseq
        %v2105 = vshrl.u32 %v2104, 7
        %v2106 = vsub.s32 0, %v2105
        %v2107 = vrot.slane %v2102, %v2106
        %v2109 = vmul.f32 %v2094, %v2107
        %v2110 = vmul.f32 %v2095, %v2107
        %v2111 = vmul.f32 %v2096, %v2107
        %v2112 = vmul.f32 %v2097, %v2107
        %v2113 = vmul.f32 %v2098, %v2107
        %v2114 = vmul.f32 %v2099, %v2107
        %v2115 = vmul.f32 %v2100, %v2107
        %v2116 = vmul.f32 %v2101, %v2107
        %v2117 = vld [vmem:[%s9] sm:$0x1]
        %v2119 = vlaneseq
        %v2120 = vshrl.u32 %v2119, 7
        %v2121 = vsub.s32 0, %v2120
        %v2122 = vrot.slane %v2117, %v2121
        %v2124 = vadd.f32 %v2109, %v2122
        %v2125 = vadd.f32 %v2110, %v2122
        %v2126 = vadd.f32 %v2111, %v2122
        %v2127 = vadd.f32 %v2112, %v2122
        %v2128 = vadd.f32 %v2113, %v2122
        %v2129 = vadd.f32 %v2114, %v2122
        %v2130 = vadd.f32 %v2115, %v2122
        %v2131 = vadd.f32 %v2116, %v2122
        %v2132 = vmax.f32 %v2124, 0.0
        %v2133 = vmax.f32 %v2125, 0.0
        %v2134 = vmax.f32 %v2126, 0.0
        %v2135 = vmax.f32 %v2127, 0.0
        %v2136 = vmax.f32 %v2128, 0.0
        %v2137 = vmax.f32 %v2129, 0.0
        %v2138 = vmax.f32 %v2130, 0.0
        %v2139 = vmax.f32 %v2131, 0.0
        %2140 = vrot.lane.b32.xlu0 %v785, 72
        %v2141 = vpop.permute.xlu0 %2140
        %2142 = vrot.lane.b32.xlu0 %v786, 72
        %v2143 = vpop.permute.xlu0 %2142
        %2144 = vrot.lane.b32.xlu0 %v787, 72
        %v2145 = vpop.permute.xlu0 %2144
        %2146 = vrot.lane.b32.xlu0 %v788, 72
        %v2147 = vpop.permute.xlu0 %2146
        %2148 = vrot.lane.b32.xlu0 %v789, 72
        %v2149 = vpop.permute.xlu0 %2148
        %2150 = vrot.lane.b32.xlu0 %v790, 72
        %v2151 = vpop.permute.xlu0 %2150
        %2152 = vrot.lane.b32.xlu0 %v791, 72
        %v2153 = vpop.permute.xlu0 %2152
        %2154 = vrot.lane.b32.xlu0 %v792, 72
        %v2155 = vpop.permute.xlu0 %2154
        %2164 = vst.msk [vmem:[%s1091 + $0x1] sm:$0xff] %vm582, %v2141
        %2165 = vst.msk [vmem:[%s1091 + $0x11] sm:$0xff] %vm582, %v2143
        %2166 = vst.msk [vmem:[%s1091 + $0x21] sm:$0xff] %vm582, %v2145
        %2167 = vst.msk [vmem:[%s1091 + $0x31] sm:$0xff] %vm582, %v2147
        %2168 = vst.msk [vmem:[%s1091 + $0x41] sm:$0xff] %vm582, %v2149
        %2169 = vst.msk [vmem:[%s1091 + $0x51] sm:$0xff] %vm582, %v2151
        %2170 = vst.msk [vmem:[%s1091 + $0x61] sm:$0xff] %vm582, %v2153
        %2171 = vst.msk [vmem:[%s1091 + $0x71] sm:$0xff] %vm582, %v2155
        %v2172 = vld [vmem:[#allocation3] sm:$0xff]
        %v2173 = vld [vmem:[#allocation3 + $0x10] sm:$0xff]
        %v2174 = vld [vmem:[#allocation3 + $0x20] sm:$0xff]
        %v2175 = vld [vmem:[#allocation3 + $0x30] sm:$0xff]
        %v2176 = vld [vmem:[#allocation3 + $0x40] sm:$0xff]
        %v2177 = vld [vmem:[#allocation3 + $0x50] sm:$0xff]
        %v2178 = vld [vmem:[#allocation3 + $0x60] sm:$0xff]
        %v2179 = vld [vmem:[#allocation3 + $0x70] sm:$0xff]
        %v2180 = vpack.c.bf16 %v2173, %v2172
        %v2181 = vpack.c.bf16 %v2175, %v2174
        %v2182 = vpack.c.bf16 %v2177, %v2176
        %v2183 = vpack.c.bf16 %v2179, %v2178
        %v2184 = vld [vmem:[#allocation10] sm:$0xf]
        %v2185 = vld [vmem:[#allocation10 + $0x4] sm:$0xf]
        %v2186 = vld [vmem:[#allocation10 + $0x8] sm:$0xf]
        %v2187 = vld [vmem:[#allocation3 + $0x1] sm:$0xff]
        %v2188 = vld [vmem:[#allocation3 + $0x11] sm:$0xff]
        %v2189 = vld [vmem:[#allocation3 + $0x21] sm:$0xff]
        %v2190 = vld [vmem:[#allocation3 + $0x31] sm:$0xff]
        %v2191 = vld [vmem:[#allocation3 + $0x41] sm:$0xff]
        %v2192 = vld [vmem:[#allocation3 + $0x51] sm:$0xff]
        %v2193 = vld [vmem:[#allocation3 + $0x61] sm:$0xff]
        %v2194 = vld [vmem:[#allocation3 + $0x71] sm:$0xff]
        %v2195 = vpack.c.bf16 %v2188, %v2187
        %v2196 = vpack.c.bf16 %v2190, %v2189
        %v2197 = vpack.c.bf16 %v2192, %v2191
        %v2198 = vpack.c.bf16 %v2194, %v2193
        %s2199 = scalar_lea.vmem [#allocation10], 12
        %v2200 = vld [vmem:[%s2199] sm:$0xf]
        %v2201 = vld [vmem:[%s2199 + $0x4] sm:$0xf]
        %v2202 = vld [vmem:[%s2199 + $0x8] sm:$0xf]
        %v2206 = vunpack.c.l.b16 %v2200
        %v2207 = vunpack.c.l.b16 %v2201
        %v2208 = vunpack.c.l.b16 %v2202
        %v2209 = vpack.c.b16 %v2207, %v2206
        %v2210 = vpack.c.b16 %v2208, %v2208
        %v2213 = vsel %vm582, %v2195, 0
        %v2216 = vsel %vm582, %v2196, 0
        %v2219 = vsel %vm582, %v2197, 0
        %v2222 = vsel %vm582, %v2198, 0
        %v2225 = vsel %vm1152, %v2210, 0
        %2227 = vmatprep.subr.bf16.mxu0 0
        %2228 = vmatpush1.bf16.msra.mxu0 %v2209
        %2229 = vmatprep.subr.bf16.mxu0 0
        %2230 = vmatpush1.bf16.msra.mxu0 %v2225
        %2231 = vmatprep.subr.bf16.mxu0 0
        %2232 = vmatpush1.bf16.msra.mxu0 0
        %2233 = vmatprep.subr.bf16.mxu0 0
        %2234 = vmatpush1.bf16.msra.mxu0 0
        %2235 = vmatprep.subr.bf16.mxu0 0
        %2236 = vmatpush1.bf16.msra.mxu0 0
        %2237 = vmatprep.subr.bf16.mxu0 0
        %2238 = vmatpush1.bf16.msra.mxu0 0
        %2239 = vmatprep.subr.bf16.mxu0 0
        %2240 = vmatpush1.bf16.msra.mxu0 0
        %2241 = vmatprep.subr.bf16.mxu0 0
        %2242 = vmatpush1.bf16.msra.mxu0 0
        %2243 = vmatprep.subr.bf16.mxu0 0
        %2244 = vmatpush1.bf16.msra.mxu0 0
        %2245 = vmatprep.subr.bf16.mxu0 0
        %2246 = vmatpush1.bf16.msra.mxu0 0
        %2247 = vmatprep.subr.bf16.mxu0 0
        %2248 = vmatpush1.bf16.msra.mxu0 0
        %2249 = vmatprep.subr.bf16.mxu0 0
        %2250 = vmatpush1.bf16.msra.mxu0 0
        %2251 = vmatprep.subr.bf16.mxu0 0
        %2252 = vmatpush1.bf16.msra.mxu0 0
        %2253 = vmatprep.subr.bf16.mxu0 0
        %2254 = vmatpush1.bf16.msra.mxu0 0
        %2255 = vmatprep.subr.bf16.mxu0 0
        %2256 = vmatpush1.bf16.msra.mxu0 0
        %2257 = vmatprep.subr.bf16.mxu0 0
        %2258 = vmatpush1.bf16.msra.mxu0 0
        %2259 = vmatprep.mubr.bf16.mxu0 0
        %2260 = vmatmul.mubr.bf16.gmra.mrb[0].mxu0 %v2213
        %v2261 = vpop.f32.mrb[0].mxu0
        %v2262 = vadd.f32 0.0, %v2261
        %v2263 = vpop.f32.mrb[0].mxu0
        %v2264 = vpop.f32.mrb[0].mxu0
        %v2265 = vadd.f32 0.0, %v2264
        %v2266 = vpop.f32.mrb[0].mxu0
        %2267 = vmatprep.mubr.bf16.mxu0 0
        %2268 = vmatmul.mubr.bf16.gmra.mrb[0].mxu0 %v2216
        %v2269 = vpop.f32.mrb[0].mxu0
        %v2270 = vadd.f32 0.0, %v2269
        %v2271 = vpop.f32.mrb[0].mxu0
        %v2272 = vpop.f32.mrb[0].mxu0
        %v2273 = vadd.f32 0.0, %v2272
        %v2274 = vpop.f32.mrb[0].mxu0
        %2275 = vmatprep.mubr.bf16.mxu0 0
        %2276 = vmatmul.mubr.bf16.gmra.mrb[0].mxu0 %v2219
        %v2277 = vpop.f32.mrb[0].mxu0
        %v2278 = vadd.f32 0.0, %v2277
        %v2279 = vpop.f32.mrb[0].mxu0
        %v2280 = vpop.f32.mrb[0].mxu0
        %v2281 = vadd.f32 0.0, %v2280
        %v2282 = vpop.f32.mrb[0].mxu0
        %2283 = vmatprep.mubr.bf16.mxu0 0
        %2284 = vmatmul.mubr.bf16.gmra.mrb[0].mxu0 %v2222
        %v2285 = vpop.f32.mrb[0].mxu0
        %v2286 = vadd.f32 0.0, %v2285
        %v2287 = vpop.f32.mrb[0].mxu0
        %v2288 = vpop.f32.mrb[0].mxu0
        %v2289 = vadd.f32 0.0, %v2288
        %v2290 = vpop.f32.mrb[0].mxu0
        %2291 = vdwg.mxu0
        %v2295 = vunpack.c.l.b16 %v2184
        %v2296 = vunpack.c.l.b16 %v2185
        %v2297 = vunpack.c.l.b16 %v2186
        %v2298 = vpack.c.b16 %v2296, %v2295
        %v2299 = vpack.c.b16 %v2297, %v2297
        %v2302 = vsel %vm582, %v2180, 0
        %v2305 = vsel %vm582, %v2181, 0
        %v2308 = vsel %vm582, %v2182, 0
        %v2311 = vsel %vm582, %v2183, 0
        %v2314 = vsel %vm1152, %v2299, 0
        %2316 = vmatprep.subr.bf16.mxu0 0
        %2317 = vmatpush1.bf16.msra.mxu0 %v2298
        %2318 = vmatprep.subr.bf16.mxu0 0
        %2319 = vmatpush1.bf16.msra.mxu0 %v2314
        %2320 = vmatprep.subr.bf16.mxu0 0
        %2321 = vmatpush1.bf16.msra.mxu0 0
        %2322 = vmatprep.subr.bf16.mxu0 0
        %2323 = vmatpush1.bf16.msra.mxu0 0
        %2324 = vmatprep.subr.bf16.mxu0 0
        %2325 = vmatpush1.bf16.msra.mxu0 0
        %2326 = vmatprep.subr.bf16.mxu0 0
        %2327 = vmatpush1.bf16.msra.mxu0 0
        %2328 = vmatprep.subr.bf16.mxu0 0
        %2329 = vmatpush1.bf16.msra.mxu0 0
        %2330 = vmatprep.subr.bf16.mxu0 0
        %2331 = vmatpush1.bf16.msra.mxu0 0
        %2332 = vmatprep.subr.bf16.mxu0 0
        %2333 = vmatpush1.bf16.msra.mxu0 0
        %2334 = vmatprep.subr.bf16.mxu0 0
        %2335 = vmatpush1.bf16.msra.mxu0 0
        %2336 = vmatprep.subr.bf16.mxu0 0
        %2337 = vmatpush1.bf16.msra.mxu0 0
        %2338 = vmatprep.subr.bf16.mxu0 0
        %2339 = vmatpush1.bf16.msra.mxu0 0
        %2340 = vmatprep.subr.bf16.mxu0 0
        %2341 = vmatpush1.bf16.msra.mxu0 0
        %2342 = vmatprep.subr.bf16.mxu0 0
        %2343 = vmatpush1.bf16.msra.mxu0 0
        %2344 = vmatprep.subr.bf16.mxu0 0
        %2345 = vmatpush1.bf16.msra.mxu0 0
        %2346 = vmatprep.subr.bf16.mxu0 0
        %2347 = vmatpush1.bf16.msra.mxu0 0
        %2348 = vmatprep.mubr.bf16.mxu0 0
        %2349 = vmatmul.mubr.bf16.gmra.mrb[0].mxu0 %v2302
        %v2350 = vpop.f32.mrb[0].mxu0
        %v2351 = vadd.f32 %v2262, %v2350
        %v2352 = vpop.f32.mrb[0].mxu0
        %v2353 = vpop.f32.mrb[0].mxu0
        %v2354 = vadd.f32 %v2265, %v2353
        %v2355 = vpop.f32.mrb[0].mxu0
        %2356 = vmatprep.mubr.bf16.mxu0 0
        %2357 = vmatmul.mubr.bf16.gmra.mrb[0].mxu0 %v2305
        %v2358 = vpop.f32.mrb[0].mxu0
        %v2359 = vadd.f32 %v2270, %v2358
        %v2360 = vpop.f32.mrb[0].mxu0
        %v2361 = vpop.f32.mrb[0].mxu0
        %v2362 = vadd.f32 %v2273, %v2361
        %v2363 = vpop.f32.mrb[0].mxu0
        %2364 = vmatprep.mubr.bf16.mxu0 0
        %2365 = vmatmul.mubr.bf16.gmra.mrb[0].mxu0 %v2308
        %v2366 = vpop.f32.mrb[0].mxu0
        %v2367 = vadd.f32 %v2278, %v2366
        %v2368 = vpop.f32.mrb[0].mxu0
        %v2369 = vpop.f32.mrb[0].mxu0
        %v2370 = vadd.f32 %v2281, %v2369
        %v2371 = vpop.f32.mrb[0].mxu0
        %2372 = vmatprep.mubr.bf16.mxu0 0
        %2373 = vmatmul.mubr.bf16.gmra.mrb[0].mxu0 %v2311
        %v2374 = vpop.f32.mrb[0].mxu0
        %v2375 = vadd.f32 %v2286, %v2374
        %v2376 = vpop.f32.mrb[0].mxu0
        %v2377 = vpop.f32.mrb[0].mxu0
        %v2378 = vadd.f32 %v2289, %v2377
        %v2379 = vpop.f32.mrb[0].mxu0
        %2380 = vdwg.mxu0
        %v2381 = vld [vmem:[#allocation3 + $0x2] sm:$0xff]
        %v2382 = vld [vmem:[#allocation3 + $0x12] sm:$0xff]
        %v2383 = vld [vmem:[#allocation3 + $0x22] sm:$0xff]
        %v2384 = vld [vmem:[#allocation3 + $0x32] sm:$0xff]
        %v2385 = vld [vmem:[#allocation3 + $0x42] sm:$0xff]
        %v2386 = vld [vmem:[#allocation3 + $0x52] sm:$0xff]
        %v2387 = vld [vmem:[#allocation3 + $0x62] sm:$0xff]
        %v2388 = vld [vmem:[#allocation3 + $0x72] sm:$0xff]
        %v2389 = vpack.c.bf16 %v2382, %v2381
        %v2390 = vpack.c.bf16 %v2384, %v2383
        %v2391 = vpack.c.bf16 %v2386, %v2385
        %v2392 = vpack.c.bf16 %v2388, %v2387
        %s2393 = scalar_lea.vmem [#allocation10], 24
        %v2394 = vld [vmem:[%s2393] sm:$0xf]
        %v2395 = vld [vmem:[%s2393 + $0x4] sm:$0xf]
        %v2396 = vld [vmem:[%s2393 + $0x8] sm:$0xf]
        %v2400 = vunpack.c.l.b16 %v2394
        %v2401 = vunpack.c.l.b16 %v2395
        %v2402 = vunpack.c.l.b16 %v2396
        %v2403 = vpack.c.b16 %v2401, %v2400
        %v2404 = vpack.c.b16 %v2402, %v2402
        %v2407 = vsel %vm582, %v2389, 0
        %v2410 = vsel %vm582, %v2390, 0
        %v2413 = vsel %vm582, %v2391, 0
        %v2416 = vsel %vm582, %v2392, 0
        %v2419 = vsel %vm1152, %v2404, 0
        %2421 = vmatprep.subr.bf16.mxu0 0
        %2422 = vmatpush1.bf16.msra.mxu0 %v2403
        %2423 = vmatprep.subr.bf16.mxu0 0
        %2424 = vmatpush1.bf16.msra.mxu0 %v2419
        %2425 = vmatprep.subr.bf16.mxu0 0
        %2426 = vmatpush1.bf16.msra.mxu0 0
        %2427 = vmatprep.subr.bf16.mxu0 0
        %2428 = vmatpush1.bf16.msra.mxu0 0
        %2429 = vmatprep.subr.bf16.mxu0 0
        %2430 = vmatpush1.bf16.msra.mxu0 0
        %2431 = vmatprep.subr.bf16.mxu0 0
        %2432 = vmatpush1.bf16.msra.mxu0 0
        %2433 = vmatprep.subr.bf16.mxu0 0
        %2434 = vmatpush1.bf16.msra.mxu0 0
        %2435 = vmatprep.subr.bf16.mxu0 0
        %2436 = vmatpush1.bf16.msra.mxu0 0
        %2437 = vmatprep.subr.bf16.mxu0 0
        %2438 = vmatpush1.bf16.msra.mxu0 0
        %2439 = vmatprep.subr.bf16.mxu0 0
        %2440 = vmatpush1.bf16.msra.mxu0 0
        %2441 = vmatprep.subr.bf16.mxu0 0
        %2442 = vmatpush1.bf16.msra.mxu0 0
        %2443 = vmatprep.subr.bf16.mxu0 0
        %2444 = vmatpush1.bf16.msra.mxu0 0
        %2445 = vmatprep.subr.bf16.mxu0 0
        %2446 = vmatpush1.bf16.msra.mxu0 0
        %2447 = vmatprep.subr.bf16.mxu0 0
        %2448 = vmatpush1.bf16.msra.mxu0 0
        %2449 = vmatprep.subr.bf16.mxu0 0
        %2450 = vmatpush1.bf16.msra.mxu0 0
        %2451 = vmatprep.subr.bf16.mxu0 0
        %2452 = vmatpush1.bf16.msra.mxu0 0
        %2453 = vmatprep.mubr.bf16.mxu0 0
        %2454 = vmatmul.mubr.bf16.gmra.mrb[0].mxu0 %v2407
        %v2455 = vpop.f32.mrb[0].mxu0
        %v2456 = vadd.f32 0.0, %v2455
        %v2457 = vpop.f32.mrb[0].mxu0
        %v2458 = vpop.f32.mrb[0].mxu0
        %v2459 = vadd.f32 0.0, %v2458
        %v2460 = vpop.f32.mrb[0].mxu0
        %2461 = vmatprep.mubr.bf16.mxu0 0
        %2462 = vmatmul.mubr.bf16.gmra.mrb[0].mxu0 %v2410
        %v2463 = vpop.f32.mrb[0].mxu0
        %v2464 = vadd.f32 0.0, %v2463
        %v2465 = vpop.f32.mrb[0].mxu0
        %v2466 = vpop.f32.mrb[0].mxu0
        %v2467 = vadd.f32 0.0, %v2466
        %v2468 = vpop.f32.mrb[0].mxu0
        %2469 = vmatprep.mubr.bf16.mxu0 0
        %2470 = vmatmul.mubr.bf16.gmra.mrb[0].mxu0 %v2413
        %v2471 = vpop.f32.mrb[0].mxu0
        %v2472 = vadd.f32 0.0, %v2471
        %v2473 = vpop.f32.mrb[0].mxu0
        %v2474 = vpop.f32.mrb[0].mxu0
        %v2475 = vadd.f32 0.0, %v2474
        %v2476 = vpop.f32.mrb[0].mxu0
        %2477 = vmatprep.mubr.bf16.mxu0 0
        %2478 = vmatmul.mubr.bf16.gmra.mrb[0].mxu0 %v2416
        %v2479 = vpop.f32.mrb[0].mxu0
        %v2480 = vadd.f32 0.0, %v2479
        %v2481 = vpop.f32.mrb[0].mxu0
        %v2482 = vpop.f32.mrb[0].mxu0
        %v2483 = vadd.f32 0.0, %v2482
        %v2484 = vpop.f32.mrb[0].mxu0
        %2485 = vdwg.mxu0
        %v2486 = vadd.f32 %v2351, %v2456
        %v2487 = vadd.f32 %v2354, %v2459
        %v2488 = vadd.f32 %v2359, %v2464
        %v2489 = vadd.f32 %v2362, %v2467
        %v2490 = vadd.f32 %v2367, %v2472
        %v2491 = vadd.f32 %v2370, %v2475
        %v2492 = vadd.f32 %v2375, %v2480
        %v2493 = vadd.f32 %v2378, %v2483
        %v2494 = vld [vmem:[%s1091] sm:$0xff]
        %v2495 = vld [vmem:[%s1091 + $0x10] sm:$0xff]
        %v2496 = vld [vmem:[%s1091 + $0x20] sm:$0xff]
        %v2497 = vld [vmem:[%s1091 + $0x30] sm:$0xff]
        %v2498 = vld [vmem:[%s1091 + $0x40] sm:$0xff]
        %v2499 = vld [vmem:[%s1091 + $0x50] sm:$0xff]
        %v2500 = vld [vmem:[%s1091 + $0x60] sm:$0xff]
        %v2501 = vld [vmem:[%s1091 + $0x70] sm:$0xff]
        %v2502 = vpack.c.bf16 %v2495, %v2494
        %v2503 = vpack.c.bf16 %v2497, %v2496
        %v2504 = vpack.c.bf16 %v2499, %v2498
        %v2505 = vpack.c.bf16 %v2501, %v2500
        %s2506 = scalar_lea.vmem [#allocation10], 36
        %v2507 = vld [vmem:[%s2506] sm:$0xf]
        %v2508 = vld [vmem:[%s2506 + $0x4] sm:$0xf]
        %v2509 = vld [vmem:[%s2506 + $0x8] sm:$0xf]
        %v2513 = vunpack.c.l.b16 %v2507
        %v2514 = vunpack.c.l.b16 %v2508
        %v2515 = vunpack.c.l.b16 %v2509
        %v2516 = vpack.c.b16 %v2514, %v2513
        %v2517 = vpack.c.b16 %v2515, %v2515
        %v2520 = vsel %vm582, %v2502, 0
        %v2523 = vsel %vm582, %v2503, 0
        %v2526 = vsel %vm582, %v2504, 0
        %v2529 = vsel %vm582, %v2505, 0
        %v2532 = vsel %vm1152, %v2517, 0
        %2534 = vmatprep.subr.bf16.mxu0 0
        %2535 = vmatpush1.bf16.msra.mxu0 %v2516
        %2536 = vmatprep.subr.bf16.mxu0 0
        %2537 = vmatpush1.bf16.msra.mxu0 %v2532
        %2538 = vmatprep.subr.bf16.mxu0 0
        %2539 = vmatpush1.bf16.msra.mxu0 0
        %2540 = vmatprep.subr.bf16.mxu0 0
        %2541 = vmatpush1.bf16.msra.mxu0 0
        %2542 = vmatprep.subr.bf16.mxu0 0
        %2543 = vmatpush1.bf16.msra.mxu0 0
        %2544 = vmatprep.subr.bf16.mxu0 0
        %2545 = vmatpush1.bf16.msra.mxu0 0
        %2546 = vmatprep.subr.bf16.mxu0 0
        %2547 = vmatpush1.bf16.msra.mxu0 0
        %2548 = vmatprep.subr.bf16.mxu0 0
        %2549 = vmatpush1.bf16.msra.mxu0 0
        %2550 = vmatprep.subr.bf16.mxu0 0
        %2551 = vmatpush1.bf16.msra.mxu0 0
        %2552 = vmatprep.subr.bf16.mxu0 0
        %2553 = vmatpush1.bf16.msra.mxu0 0
        %2554 = vmatprep.subr.bf16.mxu0 0
        %2555 = vmatpush1.bf16.msra.mxu0 0
        %2556 = vmatprep.subr.bf16.mxu0 0
        %2557 = vmatpush1.bf16.msra.mxu0 0
        %2558 = vmatprep.subr.bf16.mxu0 0
        %2559 = vmatpush1.bf16.msra.mxu0 0
        %2560 = vmatprep.subr.bf16.mxu0 0
        %2561 = vmatpush1.bf16.msra.mxu0 0
        %2562 = vmatprep.subr.bf16.mxu0 0
        %2563 = vmatpush1.bf16.msra.mxu0 0
        %2564 = vmatprep.subr.bf16.mxu0 0
        %2565 = vmatpush1.bf16.msra.mxu0 0
        %2566 = vmatprep.mubr.bf16.mxu0 0
        %2567 = vmatmul.mubr.bf16.gmra.mrb[0].mxu0 %v2520
        %v2568 = vpop.f32.mrb[0].mxu0
        %v2569 = vadd.f32 0.0, %v2568
        %v2570 = vpop.f32.mrb[0].mxu0
        %v2571 = vpop.f32.mrb[0].mxu0
        %v2572 = vadd.f32 0.0, %v2571
        %v2573 = vpop.f32.mrb[0].mxu0
        %2574 = vmatprep.mubr.bf16.mxu0 0
        %2575 = vmatmul.mubr.bf16.gmra.mrb[0].mxu0 %v2523
        %v2576 = vpop.f32.mrb[0].mxu0
        %v2577 = vadd.f32 0.0, %v2576
        %v2578 = vpop.f32.mrb[0].mxu0
        %v2579 = vpop.f32.mrb[0].mxu0
        %v2580 = vadd.f32 0.0, %v2579
        %v2581 = vpop.f32.mrb[0].mxu0
        %2582 = vmatprep.mubr.bf16.mxu0 0
        %2583 = vmatmul.mubr.bf16.gmra.mrb[0].mxu0 %v2526
        %v2584 = vpop.f32.mrb[0].mxu0
        %v2585 = vadd.f32 0.0, %v2584
        %v2586 = vpop.f32.mrb[0].mxu0
        %v2587 = vpop.f32.mrb[0].mxu0
        %v2588 = vadd.f32 0.0, %v2587
        %v2589 = vpop.f32.mrb[0].mxu0
        %2590 = vmatprep.mubr.bf16.mxu0 0
        %2591 = vmatmul.mubr.bf16.gmra.mrb[0].mxu0 %v2529
        %v2592 = vpop.f32.mrb[0].mxu0
        %v2593 = vadd.f32 0.0, %v2592
        %v2594 = vpop.f32.mrb[0].mxu0
        %v2595 = vpop.f32.mrb[0].mxu0
        %v2596 = vadd.f32 0.0, %v2595
        %v2597 = vpop.f32.mrb[0].mxu0
        %2598 = vdwg.mxu0
        %v2599 = vadd.f32 %v2486, %v2569
        %v2600 = vadd.f32 %v2487, %v2572
        %v2601 = vadd.f32 %v2488, %v2577
        %v2602 = vadd.f32 %v2489, %v2580
        %v2603 = vadd.f32 %v2490, %v2585
        %v2604 = vadd.f32 %v2491, %v2588
        %v2605 = vadd.f32 %v2492, %v2593
        %v2606 = vadd.f32 %v2493, %v2596
        %v2607 = vld [vmem:[%s1091 + $0x1] sm:$0xff]
        %v2608 = vld [vmem:[%s1091 + $0x11] sm:$0xff]
        %v2609 = vld [vmem:[%s1091 + $0x21] sm:$0xff]
        %v2610 = vld [vmem:[%s1091 + $0x31] sm:$0xff]
        %v2611 = vld [vmem:[%s1091 + $0x41] sm:$0xff]
        %v2612 = vld [vmem:[%s1091 + $0x51] sm:$0xff]
        %v2613 = vld [vmem:[%s1091 + $0x61] sm:$0xff]
        %v2614 = vld [vmem:[%s1091 + $0x71] sm:$0xff]
        %v2615 = vpack.c.bf16 %v2608, %v2607
        %v2616 = vpack.c.bf16 %v2610, %v2609
        %v2617 = vpack.c.bf16 %v2612, %v2611
        %v2618 = vpack.c.bf16 %v2614, %v2613
        %s2619 = scalar_lea.vmem [#allocation10], 48
        %v2620 = vld [vmem:[%s2619] sm:$0xf]
        %v2621 = vld [vmem:[%s2619 + $0x4] sm:$0xf]
        %v2622 = vld [vmem:[%s2619 + $0x8] sm:$0xf]
        %v2626 = vunpack.c.l.b16 %v2620
        %v2627 = vunpack.c.l.b16 %v2621
        %v2628 = vunpack.c.l.b16 %v2622
        %v2629 = vpack.c.b16 %v2627, %v2626
        %v2630 = vpack.c.b16 %v2628, %v2628
        %v2633 = vsel %vm582, %v2615, 0
        %v2636 = vsel %vm582, %v2616, 0
        %v2639 = vsel %vm582, %v2617, 0
        %v2642 = vsel %vm582, %v2618, 0
        %v2645 = vsel %vm1152, %v2630, 0
        %2647 = vmatprep.subr.bf16.mxu0 0
        %2648 = vmatpush1.bf16.msra.mxu0 %v2629
        %2649 = vmatprep.subr.bf16.mxu0 0
        %2650 = vmatpush1.bf16.msra.mxu0 %v2645
        %2651 = vmatprep.subr.bf16.mxu0 0
        %2652 = vmatpush1.bf16.msra.mxu0 0
        %2653 = vmatprep.subr.bf16.mxu0 0
        %2654 = vmatpush1.bf16.msra.mxu0 0
        %2655 = vmatprep.subr.bf16.mxu0 0
        %2656 = vmatpush1.bf16.msra.mxu0 0
        %2657 = vmatprep.subr.bf16.mxu0 0
        %2658 = vmatpush1.bf16.msra.mxu0 0
        %2659 = vmatprep.subr.bf16.mxu0 0
        %2660 = vmatpush1.bf16.msra.mxu0 0
        %2661 = vmatprep.subr.bf16.mxu0 0
        %2662 = vmatpush1.bf16.msra.mxu0 0
        %2663 = vmatprep.subr.bf16.mxu0 0
        %2664 = vmatpush1.bf16.msra.mxu0 0
        %2665 = vmatprep.subr.bf16.mxu0 0
        %2666 = vmatpush1.bf16.msra.mxu0 0
        %2667 = vmatprep.subr.bf16.mxu0 0
        %2668 = vmatpush1.bf16.msra.mxu0 0
        %2669 = vmatprep.subr.bf16.mxu0 0
        %2670 = vmatpush1.bf16.msra.mxu0 0
        %2671 = vmatprep.subr.bf16.mxu0 0
        %2672 = vmatpush1.bf16.msra.mxu0 0
        %2673 = vmatprep.subr.bf16.mxu0 0
        %2674 = vmatpush1.bf16.msra.mxu0 0
        %2675 = vmatprep.subr.bf16.mxu0 0
        %2676 = vmatpush1.bf16.msra.mxu0 0
        %2677 = vmatprep.subr.bf16.mxu0 0
        %2678 = vmatpush1.bf16.msra.mxu0 0
        %2679 = vmatprep.mubr.bf16.mxu0 0
        %2680 = vmatmul.mubr.bf16.gmra.mrb[0].mxu0 %v2633
        %v2681 = vpop.f32.mrb[0].mxu0
        %v2682 = vadd.f32 0.0, %v2681
        %v2683 = vpop.f32.mrb[0].mxu0
        %v2684 = vpop.f32.mrb[0].mxu0
        %v2685 = vadd.f32 0.0, %v2684
        %v2686 = vpop.f32.mrb[0].mxu0
        %2687 = vmatprep.mubr.bf16.mxu0 0
        %2688 = vmatmul.mubr.bf16.gmra.mrb[0].mxu0 %v2636
        %v2689 = vpop.f32.mrb[0].mxu0
        %v2690 = vadd.f32 0.0, %v2689
        %v2691 = vpop.f32.mrb[0].mxu0
        %v2692 = vpop.f32.mrb[0].mxu0
        %v2693 = vadd.f32 0.0, %v2692
        %v2694 = vpop.f32.mrb[0].mxu0
        %2695 = vmatprep.mubr.bf16.mxu0 0
        %2696 = vmatmul.mubr.bf16.gmra.mrb[0].mxu0 %v2639
        %v2697 = vpop.f32.mrb[0].mxu0
        %v2698 = vadd.f32 0.0, %v2697
        %v2699 = vpop.f32.mrb[0].mxu0
        %v2700 = vpop.f32.mrb[0].mxu0
        %v2701 = vadd.f32 0.0, %v2700
        %v2702 = vpop.f32.mrb[0].mxu0
        %2703 = vmatprep.mubr.bf16.mxu0 0
        %2704 = vmatmul.mubr.bf16.gmra.mrb[0].mxu0 %v2642
        %v2705 = vpop.f32.mrb[0].mxu0
        %v2706 = vadd.f32 0.0, %v2705
        %v2707 = vpop.f32.mrb[0].mxu0
        %v2708 = vpop.f32.mrb[0].mxu0
        %v2709 = vadd.f32 0.0, %v2708
        %v2710 = vpop.f32.mrb[0].mxu0
        %2711 = vdwg.mxu0
        %v2712 = vadd.f32 %v2599, %v2682
        %v2713 = vadd.f32 %v2600, %v2685
        %v2714 = vadd.f32 %v2601, %v2690
        %v2715 = vadd.f32 %v2602, %v2693
        %v2716 = vadd.f32 %v2603, %v2698
        %v2717 = vadd.f32 %v2604, %v2701
        %v2718 = vadd.f32 %v2605, %v2706
        %v2719 = vadd.f32 %v2606, %v2709
        %v2720 = vld [vmem:[%s1091 + $0x2] sm:$0xff]
        %v2721 = vld [vmem:[%s1091 + $0x12] sm:$0xff]
        %v2722 = vld [vmem:[%s1091 + $0x22] sm:$0xff]
        %v2723 = vld [vmem:[%s1091 + $0x32] sm:$0xff]
        %v2724 = vld [vmem:[%s1091 + $0x42] sm:$0xff]
        %v2725 = vld [vmem:[%s1091 + $0x52] sm:$0xff]
        %v2726 = vld [vmem:[%s1091 + $0x62] sm:$0xff]
        %v2727 = vld [vmem:[%s1091 + $0x72] sm:$0xff]
        %v2728 = vpack.c.bf16 %v2721, %v2720
        %v2729 = vpack.c.bf16 %v2723, %v2722
        %v2730 = vpack.c.bf16 %v2725, %v2724
        %v2731 = vpack.c.bf16 %v2727, %v2726
        %s2732 = scalar_lea.vmem [#allocation10], 60
        %v2733 = vld [vmem:[%s2732] sm:$0xf]
        %v2734 = vld [vmem:[%s2732 + $0x4] sm:$0xf]
        %v2735 = vld [vmem:[%s2732 + $0x8] sm:$0xf]
        %v2739 = vunpack.c.l.b16 %v2733
        %v2740 = vunpack.c.l.b16 %v2734
        %v2741 = vunpack.c.l.b16 %v2735
        %v2742 = vpack.c.b16 %v2740, %v2739
        %v2743 = vpack.c.b16 %v2741, %v2741
        %v2746 = vsel %vm582, %v2728, 0
        %v2749 = vsel %vm582, %v2729, 0
        %v2752 = vsel %vm582, %v2730, 0
        %v2755 = vsel %vm582, %v2731, 0
        %v2758 = vsel %vm1152, %v2743, 0
        %2760 = vmatprep.subr.bf16.mxu0 0
        %2761 = vmatpush1.bf16.msra.mxu0 %v2742
        %2762 = vmatprep.subr.bf16.mxu0 0
        %2763 = vmatpush1.bf16.msra.mxu0 %v2758
        %2764 = vmatprep.subr.bf16.mxu0 0
        %2765 = vmatpush1.bf16.msra.mxu0 0
        %2766 = vmatprep.subr.bf16.mxu0 0
        %2767 = vmatpush1.bf16.msra.mxu0 0
        %2768 = vmatprep.subr.bf16.mxu0 0
        %2769 = vmatpush1.bf16.msra.mxu0 0
        %2770 = vmatprep.subr.bf16.mxu0 0
        %2771 = vmatpush1.bf16.msra.mxu0 0
        %2772 = vmatprep.subr.bf16.mxu0 0
        %2773 = vmatpush1.bf16.msra.mxu0 0
        %2774 = vmatprep.subr.bf16.mxu0 0
        %2775 = vmatpush1.bf16.msra.mxu0 0
        %2776 = vmatprep.subr.bf16.mxu0 0
        %2777 = vmatpush1.bf16.msra.mxu0 0
        %2778 = vmatprep.subr.bf16.mxu0 0
        %2779 = vmatpush1.bf16.msra.mxu0 0
        %2780 = vmatprep.subr.bf16.mxu0 0
        %2781 = vmatpush1.bf16.msra.mxu0 0
        %2782 = vmatprep.subr.bf16.mxu0 0
        %2783 = vmatpush1.bf16.msra.mxu0 0
        %2784 = vmatprep.subr.bf16.mxu0 0
        %2785 = vmatpush1.bf16.msra.mxu0 0
        %2786 = vmatprep.subr.bf16.mxu0 0
        %2787 = vmatpush1.bf16.msra.mxu0 0
        %2788 = vmatprep.subr.bf16.mxu0 0
        %2789 = vmatpush1.bf16.msra.mxu0 0
        %2790 = vmatprep.subr.bf16.mxu0 0
        %2791 = vmatpush1.bf16.msra.mxu0 0
        %2792 = vmatprep.mubr.bf16.mxu0 0
        %2793 = vmatmul.mubr.bf16.gmra.mrb[0].mxu0 %v2746
        %v2794 = vpop.f32.mrb[0].mxu0
        %v2795 = vadd.f32 0.0, %v2794
        %v2796 = vpop.f32.mrb[0].mxu0
        %v2797 = vpop.f32.mrb[0].mxu0
        %v2798 = vadd.f32 0.0, %v2797
        %v2799 = vpop.f32.mrb[0].mxu0
        %2800 = vmatprep.mubr.bf16.mxu0 0
        %2801 = vmatmul.mubr.bf16.gmra.mrb[0].mxu0 %v2749
        %v2802 = vpop.f32.mrb[0].mxu0
        %v2803 = vadd.f32 0.0, %v2802
        %v2804 = vpop.f32.mrb[0].mxu0
        %v2805 = vpop.f32.mrb[0].mxu0
        %v2806 = vadd.f32 0.0, %v2805
        %v2807 = vpop.f32.mrb[0].mxu0
        %2808 = vmatprep.mubr.bf16.mxu0 0
        %2809 = vmatmul.mubr.bf16.gmra.mrb[0].mxu0 %v2752
        %v2810 = vpop.f32.mrb[0].mxu0
        %v2811 = vadd.f32 0.0, %v2810
        %v2812 = vpop.f32.mrb[0].mxu0
        %v2813 = vpop.f32.mrb[0].mxu0
        %v2814 = vadd.f32 0.0, %v2813
        %v2815 = vpop.f32.mrb[0].mxu0
        %2816 = vmatprep.mubr.bf16.mxu0 0
        %2817 = vmatmul.mubr.bf16.gmra.mrb[0].mxu0 %v2755
        %v2818 = vpop.f32.mrb[0].mxu0
        %v2819 = vadd.f32 0.0, %v2818
        %v2820 = vpop.f32.mrb[0].mxu0
        %v2821 = vpop.f32.mrb[0].mxu0
        %v2822 = vadd.f32 0.0, %v2821
        %v2823 = vpop.f32.mrb[0].mxu0
        %2824 = vdwg.mxu0
        %v2825 = vadd.f32 %v2712, %v2795
        %v2826 = vadd.f32 %v2713, %v2798
        %v2827 = vadd.f32 %v2714, %v2803
        %v2828 = vadd.f32 %v2715, %v2806
        %v2829 = vadd.f32 %v2716, %v2811
        %v2830 = vadd.f32 %v2717, %v2814
        %v2831 = vadd.f32 %v2718, %v2819
        %v2832 = vadd.f32 %v2719, %v2822
        %v2833 = vld [vmem:[%s1762] sm:$0xff]
        %v2834 = vld [vmem:[%s1762 + $0x10] sm:$0xff]
        %v2835 = vld [vmem:[%s1762 + $0x20] sm:$0xff]
        %v2836 = vld [vmem:[%s1762 + $0x30] sm:$0xff]
        %v2837 = vld [vmem:[%s1762 + $0x40] sm:$0xff]
        %v2838 = vld [vmem:[%s1762 + $0x50] sm:$0xff]
        %v2839 = vld [vmem:[%s1762 + $0x60] sm:$0xff]
        %v2840 = vld [vmem:[%s1762 + $0x70] sm:$0xff]
        %v2841 = vpack.c.bf16 %v2834, %v2833
        %v2842 = vpack.c.bf16 %v2836, %v2835
        %v2843 = vpack.c.bf16 %v2838, %v2837
        %v2844 = vpack.c.bf16 %v2840, %v2839
        %s2845 = scalar_lea.vmem [#allocation10], 72
        %v2846 = vld [vmem:[%s2845] sm:$0xf]
        %v2847 = vld [vmem:[%s2845 + $0x4] sm:$0xf]
        %v2848 = vld [vmem:[%s2845 + $0x8] sm:$0xf]
        %v2852 = vunpack.c.l.b16 %v2846
        %v2853 = vunpack.c.l.b16 %v2847
        %v2854 = vunpack.c.l.b16 %v2848
        %v2855 = vpack.c.b16 %v2853, %v2852
        %v2856 = vpack.c.b16 %v2854, %v2854
        %v2859 = vsel %vm582, %v2841, 0
        %v2862 = vsel %vm582, %v2842, 0
        %v2865 = vsel %vm582, %v2843, 0
        %v2868 = vsel %vm582, %v2844, 0
        %v2871 = vsel %vm1152, %v2856, 0
        %2873 = vmatprep.subr.bf16.mxu0 0
        %2874 = vmatpush1.bf16.msra.mxu0 %v2855
        %2875 = vmatprep.subr.bf16.mxu0 0
        %2876 = vmatpush1.bf16.msra.mxu0 %v2871
        %2877 = vmatprep.subr.bf16.mxu0 0
        %2878 = vmatpush1.bf16.msra.mxu0 0
        %2879 = vmatprep.subr.bf16.mxu0 0
        %2880 = vmatpush1.bf16.msra.mxu0 0
        %2881 = vmatprep.subr.bf16.mxu0 0
        %2882 = vmatpush1.bf16.msra.mxu0 0
        %2883 = vmatprep.subr.bf16.mxu0 0
        %2884 = vmatpush1.bf16.msra.mxu0 0
        %2885 = vmatprep.subr.bf16.mxu0 0
        %2886 = vmatpush1.bf16.msra.mxu0 0
        %2887 = vmatprep.subr.bf16.mxu0 0
        %2888 = vmatpush1.bf16.msra.mxu0 0
        %2889 = vmatprep.subr.bf16.mxu0 0
        %2890 = vmatpush1.bf16.msra.mxu0 0
        %2891 = vmatprep.subr.bf16.mxu0 0
        %2892 = vmatpush1.bf16.msra.mxu0 0
        %2893 = vmatprep.subr.bf16.mxu0 0
        %2894 = vmatpush1.bf16.msra.mxu0 0
        %2895 = vmatprep.subr.bf16.mxu0 0
        %2896 = vmatpush1.bf16.msra.mxu0 0
        %2897 = vmatprep.subr.bf16.mxu0 0
        %2898 = vmatpush1.bf16.msra.mxu0 0
        %2899 = vmatprep.subr.bf16.mxu0 0
        %2900 = vmatpush1.bf16.msra.mxu0 0
        %2901 = vmatprep.subr.bf16.mxu0 0
        %2902 = vmatpush1.bf16.msra.mxu0 0
        %2903 = vmatprep.subr.bf16.mxu0 0
        %2904 = vmatpush1.bf16.msra.mxu0 0
        %2905 = vmatprep.mubr.bf16.mxu0 0
        %2906 = vmatmul.mubr.bf16.gmra.mrb[0].mxu0 %v2859
        %v2907 = vpop.f32.mrb[0].mxu0
        %v2908 = vadd.f32 0.0, %v2907
        %v2909 = vpop.f32.mrb[0].mxu0
        %v2910 = vpop.f32.mrb[0].mxu0
        %v2911 = vadd.f32 0.0, %v2910
        %v2912 = vpop.f32.mrb[0].mxu0
        %2913 = vmatprep.mubr.bf16.mxu0 0
        %2914 = vmatmul.mubr.bf16.gmra.mrb[0].mxu0 %v2862
        %v2915 = vpop.f32.mrb[0].mxu0
        %v2916 = vadd.f32 0.0, %v2915
        %v2917 = vpop.f32.mrb[0].mxu0
        %v2918 = vpop.f32.mrb[0].mxu0
        %v2919 = vadd.f32 0.0, %v2918
        %v2920 = vpop.f32.mrb[0].mxu0
        %2921 = vmatprep.mubr.bf16.mxu0 0
        %2922 = vmatmul.mubr.bf16.gmra.mrb[0].mxu0 %v2865
        %v2923 = vpop.f32.mrb[0].mxu0
        %v2924 = vadd.f32 0.0, %v2923
        %v2925 = vpop.f32.mrb[0].mxu0
        %v2926 = vpop.f32.mrb[0].mxu0
        %v2927 = vadd.f32 0.0, %v2926
        %v2928 = vpop.f32.mrb[0].mxu0
        %2929 = vmatprep.mubr.bf16.mxu0 0
        %2930 = vmatmul.mubr.bf16.gmra.mrb[0].mxu0 %v2868
        %v2931 = vpop.f32.mrb[0].mxu0
        %v2932 = vadd.f32 0.0, %v2931
        %v2933 = vpop.f32.mrb[0].mxu0
        %v2934 = vpop.f32.mrb[0].mxu0
        %v2935 = vadd.f32 0.0, %v2934
        %v2936 = vpop.f32.mrb[0].mxu0
        %2937 = vdwg.mxu0
        %v2938 = vadd.f32 %v2825, %v2908
        %v2939 = vadd.f32 %v2826, %v2911
        %v2940 = vadd.f32 %v2827, %v2916
        %v2941 = vadd.f32 %v2828, %v2919
        %v2942 = vadd.f32 %v2829, %v2924
        %v2943 = vadd.f32 %v2830, %v2927
        %v2944 = vadd.f32 %v2831, %v2932
        %v2945 = vadd.f32 %v2832, %v2935
        %v2946 = vld [vmem:[%s1762 + $0x1] sm:$0xff]
        %v2947 = vld [vmem:[%s1762 + $0x11] sm:$0xff]
        %v2948 = vld [vmem:[%s1762 + $0x21] sm:$0xff]
        %v2949 = vld [vmem:[%s1762 + $0x31] sm:$0xff]
        %v2950 = vld [vmem:[%s1762 + $0x41] sm:$0xff]
        %v2951 = vld [vmem:[%s1762 + $0x51] sm:$0xff]
        %v2952 = vld [vmem:[%s1762 + $0x61] sm:$0xff]
        %v2953 = vld [vmem:[%s1762 + $0x71] sm:$0xff]
        %v2954 = vpack.c.bf16 %v2947, %v2946
        %v2955 = vpack.c.bf16 %v2949, %v2948
        %v2956 = vpack.c.bf16 %v2951, %v2950
        %v2957 = vpack.c.bf16 %v2953, %v2952
        %s2958 = scalar_lea.vmem [#allocation10], 84
        %v2959 = vld [vmem:[%s2958] sm:$0xf]
        %v2960 = vld [vmem:[%s2958 + $0x4] sm:$0xf]
        %v2961 = vld [vmem:[%s2958 + $0x8] sm:$0xf]
        %v2965 = vunpack.c.l.b16 %v2959
        %v2966 = vunpack.c.l.b16 %v2960
        %v2967 = vunpack.c.l.b16 %v2961
        %v2968 = vpack.c.b16 %v2966, %v2965
        %v2969 = vpack.c.b16 %v2967, %v2967
        %v2972 = vsel %vm582, %v2954, 0
        %v2975 = vsel %vm582, %v2955, 0
        %v2978 = vsel %vm582, %v2956, 0
        %v2981 = vsel %vm582, %v2957, 0
        %v2984 = vsel %vm1152, %v2969, 0
        %2986 = vmatprep.subr.bf16.mxu0 0
        %2987 = vmatpush1.bf16.msra.mxu0 %v2968
        %2988 = vmatprep.subr.bf16.mxu0 0
        %2989 = vmatpush1.bf16.msra.mxu0 %v2984
        %2990 = vmatprep.subr.bf16.mxu0 0
        %2991 = vmatpush1.bf16.msra.mxu0 0
        %2992 = vmatprep.subr.bf16.mxu0 0
        %2993 = vmatpush1.bf16.msra.mxu0 0
        %2994 = vmatprep.subr.bf16.mxu0 0
        %2995 = vmatpush1.bf16.msra.mxu0 0
        %2996 = vmatprep.subr.bf16.mxu0 0
        %2997 = vmatpush1.bf16.msra.mxu0 0
        %2998 = vmatprep.subr.bf16.mxu0 0
        %2999 = vmatpush1.bf16.msra.mxu0 0
        %3000 = vmatprep.subr.bf16.mxu0 0
        %3001 = vmatpush1.bf16.msra.mxu0 0
        %3002 = vmatprep.subr.bf16.mxu0 0
        %3003 = vmatpush1.bf16.msra.mxu0 0
        %3004 = vmatprep.subr.bf16.mxu0 0
        %3005 = vmatpush1.bf16.msra.mxu0 0
        %3006 = vmatprep.subr.bf16.mxu0 0
        %3007 = vmatpush1.bf16.msra.mxu0 0
        %3008 = vmatprep.subr.bf16.mxu0 0
        %3009 = vmatpush1.bf16.msra.mxu0 0
        %3010 = vmatprep.subr.bf16.mxu0 0
        %3011 = vmatpush1.bf16.msra.mxu0 0
        %3012 = vmatprep.subr.bf16.mxu0 0
        %3013 = vmatpush1.bf16.msra.mxu0 0
        %3014 = vmatprep.subr.bf16.mxu0 0
        %3015 = vmatpush1.bf16.msra.mxu0 0
        %3016 = vmatprep.subr.bf16.mxu0 0
        %3017 = vmatpush1.bf16.msra.mxu0 0
        %3018 = vmatprep.mubr.bf16.mxu0 0
        %3019 = vmatmul.mubr.bf16.gmra.mrb[0].mxu0 %v2972
        %v3020 = vpop.f32.mrb[0].mxu0
        %v3021 = vadd.f32 0.0, %v3020
        %v3022 = vpop.f32.mrb[0].mxu0
        %v3023 = vpop.f32.mrb[0].mxu0
        %v3024 = vadd.f32 0.0, %v3023
        %v3025 = vpop.f32.mrb[0].mxu0
        %3026 = vmatprep.mubr.bf16.mxu0 0
        %3027 = vmatmul.mubr.bf16.gmra.mrb[0].mxu0 %v2975
        %v3028 = vpop.f32.mrb[0].mxu0
        %v3029 = vadd.f32 0.0, %v3028
        %v3030 = vpop.f32.mrb[0].mxu0
        %v3031 = vpop.f32.mrb[0].mxu0
        %v3032 = vadd.f32 0.0, %v3031
        %v3033 = vpop.f32.mrb[0].mxu0
        %3034 = vmatprep.mubr.bf16.mxu0 0
        %3035 = vmatmul.mubr.bf16.gmra.mrb[0].mxu0 %v2978
        %v3036 = vpop.f32.mrb[0].mxu0
        %v3037 = vadd.f32 0.0, %v3036
        %v3038 = vpop.f32.mrb[0].mxu0
        %v3039 = vpop.f32.mrb[0].mxu0
        %v3040 = vadd.f32 0.0, %v3039
        %v3041 = vpop.f32.mrb[0].mxu0
        %3042 = vmatprep.mubr.bf16.mxu0 0
        %3043 = vmatmul.mubr.bf16.gmra.mrb[0].mxu0 %v2981
        %v3044 = vpop.f32.mrb[0].mxu0
        %v3045 = vadd.f32 0.0, %v3044
        %v3046 = vpop.f32.mrb[0].mxu0
        %v3047 = vpop.f32.mrb[0].mxu0
        %v3048 = vadd.f32 0.0, %v3047
        %v3049 = vpop.f32.mrb[0].mxu0
        %3050 = vdwg.mxu0
        %v3051 = vadd.f32 %v2938, %v3021
        %v3052 = vadd.f32 %v2939, %v3024
        %v3053 = vadd.f32 %v2940, %v3029
        %v3054 = vadd.f32 %v2941, %v3032
        %v3055 = vadd.f32 %v2942, %v3037
        %v3056 = vadd.f32 %v2943, %v3040
        %v3057 = vadd.f32 %v2944, %v3045
        %v3058 = vadd.f32 %v2945, %v3048
        %v3059 = vld [vmem:[%s1762 + $0x2] sm:$0xff]
        %v3060 = vld [vmem:[%s1762 + $0x12] sm:$0xff]
        %v3061 = vld [vmem:[%s1762 + $0x22] sm:$0xff]
        %v3062 = vld [vmem:[%s1762 + $0x32] sm:$0xff]
        %v3063 = vld [vmem:[%s1762 + $0x42] sm:$0xff]
        %v3064 = vld [vmem:[%s1762 + $0x52] sm:$0xff]
        %v3065 = vld [vmem:[%s1762 + $0x62] sm:$0xff]
        %v3066 = vld [vmem:[%s1762 + $0x72] sm:$0xff]
        %v3067 = vpack.c.bf16 %v3060, %v3059
        %v3068 = vpack.c.bf16 %v3062, %v3061
        %v3069 = vpack.c.bf16 %v3064, %v3063
        %v3070 = vpack.c.bf16 %v3066, %v3065
        %s3071 = scalar_lea.vmem [#allocation10], 96
        %v3072 = vld [vmem:[%s3071] sm:$0xf]
        %v3073 = vld [vmem:[%s3071 + $0x4] sm:$0xf]
        %v3074 = vld [vmem:[%s3071 + $0x8] sm:$0xf]
        %v3078 = vunpack.c.l.b16 %v3072
        %v3079 = vunpack.c.l.b16 %v3073
        %v3080 = vunpack.c.l.b16 %v3074
        %v3081 = vpack.c.b16 %v3079, %v3078
        %v3082 = vpack.c.b16 %v3080, %v3080
        %v3085 = vsel %vm582, %v3067, 0
        %v3088 = vsel %vm582, %v3068, 0
        %v3091 = vsel %vm582, %v3069, 0
        %v3094 = vsel %vm582, %v3070, 0
        %v3097 = vsel %vm1152, %v3082, 0
        %3099 = vmatprep.subr.bf16.mxu0 0
        %3100 = vmatpush1.bf16.msra.mxu0 %v3081
        %3101 = vmatprep.subr.bf16.mxu0 0
        %3102 = vmatpush1.bf16.msra.mxu0 %v3097
        %3103 = vmatprep.subr.bf16.mxu0 0
        %3104 = vmatpush1.bf16.msra.mxu0 0
        %3105 = vmatprep.subr.bf16.mxu0 0
        %3106 = vmatpush1.bf16.msra.mxu0 0
        %3107 = vmatprep.subr.bf16.mxu0 0
        %3108 = vmatpush1.bf16.msra.mxu0 0
        %3109 = vmatprep.subr.bf16.mxu0 0
        %3110 = vmatpush1.bf16.msra.mxu0 0
        %3111 = vmatprep.subr.bf16.mxu0 0
        %3112 = vmatpush1.bf16.msra.mxu0 0
        %3113 = vmatprep.subr.bf16.mxu0 0
        %3114 = vmatpush1.bf16.msra.mxu0 0
        %3115 = vmatprep.subr.bf16.mxu0 0
        %3116 = vmatpush1.bf16.msra.mxu0 0
        %3117 = vmatprep.subr.bf16.mxu0 0
        %3118 = vmatpush1.bf16.msra.mxu0 0
        %3119 = vmatprep.subr.bf16.mxu0 0
        %3120 = vmatpush1.bf16.msra.mxu0 0
        %3121 = vmatprep.subr.bf16.mxu0 0
        %3122 = vmatpush1.bf16.msra.mxu0 0
        %3123 = vmatprep.subr.bf16.mxu0 0
        %3124 = vmatpush1.bf16.msra.mxu0 0
        %3125 = vmatprep.subr.bf16.mxu0 0
        %3126 = vmatpush1.bf16.msra.mxu0 0
        %3127 = vmatprep.subr.bf16.mxu0 0
        %3128 = vmatpush1.bf16.msra.mxu0 0
        %3129 = vmatprep.subr.bf16.mxu0 0
        %3130 = vmatpush1.bf16.msra.mxu0 0
        %3131 = vmatprep.mubr.bf16.mxu0 0
        %3132 = vmatmul.mubr.bf16.gmra.mrb[0].mxu0 %v3085
        %v3133 = vpop.f32.mrb[0].mxu0
        %v3134 = vadd.f32 0.0, %v3133
        %v3135 = vpop.f32.mrb[0].mxu0
        %v3136 = vpop.f32.mrb[0].mxu0
        %v3137 = vadd.f32 0.0, %v3136
        %v3138 = vpop.f32.mrb[0].mxu0
        %3139 = vmatprep.mubr.bf16.mxu0 0
        %3140 = vmatmul.mubr.bf16.gmra.mrb[0].mxu0 %v3088
        %v3141 = vpop.f32.mrb[0].mxu0
        %v3142 = vadd.f32 0.0, %v3141
        %v3143 = vpop.f32.mrb[0].mxu0
        %v3144 = vpop.f32.mrb[0].mxu0
        %v3145 = vadd.f32 0.0, %v3144
        %v3146 = vpop.f32.mrb[0].mxu0
        %3147 = vmatprep.mubr.bf16.mxu0 0
        %3148 = vmatmul.mubr.bf16.gmra.mrb[0].mxu0 %v3091
        %v3149 = vpop.f32.mrb[0].mxu0
        %v3150 = vadd.f32 0.0, %v3149
        %v3151 = vpop.f32.mrb[0].mxu0
        %v3152 = vpop.f32.mrb[0].mxu0
        %v3153 = vadd.f32 0.0, %v3152
        %v3154 = vpop.f32.mrb[0].mxu0
        %3155 = vmatprep.mubr.bf16.mxu0 0
        %3156 = vmatmul.mubr.bf16.gmra.mrb[0].mxu0 %v3094
        %v3157 = vpop.f32.mrb[0].mxu0
        %v3158 = vadd.f32 0.0, %v3157
        %v3159 = vpop.f32.mrb[0].mxu0
        %v3160 = vpop.f32.mrb[0].mxu0
        %v3161 = vadd.f32 0.0, %v3160
        %v3162 = vpop.f32.mrb[0].mxu0
        %3163 = vdwg.mxu0
        %v3164 = vadd.f32 %v3051, %v3134
        %v3165 = vadd.f32 %v3052, %v3137
        %v3166 = vadd.f32 %v3053, %v3142
        %v3167 = vadd.f32 %v3054, %v3145
        %v3168 = vadd.f32 %v3055, %v3150
        %v3169 = vadd.f32 %v3056, %v3153
        %v3170 = vadd.f32 %v3057, %v3158
        %v3171 = vadd.f32 %v3058, %v3161
        %v3172 = vld [vmem:[%s11] sm:$0x1]
        %v3174 = vlaneseq
        %v3175 = vshrl.u32 %v3174, 7
        %v3176 = vsub.s32 0, %v3175
        %v3177 = vrot.slane %v3172, %v3176
        %v3179 = vmul.f32 %v3164, %v3177
        %v3180 = vmul.f32 %v3165, %v3177
        %v3181 = vmul.f32 %v3166, %v3177
        %v3182 = vmul.f32 %v3167, %v3177
        %v3183 = vmul.f32 %v3168, %v3177
        %v3184 = vmul.f32 %v3169, %v3177
        %v3185 = vmul.f32 %v3170, %v3177
        %v3186 = vmul.f32 %v3171, %v3177
        %v3187 = vld [vmem:[%s12] sm:$0x1]
        %v3189 = vlaneseq
        %v3190 = vshrl.u32 %v3189, 7
        %v3191 = vsub.s32 0, %v3190
        %v3192 = vrot.slane %v3187, %v3191
        %v3194 = vadd.f32 %v3179, %v3192
        %v3195 = vadd.f32 %v3180, %v3192
        %v3196 = vadd.f32 %v3181, %v3192
        %v3197 = vadd.f32 %v3182, %v3192
        %v3198 = vadd.f32 %v3183, %v3192
        %v3199 = vadd.f32 %v3184, %v3192
        %v3200 = vadd.f32 %v3185, %v3192
        %v3201 = vadd.f32 %v3186, %v3192
        %v3202 = vmax.f32 %v3194, 0.0
        %v3203 = vmax.f32 %v3195, 0.0
        %v3204 = vmax.f32 %v3196, 0.0
        %v3205 = vmax.f32 %v3197, 0.0
        %v3206 = vmax.f32 %v3198, 0.0
        %v3207 = vmax.f32 %v3199, 0.0
        %v3208 = vmax.f32 %v3200, 0.0
        %v3209 = vmax.f32 %v3201, 0.0
        %s3210 = scalar_lea.vmem [#allocation4], 16
        %3211 = vst.msk [vmem:[%s3210 + $0x1] sm:$0xff] %vm604, %v3202
        %3212 = vst.msk [vmem:[%s3210 + $0x11] sm:$0xff] %vm604, %v3203
        %3213 = vst.msk [vmem:[%s3210 + $0x21] sm:$0xff] %vm604, %v3204
        %3214 = vst.msk [vmem:[%s3210 + $0x31] sm:$0xff] %vm604, %v3205
        %3215 = vst.msk [vmem:[%s3210 + $0x41] sm:$0xff] %vm604, %v3206
        %3216 = vst.msk [vmem:[%s3210 + $0x51] sm:$0xff] %vm604, %v3207
        %3217 = vst.msk [vmem:[%s3210 + $0x61] sm:$0xff] %vm604, %v3208
        %3218 = vst.msk [vmem:[%s3210 + $0x71] sm:$0xff] %vm604, %v3209
        %v3219 = vld [vmem:[#allocation4] sm:$0xff]
        %v3220 = vld [vmem:[#allocation4 + $0x10] sm:$0xff]
        %v3221 = vld [vmem:[#allocation4 + $0x20] sm:$0xff]
        %v3222 = vld [vmem:[#allocation4 + $0x30] sm:$0xff]
        %v3223 = vld [vmem:[#allocation4 + $0x40] sm:$0xff]
        %v3224 = vld [vmem:[#allocation4 + $0x50] sm:$0xff]
        %v3225 = vld [vmem:[#allocation4 + $0x60] sm:$0xff]
        %v3226 = vld [vmem:[#allocation4 + $0x70] sm:$0xff]
        %v3227 = vpack.c.bf16 %v3220, %v3219
        %v3228 = vpack.c.bf16 %v3222, %v3221
        %v3229 = vpack.c.bf16 %v3224, %v3223
        %v3230 = vpack.c.bf16 %v3226, %v3225
        %v3231 = vld [vmem:[%s13] sm:$0xf]
        %v3232 = vld [vmem:[%s13 + $0x4] sm:$0xf]
        %v3233 = vld [vmem:[%s13 + $0x8] sm:$0xf]
        %v3234 = vld [vmem:[%s13 + $0xc] sm:$0xf]
        %v3235 = vld [vmem:[#allocation4 + $0x1] sm:$0xff]
        %v3236 = vld [vmem:[#allocation4 + $0x11] sm:$0xff]
        %v3237 = vld [vmem:[#allocation4 + $0x21] sm:$0xff]
        %v3238 = vld [vmem:[#allocation4 + $0x31] sm:$0xff]
        %v3239 = vld [vmem:[#allocation4 + $0x41] sm:$0xff]
        %v3240 = vld [vmem:[#allocation4 + $0x51] sm:$0xff]
        %v3241 = vld [vmem:[#allocation4 + $0x61] sm:$0xff]
        %v3242 = vld [vmem:[#allocation4 + $0x71] sm:$0xff]
        %v3243 = vpack.c.bf16 %v3236, %v3235
        %v3244 = vpack.c.bf16 %v3238, %v3237
        %v3245 = vpack.c.bf16 %v3240, %v3239
        %v3246 = vpack.c.bf16 %v3242, %v3241
        %s3247 = scalar_lea.vmem %s13, 16
        %v3248 = vld [vmem:[%s3247] sm:$0xf]
        %v3249 = vld [vmem:[%s3247 + $0x4] sm:$0xf]
        %v3250 = vld [vmem:[%s3247 + $0x8] sm:$0xf]
        %v3251 = vld [vmem:[%s3247 + $0xc] sm:$0xf]
        %v3256 = vunpack.c.l.b16 %v3248
        %v3257 = vunpack.c.l.b16 %v3249
        %v3258 = vunpack.c.l.b16 %v3250
        %v3259 = vunpack.c.l.b16 %v3251
        %v3260 = vpack.c.b16 %v3257, %v3256
        %v3261 = vpack.c.b16 %v3259, %v3258
        %v3265 = vsel %vm604, %v3243, 0
        %v3268 = vsel %vm604, %v3244, 0
        %v3271 = vsel %vm604, %v3245, 0
        %v3274 = vsel %vm604, %v3246, 0
        %3276 = vmatprep.subr.bf16.mxu0 0
        %3277 = vmatpush1.bf16.msra.mxu0 %v3260
        %3278 = vmatprep.subr.bf16.mxu0 0
        %3279 = vmatpush1.bf16.msra.mxu0 %v3261
        %3280 = vmatprep.subr.bf16.mxu0 0
        %3281 = vmatpush1.bf16.msra.mxu0 0
        %3282 = vmatprep.subr.bf16.mxu0 0
        %3283 = vmatpush1.bf16.msra.mxu0 0
        %3284 = vmatprep.subr.bf16.mxu0 0
        %3285 = vmatpush1.bf16.msra.mxu0 0
        %3286 = vmatprep.subr.bf16.mxu0 0
        %3287 = vmatpush1.bf16.msra.mxu0 0
        %3288 = vmatprep.subr.bf16.mxu0 0
        %3289 = vmatpush1.bf16.msra.mxu0 0
        %3290 = vmatprep.subr.bf16.mxu0 0
        %3291 = vmatpush1.bf16.msra.mxu0 0
        %3292 = vmatprep.subr.bf16.mxu0 0
        %3293 = vmatpush1.bf16.msra.mxu0 0
        %3294 = vmatprep.subr.bf16.mxu0 0
        %3295 = vmatpush1.bf16.msra.mxu0 0
        %3296 = vmatprep.subr.bf16.mxu0 0
        %3297 = vmatpush1.bf16.msra.mxu0 0
        %3298 = vmatprep.subr.bf16.mxu0 0
        %3299 = vmatpush1.bf16.msra.mxu0 0
        %3300 = vmatprep.subr.bf16.mxu0 0
        %3301 = vmatpush1.bf16.msra.mxu0 0
        %3302 = vmatprep.subr.bf16.mxu0 0
        %3303 = vmatpush1.bf16.msra.mxu0 0
        %3304 = vmatprep.subr.bf16.mxu0 0
        %3305 = vmatpush1.bf16.msra.mxu0 0
        %3306 = vmatprep.subr.bf16.mxu0 0
        %3307 = vmatpush1.bf16.msra.mxu0 0
        %3308 = vmatprep.mubr.bf16.mxu0 0
        %3309 = vmatmul.mubr.bf16.gmra.mrb[0].mxu0 %v3265
        %v3310 = vpop.f32.mrb[0].mxu0
        %v3311 = vadd.f32 0.0, %v3310
        %v3312 = vpop.f32.mrb[0].mxu0
        %v3313 = vpop.f32.mrb[0].mxu0
        %v3314 = vadd.f32 0.0, %v3313
        %v3315 = vpop.f32.mrb[0].mxu0
        %3316 = vmatprep.mubr.bf16.mxu0 0
        %3317 = vmatmul.mubr.bf16.gmra.mrb[0].mxu0 %v3268
        %v3318 = vpop.f32.mrb[0].mxu0
        %v3319 = vadd.f32 0.0, %v3318
        %v3320 = vpop.f32.mrb[0].mxu0
        %v3321 = vpop.f32.mrb[0].mxu0
        %v3322 = vadd.f32 0.0, %v3321
        %v3323 = vpop.f32.mrb[0].mxu0
        %3324 = vmatprep.mubr.bf16.mxu0 0
        %3325 = vmatmul.mubr.bf16.gmra.mrb[0].mxu0 %v3271
        %v3326 = vpop.f32.mrb[0].mxu0
        %v3327 = vadd.f32 0.0, %v3326
        %v3328 = vpop.f32.mrb[0].mxu0
        %v3329 = vpop.f32.mrb[0].mxu0
        %v3330 = vadd.f32 0.0, %v3329
        %v3331 = vpop.f32.mrb[0].mxu0
        %3332 = vmatprep.mubr.bf16.mxu0 0
        %3333 = vmatmul.mubr.bf16.gmra.mrb[0].mxu0 %v3274
        %v3334 = vpop.f32.mrb[0].mxu0
        %v3335 = vadd.f32 0.0, %v3334
        %v3336 = vpop.f32.mrb[0].mxu0
        %v3337 = vpop.f32.mrb[0].mxu0
        %v3338 = vadd.f32 0.0, %v3337
        %v3339 = vpop.f32.mrb[0].mxu0
        %3340 = vdwg.mxu0
        %v3345 = vunpack.c.l.b16 %v3231
        %v3346 = vunpack.c.l.b16 %v3232
        %v3347 = vunpack.c.l.b16 %v3233
        %v3348 = vunpack.c.l.b16 %v3234
        %v3349 = vpack.c.b16 %v3346, %v3345
        %v3350 = vpack.c.b16 %v3348, %v3347
        %v3354 = vsel %vm604, %v3227, 0
        %v3357 = vsel %vm604, %v3228, 0
        %v3360 = vsel %vm604, %v3229, 0
        %v3363 = vsel %vm604, %v3230, 0
        %3365 = vmatprep.subr.bf16.mxu0 0
        %3366 = vmatpush1.bf16.msra.mxu0 %v3349
        %3367 = vmatprep.subr.bf16.mxu0 0
        %3368 = vmatpush1.bf16.msra.mxu0 %v3350
        %3369 = vmatprep.subr.bf16.mxu0 0
        %3370 = vmatpush1.bf16.msra.mxu0 0
        %3371 = vmatprep.subr.bf16.mxu0 0
        %3372 = vmatpush1.bf16.msra.mxu0 0
        %3373 = vmatprep.subr.bf16.mxu0 0
        %3374 = vmatpush1.bf16.msra.mxu0 0
        %3375 = vmatprep.subr.bf16.mxu0 0
        %3376 = vmatpush1.bf16.msra.mxu0 0
        %3377 = vmatprep.subr.bf16.mxu0 0
        %3378 = vmatpush1.bf16.msra.mxu0 0
        %3379 = vmatprep.subr.bf16.mxu0 0
        %3380 = vmatpush1.bf16.msra.mxu0 0
        %3381 = vmatprep.subr.bf16.mxu0 0
        %3382 = vmatpush1.bf16.msra.mxu0 0
        %3383 = vmatprep.subr.bf16.mxu0 0
        %3384 = vmatpush1.bf16.msra.mxu0 0
        %3385 = vmatprep.subr.bf16.mxu0 0
        %3386 = vmatpush1.bf16.msra.mxu0 0
        %3387 = vmatprep.subr.bf16.mxu0 0
        %3388 = vmatpush1.bf16.msra.mxu0 0
        %3389 = vmatprep.subr.bf16.mxu0 0
        %3390 = vmatpush1.bf16.msra.mxu0 0
        %3391 = vmatprep.subr.bf16.mxu0 0
        %3392 = vmatpush1.bf16.msra.mxu0 0
        %3393 = vmatprep.subr.bf16.mxu0 0
        %3394 = vmatpush1.bf16.msra.mxu0 0
        %3395 = vmatprep.subr.bf16.mxu0 0
        %3396 = vmatpush1.bf16.msra.mxu0 0
        %3397 = vmatprep.mubr.bf16.mxu0 0
        %3398 = vmatmul.mubr.bf16.gmra.mrb[0].mxu0 %v3354
        %v3399 = vpop.f32.mrb[0].mxu0
        %v3400 = vadd.f32 %v3311, %v3399
        %v3401 = vpop.f32.mrb[0].mxu0
        %v3402 = vpop.f32.mrb[0].mxu0
        %v3403 = vadd.f32 %v3314, %v3402
        %v3404 = vpop.f32.mrb[0].mxu0
        %3405 = vmatprep.mubr.bf16.mxu0 0
        %3406 = vmatmul.mubr.bf16.gmra.mrb[0].mxu0 %v3357
        %v3407 = vpop.f32.mrb[0].mxu0
        %v3408 = vadd.f32 %v3319, %v3407
        %v3409 = vpop.f32.mrb[0].mxu0
        %v3410 = vpop.f32.mrb[0].mxu0
        %v3411 = vadd.f32 %v3322, %v3410
        %v3412 = vpop.f32.mrb[0].mxu0
        %3413 = vmatprep.mubr.bf16.mxu0 0
        %3414 = vmatmul.mubr.bf16.gmra.mrb[0].mxu0 %v3360
        %v3415 = vpop.f32.mrb[0].mxu0
        %v3416 = vadd.f32 %v3327, %v3415
        %v3417 = vpop.f32.mrb[0].mxu0
        %v3418 = vpop.f32.mrb[0].mxu0
        %v3419 = vadd.f32 %v3330, %v3418
        %v3420 = vpop.f32.mrb[0].mxu0
        %3421 = vmatprep.mubr.bf16.mxu0 0
        %3422 = vmatmul.mubr.bf16.gmra.mrb[0].mxu0 %v3363
        %v3423 = vpop.f32.mrb[0].mxu0
        %v3424 = vadd.f32 %v3335, %v3423
        %v3425 = vpop.f32.mrb[0].mxu0
        %v3426 = vpop.f32.mrb[0].mxu0
        %v3427 = vadd.f32 %v3338, %v3426
        %v3428 = vpop.f32.mrb[0].mxu0
        %3429 = vdwg.mxu0
        %v3430 = vld [vmem:[#allocation4 + $0x2] sm:$0xff]
        %v3431 = vld [vmem:[#allocation4 + $0x12] sm:$0xff]
        %v3432 = vld [vmem:[#allocation4 + $0x22] sm:$0xff]
        %v3433 = vld [vmem:[#allocation4 + $0x32] sm:$0xff]
        %v3434 = vld [vmem:[#allocation4 + $0x42] sm:$0xff]
        %v3435 = vld [vmem:[#allocation4 + $0x52] sm:$0xff]
        %v3436 = vld [vmem:[#allocation4 + $0x62] sm:$0xff]
        %v3437 = vld [vmem:[#allocation4 + $0x72] sm:$0xff]
        %v3438 = vpack.c.bf16 %v3431, %v3430
        %v3439 = vpack.c.bf16 %v3433, %v3432
        %v3440 = vpack.c.bf16 %v3435, %v3434
        %v3441 = vpack.c.bf16 %v3437, %v3436
        %s3442 = scalar_lea.vmem %s13, 32
        %v3443 = vld [vmem:[%s3442] sm:$0xf]
        %v3444 = vld [vmem:[%s3442 + $0x4] sm:$0xf]
        %v3445 = vld [vmem:[%s3442 + $0x8] sm:$0xf]
        %v3446 = vld [vmem:[%s3442 + $0xc] sm:$0xf]
        %v3451 = vunpack.c.l.b16 %v3443
        %v3452 = vunpack.c.l.b16 %v3444
        %v3453 = vunpack.c.l.b16 %v3445
        %v3454 = vunpack.c.l.b16 %v3446
        %v3455 = vpack.c.b16 %v3452, %v3451
        %v3456 = vpack.c.b16 %v3454, %v3453
        %v3460 = vsel %vm604, %v3438, 0
        %v3463 = vsel %vm604, %v3439, 0
        %v3466 = vsel %vm604, %v3440, 0
        %v3469 = vsel %vm604, %v3441, 0
        %3471 = vmatprep.subr.bf16.mxu0 0
        %3472 = vmatpush1.bf16.msra.mxu0 %v3455
        %3473 = vmatprep.subr.bf16.mxu0 0
        %3474 = vmatpush1.bf16.msra.mxu0 %v3456
        %3475 = vmatprep.subr.bf16.mxu0 0
        %3476 = vmatpush1.bf16.msra.mxu0 0
        %3477 = vmatprep.subr.bf16.mxu0 0
        %3478 = vmatpush1.bf16.msra.mxu0 0
        %3479 = vmatprep.subr.bf16.mxu0 0
        %3480 = vmatpush1.bf16.msra.mxu0 0
        %3481 = vmatprep.subr.bf16.mxu0 0
        %3482 = vmatpush1.bf16.msra.mxu0 0
        %3483 = vmatprep.subr.bf16.mxu0 0
        %3484 = vmatpush1.bf16.msra.mxu0 0
        %3485 = vmatprep.subr.bf16.mxu0 0
        %3486 = vmatpush1.bf16.msra.mxu0 0
        %3487 = vmatprep.subr.bf16.mxu0 0
        %3488 = vmatpush1.bf16.msra.mxu0 0
        %3489 = vmatprep.subr.bf16.mxu0 0
        %3490 = vmatpush1.bf16.msra.mxu0 0
        %3491 = vmatprep.subr.bf16.mxu0 0
        %3492 = vmatpush1.bf16.msra.mxu0 0
        %3493 = vmatprep.subr.bf16.mxu0 0
        %3494 = vmatpush1.bf16.msra.mxu0 0
        %3495 = vmatprep.subr.bf16.mxu0 0
        %3496 = vmatpush1.bf16.msra.mxu0 0
        %3497 = vmatprep.subr.bf16.mxu0 0
        %3498 = vmatpush1.bf16.msra.mxu0 0
        %3499 = vmatprep.subr.bf16.mxu0 0
        %3500 = vmatpush1.bf16.msra.mxu0 0
        %3501 = vmatprep.subr.bf16.mxu0 0
        %3502 = vmatpush1.bf16.msra.mxu0 0
        %3503 = vmatprep.mubr.bf16.mxu0 0
        %3504 = vmatmul.mubr.bf16.gmra.mrb[0].mxu0 %v3460
        %v3505 = vpop.f32.mrb[0].mxu0
        %v3506 = vadd.f32 0.0, %v3505
        %v3507 = vpop.f32.mrb[0].mxu0
        %v3508 = vpop.f32.mrb[0].mxu0
        %v3509 = vadd.f32 0.0, %v3508
        %v3510 = vpop.f32.mrb[0].mxu0
        %3511 = vmatprep.mubr.bf16.mxu0 0
        %3512 = vmatmul.mubr.bf16.gmra.mrb[0].mxu0 %v3463
        %v3513 = vpop.f32.mrb[0].mxu0
        %v3514 = vadd.f32 0.0, %v3513
        %v3515 = vpop.f32.mrb[0].mxu0
        %v3516 = vpop.f32.mrb[0].mxu0
        %v3517 = vadd.f32 0.0, %v3516
        %v3518 = vpop.f32.mrb[0].mxu0
        %3519 = vmatprep.mubr.bf16.mxu0 0
        %3520 = vmatmul.mubr.bf16.gmra.mrb[0].mxu0 %v3466
        %v3521 = vpop.f32.mrb[0].mxu0
        %v3522 = vadd.f32 0.0, %v3521
        %v3523 = vpop.f32.mrb[0].mxu0
        %v3524 = vpop.f32.mrb[0].mxu0
        %v3525 = vadd.f32 0.0, %v3524
        %v3526 = vpop.f32.mrb[0].mxu0
        %3527 = vmatprep.mubr.bf16.mxu0 0
        %3528 = vmatmul.mubr.bf16.gmra.mrb[0].mxu0 %v3469
        %v3529 = vpop.f32.mrb[0].mxu0
        %v3530 = vadd.f32 0.0, %v3529
        %v3531 = vpop.f32.mrb[0].mxu0
        %v3532 = vpop.f32.mrb[0].mxu0
        %v3533 = vadd.f32 0.0, %v3532
        %v3534 = vpop.f32.mrb[0].mxu0
        %3535 = vdwg.mxu0
        %v3536 = vadd.f32 %v3400, %v3506
        %v3537 = vadd.f32 %v3403, %v3509
        %v3538 = vadd.f32 %v3408, %v3514
        %v3539 = vadd.f32 %v3411, %v3517
        %v3540 = vadd.f32 %v3416, %v3522
        %v3541 = vadd.f32 %v3419, %v3525
        %v3542 = vadd.f32 %v3424, %v3530
        %v3543 = vadd.f32 %v3427, %v3533
        %v3544 = vld [vmem:[%s3210] sm:$0xff]
        %v3545 = vld [vmem:[%s3210 + $0x10] sm:$0xff]
        %v3546 = vld [vmem:[%s3210 + $0x20] sm:$0xff]
        %v3547 = vld [vmem:[%s3210 + $0x30] sm:$0xff]
        %v3548 = vld [vmem:[%s3210 + $0x40] sm:$0xff]
        %v3549 = vld [vmem:[%s3210 + $0x50] sm:$0xff]
        %v3550 = vld [vmem:[%s3210 + $0x60] sm:$0xff]
        %v3551 = vld [vmem:[%s3210 + $0x70] sm:$0xff]
        %v3552 = vpack.c.bf16 %v3545, %v3544
        %v3553 = vpack.c.bf16 %v3547, %v3546
        %v3554 = vpack.c.bf16 %v3549, %v3548
        %v3555 = vpack.c.bf16 %v3551, %v3550
        %s3556 = scalar_lea.vmem %s13, 48
        %v3557 = vld [vmem:[%s3556] sm:$0xf]
        %v3558 = vld [vmem:[%s3556 + $0x4] sm:$0xf]
        %v3559 = vld [vmem:[%s3556 + $0x8] sm:$0xf]
        %v3560 = vld [vmem:[%s3556 + $0xc] sm:$0xf]
        %v3565 = vunpack.c.l.b16 %v3557
        %v3566 = vunpack.c.l.b16 %v3558
        %v3567 = vunpack.c.l.b16 %v3559
        %v3568 = vunpack.c.l.b16 %v3560
        %v3569 = vpack.c.b16 %v3566, %v3565
        %v3570 = vpack.c.b16 %v3568, %v3567
        %v3574 = vsel %vm604, %v3552, 0
        %v3577 = vsel %vm604, %v3553, 0
        %v3580 = vsel %vm604, %v3554, 0
        %v3583 = vsel %vm604, %v3555, 0
        %3585 = vmatprep.subr.bf16.mxu0 0
        %3586 = vmatpush1.bf16.msra.mxu0 %v3569
        %3587 = vmatprep.subr.bf16.mxu0 0
        %3588 = vmatpush1.bf16.msra.mxu0 %v3570
        %3589 = vmatprep.subr.bf16.mxu0 0
        %3590 = vmatpush1.bf16.msra.mxu0 0
        %3591 = vmatprep.subr.bf16.mxu0 0
        %3592 = vmatpush1.bf16.msra.mxu0 0
        %3593 = vmatprep.subr.bf16.mxu0 0
        %3594 = vmatpush1.bf16.msra.mxu0 0
        %3595 = vmatprep.subr.bf16.mxu0 0
        %3596 = vmatpush1.bf16.msra.mxu0 0
        %3597 = vmatprep.subr.bf16.mxu0 0
        %3598 = vmatpush1.bf16.msra.mxu0 0
        %3599 = vmatprep.subr.bf16.mxu0 0
        %3600 = vmatpush1.bf16.msra.mxu0 0
        %3601 = vmatprep.subr.bf16.mxu0 0
        %3602 = vmatpush1.bf16.msra.mxu0 0
        %3603 = vmatprep.subr.bf16.mxu0 0
        %3604 = vmatpush1.bf16.msra.mxu0 0
        %3605 = vmatprep.subr.bf16.mxu0 0
        %3606 = vmatpush1.bf16.msra.mxu0 0
        %3607 = vmatprep.subr.bf16.mxu0 0
        %3608 = vmatpush1.bf16.msra.mxu0 0
        %3609 = vmatprep.subr.bf16.mxu0 0
        %3610 = vmatpush1.bf16.msra.mxu0 0
        %3611 = vmatprep.subr.bf16.mxu0 0
        %3612 = vmatpush1.bf16.msra.mxu0 0
        %3613 = vmatprep.subr.bf16.mxu0 0
        %3614 = vmatpush1.bf16.msra.mxu0 0
        %3615 = vmatprep.subr.bf16.mxu0 0
        %3616 = vmatpush1.bf16.msra.mxu0 0
        %3617 = vmatprep.mubr.bf16.mxu0 0
        %3618 = vmatmul.mubr.bf16.gmra.mrb[0].mxu0 %v3574
        %v3619 = vpop.f32.mrb[0].mxu0
        %v3620 = vadd.f32 0.0, %v3619
        %v3621 = vpop.f32.mrb[0].mxu0
        %v3622 = vpop.f32.mrb[0].mxu0
        %v3623 = vadd.f32 0.0, %v3622
        %v3624 = vpop.f32.mrb[0].mxu0
        %3625 = vmatprep.mubr.bf16.mxu0 0
        %3626 = vmatmul.mubr.bf16.gmra.mrb[0].mxu0 %v3577
        %v3627 = vpop.f32.mrb[0].mxu0
        %v3628 = vadd.f32 0.0, %v3627
        %v3629 = vpop.f32.mrb[0].mxu0
        %v3630 = vpop.f32.mrb[0].mxu0
        %v3631 = vadd.f32 0.0, %v3630
        %v3632 = vpop.f32.mrb[0].mxu0
        %3633 = vmatprep.mubr.bf16.mxu0 0
        %3634 = vmatmul.mubr.bf16.gmra.mrb[0].mxu0 %v3580
        %v3635 = vpop.f32.mrb[0].mxu0
        %v3636 = vadd.f32 0.0, %v3635
        %v3637 = vpop.f32.mrb[0].mxu0
        %v3638 = vpop.f32.mrb[0].mxu0
        %v3639 = vadd.f32 0.0, %v3638
        %v3640 = vpop.f32.mrb[0].mxu0
        %3641 = vmatprep.mubr.bf16.mxu0 0
        %3642 = vmatmul.mubr.bf16.gmra.mrb[0].mxu0 %v3583
        %v3643 = vpop.f32.mrb[0].mxu0
        %v3644 = vadd.f32 0.0, %v3643
        %v3645 = vpop.f32.mrb[0].mxu0
        %v3646 = vpop.f32.mrb[0].mxu0
        %v3647 = vadd.f32 0.0, %v3646
        %v3648 = vpop.f32.mrb[0].mxu0
        %3649 = vdwg.mxu0
        %v3650 = vadd.f32 %v3536, %v3620
        %v3651 = vadd.f32 %v3537, %v3623
        %v3652 = vadd.f32 %v3538, %v3628
        %v3653 = vadd.f32 %v3539, %v3631
        %v3654 = vadd.f32 %v3540, %v3636
        %v3655 = vadd.f32 %v3541, %v3639
        %v3656 = vadd.f32 %v3542, %v3644
        %v3657 = vadd.f32 %v3543, %v3647
        %v3658 = vld [vmem:[%s3210 + $0x1] sm:$0xff]
        %v3659 = vld [vmem:[%s3210 + $0x11] sm:$0xff]
        %v3660 = vld [vmem:[%s3210 + $0x21] sm:$0xff]
        %v3661 = vld [vmem:[%s3210 + $0x31] sm:$0xff]
        %v3662 = vld [vmem:[%s3210 + $0x41] sm:$0xff]
        %v3663 = vld [vmem:[%s3210 + $0x51] sm:$0xff]
        %v3664 = vld [vmem:[%s3210 + $0x61] sm:$0xff]
        %v3665 = vld [vmem:[%s3210 + $0x71] sm:$0xff]
        %v3666 = vpack.c.bf16 %v3659, %v3658
        %v3667 = vpack.c.bf16 %v3661, %v3660
        %v3668 = vpack.c.bf16 %v3663, %v3662
        %v3669 = vpack.c.bf16 %v3665, %v3664
        %s3670 = scalar_lea.vmem %s13, 64
        %v3671 = vld [vmem:[%s3670] sm:$0xf]
        %v3672 = vld [vmem:[%s3670 + $0x4] sm:$0xf]
        %v3673 = vld [vmem:[%s3670 + $0x8] sm:$0xf]
        %v3674 = vld [vmem:[%s3670 + $0xc] sm:$0xf]
        %v3679 = vunpack.c.l.b16 %v3671
        %v3680 = vunpack.c.l.b16 %v3672
        %v3681 = vunpack.c.l.b16 %v3673
        %v3682 = vunpack.c.l.b16 %v3674
        %v3683 = vpack.c.b16 %v3680, %v3679
        %v3684 = vpack.c.b16 %v3682, %v3681
        %v3688 = vsel %vm604, %v3666, 0
        %v3691 = vsel %vm604, %v3667, 0
        %v3694 = vsel %vm604, %v3668, 0
        %v3697 = vsel %vm604, %v3669, 0
        %3699 = vmatprep.subr.bf16.mxu0 0
        %3700 = vmatpush1.bf16.msra.mxu0 %v3683
        %3701 = vmatprep.subr.bf16.mxu0 0
        %3702 = vmatpush1.bf16.msra.mxu0 %v3684
        %3703 = vmatprep.subr.bf16.mxu0 0
        %3704 = vmatpush1.bf16.msra.mxu0 0
        %3705 = vmatprep.subr.bf16.mxu0 0
        %3706 = vmatpush1.bf16.msra.mxu0 0
        %3707 = vmatprep.subr.bf16.mxu0 0
        %3708 = vmatpush1.bf16.msra.mxu0 0
        %3709 = vmatprep.subr.bf16.mxu0 0
        %3710 = vmatpush1.bf16.msra.mxu0 0
        %3711 = vmatprep.subr.bf16.mxu0 0
        %3712 = vmatpush1.bf16.msra.mxu0 0
        %3713 = vmatprep.subr.bf16.mxu0 0
        %3714 = vmatpush1.bf16.msra.mxu0 0
        %3715 = vmatprep.subr.bf16.mxu0 0
        %3716 = vmatpush1.bf16.msra.mxu0 0
        %3717 = vmatprep.subr.bf16.mxu0 0
        %3718 = vmatpush1.bf16.msra.mxu0 0
        %3719 = vmatprep.subr.bf16.mxu0 0
        %3720 = vmatpush1.bf16.msra.mxu0 0
        %3721 = vmatprep.subr.bf16.mxu0 0
        %3722 = vmatpush1.bf16.msra.mxu0 0
        %3723 = vmatprep.subr.bf16.mxu0 0
        %3724 = vmatpush1.bf16.msra.mxu0 0
        %3725 = vmatprep.subr.bf16.mxu0 0
        %3726 = vmatpush1.bf16.msra.mxu0 0
        %3727 = vmatprep.subr.bf16.mxu0 0
        %3728 = vmatpush1.bf16.msra.mxu0 0
        %3729 = vmatprep.subr.bf16.mxu0 0
        %3730 = vmatpush1.bf16.msra.mxu0 0
        %3731 = vmatprep.mubr.bf16.mxu0 0
        %3732 = vmatmul.mubr.bf16.gmra.mrb[0].mxu0 %v3688
        %v3733 = vpop.f32.mrb[0].mxu0
        %v3734 = vadd.f32 0.0, %v3733
        %v3735 = vpop.f32.mrb[0].mxu0
        %v3736 = vpop.f32.mrb[0].mxu0
        %v3737 = vadd.f32 0.0, %v3736
        %v3738 = vpop.f32.mrb[0].mxu0
        %3739 = vmatprep.mubr.bf16.mxu0 0
        %3740 = vmatmul.mubr.bf16.gmra.mrb[0].mxu0 %v3691
        %v3741 = vpop.f32.mrb[0].mxu0
        %v3742 = vadd.f32 0.0, %v3741
        %v3743 = vpop.f32.mrb[0].mxu0
        %v3744 = vpop.f32.mrb[0].mxu0
        %v3745 = vadd.f32 0.0, %v3744
        %v3746 = vpop.f32.mrb[0].mxu0
        %3747 = vmatprep.mubr.bf16.mxu0 0
        %3748 = vmatmul.mubr.bf16.gmra.mrb[0].mxu0 %v3694
        %v3749 = vpop.f32.mrb[0].mxu0
        %v3750 = vadd.f32 0.0, %v3749
        %v3751 = vpop.f32.mrb[0].mxu0
        %v3752 = vpop.f32.mrb[0].mxu0
        %v3753 = vadd.f32 0.0, %v3752
        %v3754 = vpop.f32.mrb[0].mxu0
        %3755 = vmatprep.mubr.bf16.mxu0 0
        %3756 = vmatmul.mubr.bf16.gmra.mrb[0].mxu0 %v3697
        %v3757 = vpop.f32.mrb[0].mxu0
        %v3758 = vadd.f32 0.0, %v3757
        %v3759 = vpop.f32.mrb[0].mxu0
        %v3760 = vpop.f32.mrb[0].mxu0
        %v3761 = vadd.f32 0.0, %v3760
        %v3762 = vpop.f32.mrb[0].mxu0
        %3763 = vdwg.mxu0
        %v3764 = vadd.f32 %v3650, %v3734
        %v3765 = vadd.f32 %v3651, %v3737
        %v3766 = vadd.f32 %v3652, %v3742
        %v3767 = vadd.f32 %v3653, %v3745
        %v3768 = vadd.f32 %v3654, %v3750
        %v3769 = vadd.f32 %v3655, %v3753
        %v3770 = vadd.f32 %v3656, %v3758
        %v3771 = vadd.f32 %v3657, %v3761
        %v3772 = vld [vmem:[%s3210 + $0x2] sm:$0xff]
        %v3773 = vld [vmem:[%s3210 + $0x12] sm:$0xff]
        %v3774 = vld [vmem:[%s3210 + $0x22] sm:$0xff]
        %v3775 = vld [vmem:[%s3210 + $0x32] sm:$0xff]
        %v3776 = vld [vmem:[%s3210 + $0x42] sm:$0xff]
        %v3777 = vld [vmem:[%s3210 + $0x52] sm:$0xff]
        %v3778 = vld [vmem:[%s3210 + $0x62] sm:$0xff]
        %v3779 = vld [vmem:[%s3210 + $0x72] sm:$0xff]
        %v3780 = vpack.c.bf16 %v3773, %v3772
        %v3781 = vpack.c.bf16 %v3775, %v3774
        %v3782 = vpack.c.bf16 %v3777, %v3776
        %v3783 = vpack.c.bf16 %v3779, %v3778
        %s3784 = scalar_lea.vmem %s13, 80
        %v3785 = vld [vmem:[%s3784] sm:$0xf]
        %v3786 = vld [vmem:[%s3784 + $0x4] sm:$0xf]
        %v3787 = vld [vmem:[%s3784 + $0x8] sm:$0xf]
        %v3788 = vld [vmem:[%s3784 + $0xc] sm:$0xf]
        %v3793 = vunpack.c.l.b16 %v3785
        %v3794 = vunpack.c.l.b16 %v3786
        %v3795 = vunpack.c.l.b16 %v3787
        %v3796 = vunpack.c.l.b16 %v3788
        %v3797 = vpack.c.b16 %v3794, %v3793
        %v3798 = vpack.c.b16 %v3796, %v3795
        %v3802 = vsel %vm604, %v3780, 0
        %v3805 = vsel %vm604, %v3781, 0
        %v3808 = vsel %vm604, %v3782, 0
        %v3811 = vsel %vm604, %v3783, 0
        %3813 = vmatprep.subr.bf16.mxu0 0
        %3814 = vmatpush1.bf16.msra.mxu0 %v3797
        %3815 = vmatprep.subr.bf16.mxu0 0
        %3816 = vmatpush1.bf16.msra.mxu0 %v3798
        %3817 = vmatprep.subr.bf16.mxu0 0
        %3818 = vmatpush1.bf16.msra.mxu0 0
        %3819 = vmatprep.subr.bf16.mxu0 0
        %3820 = vmatpush1.bf16.msra.mxu0 0
        %3821 = vmatprep.subr.bf16.mxu0 0
        %3822 = vmatpush1.bf16.msra.mxu0 0
        %3823 = vmatprep.subr.bf16.mxu0 0
        %3824 = vmatpush1.bf16.msra.mxu0 0
        %3825 = vmatprep.subr.bf16.mxu0 0
        %3826 = vmatpush1.bf16.msra.mxu0 0
        %3827 = vmatprep.subr.bf16.mxu0 0
        %3828 = vmatpush1.bf16.msra.mxu0 0
        %3829 = vmatprep.subr.bf16.mxu0 0
        %3830 = vmatpush1.bf16.msra.mxu0 0
        %3831 = vmatprep.subr.bf16.mxu0 0
        %3832 = vmatpush1.bf16.msra.mxu0 0
        %3833 = vmatprep.subr.bf16.mxu0 0
        %3834 = vmatpush1.bf16.msra.mxu0 0
        %3835 = vmatprep.subr.bf16.mxu0 0
        %3836 = vmatpush1.bf16.msra.mxu0 0
        %3837 = vmatprep.subr.bf16.mxu0 0
        %3838 = vmatpush1.bf16.msra.mxu0 0
        %3839 = vmatprep.subr.bf16.mxu0 0
        %3840 = vmatpush1.bf16.msra.mxu0 0
        %3841 = vmatprep.subr.bf16.mxu0 0
        %3842 = vmatpush1.bf16.msra.mxu0 0
        %3843 = vmatprep.subr.bf16.mxu0 0
        %3844 = vmatpush1.bf16.msra.mxu0 0
        %3845 = vmatprep.mubr.bf16.mxu0 0
        %3846 = vmatmul.mubr.bf16.gmra.mrb[0].mxu0 %v3802
        %v3847 = vpop.f32.mrb[0].mxu0
        %v3848 = vadd.f32 0.0, %v3847
        %v3849 = vpop.f32.mrb[0].mxu0
        %v3850 = vpop.f32.mrb[0].mxu0
        %v3851 = vadd.f32 0.0, %v3850
        %v3852 = vpop.f32.mrb[0].mxu0
        %3853 = vmatprep.mubr.bf16.mxu0 0
        %3854 = vmatmul.mubr.bf16.gmra.mrb[0].mxu0 %v3805
        %v3855 = vpop.f32.mrb[0].mxu0
        %v3856 = vadd.f32 0.0, %v3855
        %v3857 = vpop.f32.mrb[0].mxu0
        %v3858 = vpop.f32.mrb[0].mxu0
        %v3859 = vadd.f32 0.0, %v3858
        %v3860 = vpop.f32.mrb[0].mxu0
        %3861 = vmatprep.mubr.bf16.mxu0 0
        %3862 = vmatmul.mubr.bf16.gmra.mrb[0].mxu0 %v3808
        %v3863 = vpop.f32.mrb[0].mxu0
        %v3864 = vadd.f32 0.0, %v3863
        %v3865 = vpop.f32.mrb[0].mxu0
        %v3866 = vpop.f32.mrb[0].mxu0
        %v3867 = vadd.f32 0.0, %v3866
        %v3868 = vpop.f32.mrb[0].mxu0
        %3869 = vmatprep.mubr.bf16.mxu0 0
        %3870 = vmatmul.mubr.bf16.gmra.mrb[0].mxu0 %v3811
        %v3871 = vpop.f32.mrb[0].mxu0
        %v3872 = vadd.f32 0.0, %v3871
        %v3873 = vpop.f32.mrb[0].mxu0
        %v3874 = vpop.f32.mrb[0].mxu0
        %v3875 = vadd.f32 0.0, %v3874
        %v3876 = vpop.f32.mrb[0].mxu0
        %3877 = vdwg.mxu0
        %v3878 = vadd.f32 %v3764, %v3848
        %v3879 = vadd.f32 %v3765, %v3851
        %v3880 = vadd.f32 %v3766, %v3856
        %v3881 = vadd.f32 %v3767, %v3859
        %v3882 = vadd.f32 %v3768, %v3864
        %v3883 = vadd.f32 %v3769, %v3867
        %v3884 = vadd.f32 %v3770, %v3872
        %v3885 = vadd.f32 %v3771, %v3875
        %s3886 = scalar_lea.vmem [#allocation4], 32
        %v3887 = vld [vmem:[%s3886] sm:$0xff]
        %v3888 = vld [vmem:[%s3886 + $0x10] sm:$0xff]
        %v3889 = vld [vmem:[%s3886 + $0x20] sm:$0xff]
        %v3890 = vld [vmem:[%s3886 + $0x30] sm:$0xff]
        %v3891 = vld [vmem:[%s3886 + $0x40] sm:$0xff]
        %v3892 = vld [vmem:[%s3886 + $0x50] sm:$0xff]
        %v3893 = vld [vmem:[%s3886 + $0x60] sm:$0xff]
        %v3894 = vld [vmem:[%s3886 + $0x70] sm:$0xff]
        %v3895 = vpack.c.bf16 %v3888, %v3887
        %v3896 = vpack.c.bf16 %v3890, %v3889
        %v3897 = vpack.c.bf16 %v3892, %v3891
        %v3898 = vpack.c.bf16 %v3894, %v3893
        %s3899 = scalar_lea.vmem %s13, 96
        %v3900 = vld [vmem:[%s3899] sm:$0xf]
        %v3901 = vld [vmem:[%s3899 + $0x4] sm:$0xf]
        %v3902 = vld [vmem:[%s3899 + $0x8] sm:$0xf]
        %v3903 = vld [vmem:[%s3899 + $0xc] sm:$0xf]
        %v3908 = vunpack.c.l.b16 %v3900
        %v3909 = vunpack.c.l.b16 %v3901
        %v3910 = vunpack.c.l.b16 %v3902
        %v3911 = vunpack.c.l.b16 %v3903
        %v3912 = vpack.c.b16 %v3909, %v3908
        %v3913 = vpack.c.b16 %v3911, %v3910
        %v3917 = vsel %vm604, %v3895, 0
        %v3920 = vsel %vm604, %v3896, 0
        %v3923 = vsel %vm604, %v3897, 0
        %v3926 = vsel %vm604, %v3898, 0
        %3928 = vmatprep.subr.bf16.mxu0 0
        %3929 = vmatpush1.bf16.msra.mxu0 %v3912
        %3930 = vmatprep.subr.bf16.mxu0 0
        %3931 = vmatpush1.bf16.msra.mxu0 %v3913
        %3932 = vmatprep.subr.bf16.mxu0 0
        %3933 = vmatpush1.bf16.msra.mxu0 0
        %3934 = vmatprep.subr.bf16.mxu0 0
        %3935 = vmatpush1.bf16.msra.mxu0 0
        %3936 = vmatprep.subr.bf16.mxu0 0
        %3937 = vmatpush1.bf16.msra.mxu0 0
        %3938 = vmatprep.subr.bf16.mxu0 0
        %3939 = vmatpush1.bf16.msra.mxu0 0
        %3940 = vmatprep.subr.bf16.mxu0 0
        %3941 = vmatpush1.bf16.msra.mxu0 0
        %3942 = vmatprep.subr.bf16.mxu0 0
        %3943 = vmatpush1.bf16.msra.mxu0 0
        %3944 = vmatprep.subr.bf16.mxu0 0
        %3945 = vmatpush1.bf16.msra.mxu0 0
        %3946 = vmatprep.subr.bf16.mxu0 0
        %3947 = vmatpush1.bf16.msra.mxu0 0
        %3948 = vmatprep.subr.bf16.mxu0 0
        %3949 = vmatpush1.bf16.msra.mxu0 0
        %3950 = vmatprep.subr.bf16.mxu0 0
        %3951 = vmatpush1.bf16.msra.mxu0 0
        %3952 = vmatprep.subr.bf16.mxu0 0
        %3953 = vmatpush1.bf16.msra.mxu0 0
        %3954 = vmatprep.subr.bf16.mxu0 0
        %3955 = vmatpush1.bf16.msra.mxu0 0
        %3956 = vmatprep.subr.bf16.mxu0 0
        %3957 = vmatpush1.bf16.msra.mxu0 0
        %3958 = vmatprep.subr.bf16.mxu0 0
        %3959 = vmatpush1.bf16.msra.mxu0 0
        %3960 = vmatprep.mubr.bf16.mxu0 0
        %3961 = vmatmul.mubr.bf16.gmra.mrb[0].mxu0 %v3917
        %v3962 = vpop.f32.mrb[0].mxu0
        %v3963 = vadd.f32 0.0, %v3962
        %v3964 = vpop.f32.mrb[0].mxu0
        %v3965 = vpop.f32.mrb[0].mxu0
        %v3966 = vadd.f32 0.0, %v3965
        %v3967 = vpop.f32.mrb[0].mxu0
        %3968 = vmatprep.mubr.bf16.mxu0 0
        %3969 = vmatmul.mubr.bf16.gmra.mrb[0].mxu0 %v3920
        %v3970 = vpop.f32.mrb[0].mxu0
        %v3971 = vadd.f32 0.0, %v3970
        %v3972 = vpop.f32.mrb[0].mxu0
        %v3973 = vpop.f32.mrb[0].mxu0
        %v3974 = vadd.f32 0.0, %v3973
        %v3975 = vpop.f32.mrb[0].mxu0
        %3976 = vmatprep.mubr.bf16.mxu0 0
        %3977 = vmatmul.mubr.bf16.gmra.mrb[0].mxu0 %v3923
        %v3978 = vpop.f32.mrb[0].mxu0
        %v3979 = vadd.f32 0.0, %v3978
        %v3980 = vpop.f32.mrb[0].mxu0
        %v3981 = vpop.f32.mrb[0].mxu0
        %v3982 = vadd.f32 0.0, %v3981
        %v3983 = vpop.f32.mrb[0].mxu0
        %3984 = vmatprep.mubr.bf16.mxu0 0
        %3985 = vmatmul.mubr.bf16.gmra.mrb[0].mxu0 %v3926
        %v3986 = vpop.f32.mrb[0].mxu0
        %v3987 = vadd.f32 0.0, %v3986
        %v3988 = vpop.f32.mrb[0].mxu0
        %v3989 = vpop.f32.mrb[0].mxu0
        %v3990 = vadd.f32 0.0, %v3989
        %v3991 = vpop.f32.mrb[0].mxu0
        %3992 = vdwg.mxu0
        %v3993 = vadd.f32 %v3878, %v3963
        %v3994 = vadd.f32 %v3879, %v3966
        %v3995 = vadd.f32 %v3880, %v3971
        %v3996 = vadd.f32 %v3881, %v3974
        %v3997 = vadd.f32 %v3882, %v3979
        %v3998 = vadd.f32 %v3883, %v3982
        %v3999 = vadd.f32 %v3884, %v3987
        %v4000 = vadd.f32 %v3885, %v3990
        %v4001 = vld [vmem:[%s3886 + $0x1] sm:$0xff]
        %v4002 = vld [vmem:[%s3886 + $0x11] sm:$0xff]
        %v4003 = vld [vmem:[%s3886 + $0x21] sm:$0xff]
        %v4004 = vld [vmem:[%s3886 + $0x31] sm:$0xff]
        %v4005 = vld [vmem:[%s3886 + $0x41] sm:$0xff]
        %v4006 = vld [vmem:[%s3886 + $0x51] sm:$0xff]
        %v4007 = vld [vmem:[%s3886 + $0x61] sm:$0xff]
        %v4008 = vld [vmem:[%s3886 + $0x71] sm:$0xff]
        %v4009 = vpack.c.bf16 %v4002, %v4001
        %v4010 = vpack.c.bf16 %v4004, %v4003
        %v4011 = vpack.c.bf16 %v4006, %v4005
        %v4012 = vpack.c.bf16 %v4008, %v4007
        %s4013 = scalar_lea.vmem %s13, 112
        %v4014 = vld [vmem:[%s4013] sm:$0xf]
        %v4015 = vld [vmem:[%s4013 + $0x4] sm:$0xf]
        %v4016 = vld [vmem:[%s4013 + $0x8] sm:$0xf]
        %v4017 = vld [vmem:[%s4013 + $0xc] sm:$0xf]
        %v4022 = vunpack.c.l.b16 %v4014
        %v4023 = vunpack.c.l.b16 %v4015
        %v4024 = vunpack.c.l.b16 %v4016
        %v4025 = vunpack.c.l.b16 %v4017
        %v4026 = vpack.c.b16 %v4023, %v4022
        %v4027 = vpack.c.b16 %v4025, %v4024
        %v4031 = vsel %vm604, %v4009, 0
        %v4034 = vsel %vm604, %v4010, 0
        %v4037 = vsel %vm604, %v4011, 0
        %v4040 = vsel %vm604, %v4012, 0
        %4042 = vmatprep.subr.bf16.mxu0 0
        %4043 = vmatpush1.bf16.msra.mxu0 %v4026
        %4044 = vmatprep.subr.bf16.mxu0 0
        %4045 = vmatpush1.bf16.msra.mxu0 %v4027
        %4046 = vmatprep.subr.bf16.mxu0 0
        %4047 = vmatpush1.bf16.msra.mxu0 0
        %4048 = vmatprep.subr.bf16.mxu0 0
        %4049 = vmatpush1.bf16.msra.mxu0 0
        %4050 = vmatprep.subr.bf16.mxu0 0
        %4051 = vmatpush1.bf16.msra.mxu0 0
        %4052 = vmatprep.subr.bf16.mxu0 0
        %4053 = vmatpush1.bf16.msra.mxu0 0
        %4054 = vmatprep.subr.bf16.mxu0 0
        %4055 = vmatpush1.bf16.msra.mxu0 0
        %4056 = vmatprep.subr.bf16.mxu0 0
        %4057 = vmatpush1.bf16.msra.mxu0 0
        %4058 = vmatprep.subr.bf16.mxu0 0
        %4059 = vmatpush1.bf16.msra.mxu0 0
        %4060 = vmatprep.subr.bf16.mxu0 0
        %4061 = vmatpush1.bf16.msra.mxu0 0
        %4062 = vmatprep.subr.bf16.mxu0 0
        %4063 = vmatpush1.bf16.msra.mxu0 0
        %4064 = vmatprep.subr.bf16.mxu0 0
        %4065 = vmatpush1.bf16.msra.mxu0 0
        %4066 = vmatprep.subr.bf16.mxu0 0
        %4067 = vmatpush1.bf16.msra.mxu0 0
        %4068 = vmatprep.subr.bf16.mxu0 0
        %4069 = vmatpush1.bf16.msra.mxu0 0
        %4070 = vmatprep.subr.bf16.mxu0 0
        %4071 = vmatpush1.bf16.msra.mxu0 0
        %4072 = vmatprep.subr.bf16.mxu0 0
        %4073 = vmatpush1.bf16.msra.mxu0 0
        %4074 = vmatprep.mubr.bf16.mxu0 0
        %4075 = vmatmul.mubr.bf16.gmra.mrb[0].mxu0 %v4031
        %v4076 = vpop.f32.mrb[0].mxu0
        %v4077 = vadd.f32 0.0, %v4076
        %v4078 = vpop.f32.mrb[0].mxu0
        %v4079 = vpop.f32.mrb[0].mxu0
        %v4080 = vadd.f32 0.0, %v4079
        %v4081 = vpop.f32.mrb[0].mxu0
        %4082 = vmatprep.mubr.bf16.mxu0 0
        %4083 = vmatmul.mubr.bf16.gmra.mrb[0].mxu0 %v4034
        %v4084 = vpop.f32.mrb[0].mxu0
        %v4085 = vadd.f32 0.0, %v4084
        %v4086 = vpop.f32.mrb[0].mxu0
        %v4087 = vpop.f32.mrb[0].mxu0
        %v4088 = vadd.f32 0.0, %v4087
        %v4089 = vpop.f32.mrb[0].mxu0
        %4090 = vmatprep.mubr.bf16.mxu0 0
        %4091 = vmatmul.mubr.bf16.gmra.mrb[0].mxu0 %v4037
        %v4092 = vpop.f32.mrb[0].mxu0
        %v4093 = vadd.f32 0.0, %v4092
        %v4094 = vpop.f32.mrb[0].mxu0
        %v4095 = vpop.f32.mrb[0].mxu0
        %v4096 = vadd.f32 0.0, %v4095
        %v4097 = vpop.f32.mrb[0].mxu0
        %4098 = vmatprep.mubr.bf16.mxu0 0
        %4099 = vmatmul.mubr.bf16.gmra.mrb[0].mxu0 %v4040
        %v4100 = vpop.f32.mrb[0].mxu0
        %v4101 = vadd.f32 0.0, %v4100
        %v4102 = vpop.f32.mrb[0].mxu0
        %v4103 = vpop.f32.mrb[0].mxu0
        %v4104 = vadd.f32 0.0, %v4103
        %v4105 = vpop.f32.mrb[0].mxu0
        %4106 = vdwg.mxu0
        %v4107 = vadd.f32 %v3993, %v4077
        %v4108 = vadd.f32 %v3994, %v4080
        %v4109 = vadd.f32 %v3995, %v4085
        %v4110 = vadd.f32 %v3996, %v4088
        %v4111 = vadd.f32 %v3997, %v4093
        %v4112 = vadd.f32 %v3998, %v4096
        %v4113 = vadd.f32 %v3999, %v4101
        %v4114 = vadd.f32 %v4000, %v4104
        %v4115 = vld [vmem:[%s3886 + $0x2] sm:$0xff]
        %v4116 = vld [vmem:[%s3886 + $0x12] sm:$0xff]
        %v4117 = vld [vmem:[%s3886 + $0x22] sm:$0xff]
        %v4118 = vld [vmem:[%s3886 + $0x32] sm:$0xff]
        %v4119 = vld [vmem:[%s3886 + $0x42] sm:$0xff]
        %v4120 = vld [vmem:[%s3886 + $0x52] sm:$0xff]
        %v4121 = vld [vmem:[%s3886 + $0x62] sm:$0xff]
        %v4122 = vld [vmem:[%s3886 + $0x72] sm:$0xff]
        %v4123 = vpack.c.bf16 %v4116, %v4115
        %v4124 = vpack.c.bf16 %v4118, %v4117
        %v4125 = vpack.c.bf16 %v4120, %v4119
        %v4126 = vpack.c.bf16 %v4122, %v4121
        %s4127 = scalar_lea.vmem %s13, 128
        %v4128 = vld [vmem:[%s4127] sm:$0xf]
        %v4129 = vld [vmem:[%s4127 + $0x4] sm:$0xf]
        %v4130 = vld [vmem:[%s4127 + $0x8] sm:$0xf]
        %v4131 = vld [vmem:[%s4127 + $0xc] sm:$0xf]
        %v4136 = vunpack.c.l.b16 %v4128
        %v4137 = vunpack.c.l.b16 %v4129
        %v4138 = vunpack.c.l.b16 %v4130
        %v4139 = vunpack.c.l.b16 %v4131
        %v4140 = vpack.c.b16 %v4137, %v4136
        %v4141 = vpack.c.b16 %v4139, %v4138
        %v4145 = vsel %vm604, %v4123, 0
        %v4148 = vsel %vm604, %v4124, 0
        %v4151 = vsel %vm604, %v4125, 0
        %v4154 = vsel %vm604, %v4126, 0
        %4156 = vmatprep.subr.bf16.mxu0 0
        %4157 = vmatpush1.bf16.msra.mxu0 %v4140
        %4158 = vmatprep.subr.bf16.mxu0 0
        %4159 = vmatpush1.bf16.msra.mxu0 %v4141
        %4160 = vmatprep.subr.bf16.mxu0 0
        %4161 = vmatpush1.bf16.msra.mxu0 0
        %4162 = vmatprep.subr.bf16.mxu0 0
        %4163 = vmatpush1.bf16.msra.mxu0 0
        %4164 = vmatprep.subr.bf16.mxu0 0
        %4165 = vmatpush1.bf16.msra.mxu0 0
        %4166 = vmatprep.subr.bf16.mxu0 0
        %4167 = vmatpush1.bf16.msra.mxu0 0
        %4168 = vmatprep.subr.bf16.mxu0 0
        %4169 = vmatpush1.bf16.msra.mxu0 0
        %4170 = vmatprep.subr.bf16.mxu0 0
        %4171 = vmatpush1.bf16.msra.mxu0 0
        %4172 = vmatprep.subr.bf16.mxu0 0
        %4173 = vmatpush1.bf16.msra.mxu0 0
        %4174 = vmatprep.subr.bf16.mxu0 0
        %4175 = vmatpush1.bf16.msra.mxu0 0
        %4176 = vmatprep.subr.bf16.mxu0 0
        %4177 = vmatpush1.bf16.msra.mxu0 0
        %4178 = vmatprep.subr.bf16.mxu0 0
        %4179 = vmatpush1.bf16.msra.mxu0 0
        %4180 = vmatprep.subr.bf16.mxu0 0
        %4181 = vmatpush1.bf16.msra.mxu0 0
        %4182 = vmatprep.subr.bf16.mxu0 0
        %4183 = vmatpush1.bf16.msra.mxu0 0
        %4184 = vmatprep.subr.bf16.mxu0 0
        %4185 = vmatpush1.bf16.msra.mxu0 0
        %4186 = vmatprep.subr.bf16.mxu0 0
        %4187 = vmatpush1.bf16.msra.mxu0 0
        %4188 = vmatprep.mubr.bf16.mxu0 0
        %4189 = vmatmul.mubr.bf16.gmra.mrb[0].mxu0 %v4145
        %v4190 = vpop.f32.mrb[0].mxu0
        %v4191 = vadd.f32 0.0, %v4190
        %v4192 = vpop.f32.mrb[0].mxu0
        %v4193 = vpop.f32.mrb[0].mxu0
        %v4194 = vadd.f32 0.0, %v4193
        %v4195 = vpop.f32.mrb[0].mxu0
        %4196 = vmatprep.mubr.bf16.mxu0 0
        %4197 = vmatmul.mubr.bf16.gmra.mrb[0].mxu0 %v4148
        %v4198 = vpop.f32.mrb[0].mxu0
        %v4199 = vadd.f32 0.0, %v4198
        %v4200 = vpop.f32.mrb[0].mxu0
        %v4201 = vpop.f32.mrb[0].mxu0
        %v4202 = vadd.f32 0.0, %v4201
        %v4203 = vpop.f32.mrb[0].mxu0
        %4204 = vmatprep.mubr.bf16.mxu0 0
        %4205 = vmatmul.mubr.bf16.gmra.mrb[0].mxu0 %v4151
        %v4206 = vpop.f32.mrb[0].mxu0
        %v4207 = vadd.f32 0.0, %v4206
        %v4208 = vpop.f32.mrb[0].mxu0
        %v4209 = vpop.f32.mrb[0].mxu0
        %v4210 = vadd.f32 0.0, %v4209
        %v4211 = vpop.f32.mrb[0].mxu0
        %4212 = vmatprep.mubr.bf16.mxu0 0
        %4213 = vmatmul.mubr.bf16.gmra.mrb[0].mxu0 %v4154
        %v4214 = vpop.f32.mrb[0].mxu0
        %v4215 = vadd.f32 0.0, %v4214
        %v4216 = vpop.f32.mrb[0].mxu0
        %v4217 = vpop.f32.mrb[0].mxu0
        %v4218 = vadd.f32 0.0, %v4217
        %v4219 = vpop.f32.mrb[0].mxu0
        %4220 = vdwg.mxu0
        %v4221 = vadd.f32 %v4107, %v4191
        %v4222 = vadd.f32 %v4108, %v4194
        %v4223 = vadd.f32 %v4109, %v4199
        %v4224 = vadd.f32 %v4110, %v4202
        %v4225 = vadd.f32 %v4111, %v4207
        %v4226 = vadd.f32 %v4112, %v4210
        %v4227 = vadd.f32 %v4113, %v4215
        %v4228 = vadd.f32 %v4114, %v4218
        %v4229 = vld [vmem:[%s14] sm:$0x1]
        %v4231 = vlaneseq
        %v4232 = vshrl.u32 %v4231, 7
        %v4233 = vsub.s32 0, %v4232
        %v4234 = vrot.slane %v4229, %v4233
        %v4236 = vmul.f32 %v4221, %v4234
        %v4237 = vmul.f32 %v4222, %v4234
        %v4238 = vmul.f32 %v4223, %v4234
        %v4239 = vmul.f32 %v4224, %v4234
        %v4240 = vmul.f32 %v4225, %v4234
        %v4241 = vmul.f32 %v4226, %v4234
        %v4242 = vmul.f32 %v4227, %v4234
        %v4243 = vmul.f32 %v4228, %v4234
        %v4244 = vld [vmem:[%s15] sm:$0x1]
        %v4246 = vlaneseq
        %v4247 = vshrl.u32 %v4246, 7
        %v4248 = vsub.s32 0, %v4247
        %v4249 = vrot.slane %v4244, %v4248
        %v4251 = vadd.f32 %v4236, %v4249
        %v4252 = vadd.f32 %v4237, %v4249
        %v4253 = vadd.f32 %v4238, %v4249
        %v4254 = vadd.f32 %v4239, %v4249
        %v4255 = vadd.f32 %v4240, %v4249
        %v4256 = vadd.f32 %v4241, %v4249
        %v4257 = vadd.f32 %v4242, %v4249
        %v4258 = vadd.f32 %v4243, %v4249
        %v4259 = vmax.f32 %v4251, 0.0
        %v4260 = vmax.f32 %v4252, 0.0
        %v4261 = vmax.f32 %v4253, 0.0
        %v4262 = vmax.f32 %v4254, 0.0
        %v4263 = vmax.f32 %v4255, 0.0
        %v4264 = vmax.f32 %v4256, 0.0
        %v4265 = vmax.f32 %v4257, 0.0
        %v4266 = vmax.f32 %v4258, 0.0
        %4267 = vst.msk [vmem:[%s568] sm:$0xff] %vm604, %v785
        %4268 = vst.msk [vmem:[%s568 + $0x8] sm:$0xff] %vm604, %v786
        %4269 = vst.msk [vmem:[%s568 + $0x10] sm:$0xff] %vm604, %v787
        %4270 = vst.msk [vmem:[%s568 + $0x18] sm:$0xff] %vm604, %v788
        %4271 = vst.msk [vmem:[%s568 + $0x20] sm:$0xff] %vm604, %v789
        %4272 = vst.msk [vmem:[%s568 + $0x28] sm:$0xff] %vm604, %v790
        %4273 = vst.msk [vmem:[%s568 + $0x30] sm:$0xff] %vm604, %v791
        %4274 = vst.msk [vmem:[%s568 + $0x38] sm:$0xff] %vm604, %v792
        %4283 = vrot.lane.b32.xlu0 %v1051, 32
        %v4284 = vpop.permute.xlu0 %4283
        %4285 = vrot.lane.b32.xlu0 %v1052, 32
        %v4286 = vpop.permute.xlu0 %4285
        %4287 = vrot.lane.b32.xlu0 %v1053, 32
        %v4288 = vpop.permute.xlu0 %4287
        %4289 = vrot.lane.b32.xlu0 %v1054, 32
        %v4290 = vpop.permute.xlu0 %4289
        %4291 = vrot.lane.b32.xlu0 %v1055, 32
        %v4292 = vpop.permute.xlu0 %4291
        %4293 = vrot.lane.b32.xlu0 %v1056, 32
        %v4294 = vpop.permute.xlu0 %4293
        %4295 = vrot.lane.b32.xlu0 %v1057, 32
        %v4296 = vpop.permute.xlu0 %4295
        %4297 = vrot.lane.b32.xlu0 %v1058, 32
        %v4298 = vpop.permute.xlu0 %4297
        %vm4307 = vcmask 523520
        %4308 = vst.msk [vmem:[%s568] sm:$0xff] %vm4307, %v4284
        %4309 = vst.msk [vmem:[%s568 + $0x8] sm:$0xff] %vm4307, %v4286
        %4310 = vst.msk [vmem:[%s568 + $0x10] sm:$0xff] %vm4307, %v4288
        %4311 = vst.msk [vmem:[%s568 + $0x18] sm:$0xff] %vm4307, %v4290
        %4312 = vst.msk [vmem:[%s568 + $0x20] sm:$0xff] %vm4307, %v4292
        %4313 = vst.msk [vmem:[%s568 + $0x28] sm:$0xff] %vm4307, %v4294
        %4314 = vst.msk [vmem:[%s568 + $0x30] sm:$0xff] %vm4307, %v4296
        %4315 = vst.msk [vmem:[%s568 + $0x38] sm:$0xff] %vm4307, %v4298
        %4324 = vrot.lane.b32.xlu0 %v2132, 64
        %v4325 = vpop.permute.xlu0 %4324
        %4326 = vrot.lane.b32.xlu0 %v2133, 64
        %v4327 = vpop.permute.xlu0 %4326
        %4328 = vrot.lane.b32.xlu0 %v2134, 64
        %v4329 = vpop.permute.xlu0 %4328
        %4330 = vrot.lane.b32.xlu0 %v2135, 64
        %v4331 = vpop.permute.xlu0 %4330
        %4332 = vrot.lane.b32.xlu0 %v2136, 64
        %v4333 = vpop.permute.xlu0 %4332
        %4334 = vrot.lane.b32.xlu0 %v2137, 64
        %v4335 = vpop.permute.xlu0 %4334
        %4336 = vrot.lane.b32.xlu0 %v2138, 64
        %v4337 = vpop.permute.xlu0 %4336
        %4338 = vrot.lane.b32.xlu0 %v2139, 64
        %v4339 = vpop.permute.xlu0 %4338
        %vm4348 = vcmask 785920
        %4349 = vst.msk [vmem:[%s568] sm:$0xff] %vm4348, %v4325
        %4350 = vst.msk [vmem:[%s568 + $0x8] sm:$0xff] %vm4348, %v4327
        %4351 = vst.msk [vmem:[%s568 + $0x10] sm:$0xff] %vm4348, %v4329
        %4352 = vst.msk [vmem:[%s568 + $0x18] sm:$0xff] %vm4348, %v4331
        %4353 = vst.msk [vmem:[%s568 + $0x20] sm:$0xff] %vm4348, %v4333
        %4354 = vst.msk [vmem:[%s568 + $0x28] sm:$0xff] %vm4348, %v4335
        %4355 = vst.msk [vmem:[%s568 + $0x30] sm:$0xff] %vm4348, %v4337
        %4356 = vst.msk [vmem:[%s568 + $0x38] sm:$0xff] %vm4348, %v4339
        %4365 = vrot.lane.b32.xlu0 %v4259, 96
        %v4366 = vpop.permute.xlu0 %4365
        %4367 = vrot.lane.b32.xlu0 %v4260, 96
        %v4368 = vpop.permute.xlu0 %4367
        %4369 = vrot.lane.b32.xlu0 %v4261, 96
        %v4370 = vpop.permute.xlu0 %4369
        %4371 = vrot.lane.b32.xlu0 %v4262, 96
        %v4372 = vpop.permute.xlu0 %4371
        %4373 = vrot.lane.b32.xlu0 %v4263, 96
        %v4374 = vpop.permute.xlu0 %4373
        %4375 = vrot.lane.b32.xlu0 %v4264, 96
        %v4376 = vpop.permute.xlu0 %4375
        %4377 = vrot.lane.b32.xlu0 %v4265, 96
        %v4378 = vpop.permute.xlu0 %4377
        %4379 = vrot.lane.b32.xlu0 %v4266, 96
        %v4380 = vpop.permute.xlu0 %4379
        %vm4389 = vcmask 1048320
        %4390 = vst.msk [vmem:[%s568] sm:$0xff] %vm4389, %v4366
        %4391 = vst.msk [vmem:[%s568 + $0x8] sm:$0xff] %vm4389, %v4368
        %4392 = vst.msk [vmem:[%s568 + $0x10] sm:$0xff] %vm4389, %v4370
        %4393 = vst.msk [vmem:[%s568 + $0x18] sm:$0xff] %vm4389, %v4372
        %4394 = vst.msk [vmem:[%s568 + $0x20] sm:$0xff] %vm4389, %v4374
        %4395 = vst.msk [vmem:[%s568 + $0x28] sm:$0xff] %vm4389, %v4376
        %4396 = vst.msk [vmem:[%s568 + $0x30] sm:$0xff] %vm4389, %v4378
        %4397 = vst.msk [vmem:[%s568 + $0x38] sm:$0xff] %vm4389, %v4380
        %s4398 = sand.u32 %s383, 1
        %s4399 = scalar_lea.sflag [#allocation7], %s4398
        %s4400 = sand.u32 %s383, 1
        %s4401 = smul.addr %s4400, 64
        %s4402 = scalar_lea.vmem [#allocation11], %s4401
        // Predicated region
        $region97: #{inception_forward.1} parent=83 // pred_check
          %p4403 = pneg %p393
        $region98: #{inception_forward.1} parent=83 // pred_check_branch
          %4405 = sbr.rel (%p4403) target = $region100
        $region99: #{inception_forward.1} parent=83 // pred_region
          %s4407 = ssub.s32 1024, 1024
          %4408 = vsyncadd %s4399, %s4407
          %s4409 = smul.addr %s34, 8
          %s4410 = smul.addr %s4409, 128
          %s4411 = scalar_lea.hbm %s16, %s4410
          %s4412 = sshll.u32 %s4402, 4
          %s4413 = int_to_ptr.vmem [resolvable:$true] %s4412
          %4418 = dma.vmem_to_hbm [thread:$0]  %s4413, 1024, %s4411, %s4399, 128, 128, 8
        $region100: #{inception_forward.1} parent=83 // pred_fallthru
          _
      $region84: #{inception_forward.1} parent=5 // pred_fallthru
        _
      %p4419 = scmp.le.s32.totalorder 2, %s29
      // Predicated region
      $region101: #{inception_forward.1} parent=5 // pred_check
        %p4420 = pneg %p4419
      $region102: #{inception_forward.1} parent=5 // pred_check_branch
        %4422 = sbr.rel (%p4420) target = $region104
      $region103: #{inception_forward.1} parent=5 // pred_region
        %s4423 = ssub.s32 %s29, 2
        // Predicated region
        $region105: #{inception_forward.1} parent=103 // pred_check
          %p4424 = pneg %p399
        $region106: #{inception_forward.1} parent=103 // pred_check_branch
          %4426 = sbr.rel (%p4424) target = $region108
        $region107: #{inception_forward.1} parent=103 // pred_region
          %s4427 = sand.u32 %s384, 1
          %s4428 = scalar_lea.sflag [#allocation7], %s4427
          %s4429 = sand.u32 %s384, 1
          %s4430 = smul.addr %s4429, 64
          %s4431 = scalar_lea.vmem [#allocation11], %s4430
          %4432 = dma.done %s4428, 1024
        $region108: #{inception_forward.1} parent=103 // pred_fallthru
          _
      $region104: #{inception_forward.1} parent=5 // pred_fallthru
        _
    $region6: #{inception_forward.1} parent=1 // loop_footer
      %s33 = sadd.s32 1, %s29
    $region7: #{inception_forward.1} parent=1 // loop_footer_branch
      %28 = sbr.rel target = $region3
    $region8: #{inception_forward.1} parent=1 // loop_exit
      _
    %4433 = vsyncpa [#allocation6], 1
    %s4434 = scalar_lea.sflag [#allocation6], 1
    %4435 = vsyncpa %s4434, 1
    %4436 = vsyncpa [#allocation9], 1
    %4437 = vsyncpa [#allocation7], 1
    %s4438 = scalar_lea.sflag [#allocation7], 1
    %4439 = vsyncpa %s4438, 1

</llo_original>
